<compile_context>
chip_gen: v7x
topology: tpu7x:2x2x1
jax: 0.10.0
libtpu: 0.0.40
codegen_flags: <defaults>
</compile_context>

<pallas_src>
import functools

import numpy as np
import jax
import jax.numpy as jnp
from jax.experimental import pallas as pl
from jax.experimental.pallas import tpu as pltpu


_VMEM_LIMIT = 40 * 1024 * 1024   # fits v7x (64 MiB/TC) with headroom


def _cparams():
    return pltpu.CompilerParams(dimension_semantics=("parallel",),
                                vmem_limit_bytes=_VMEM_LIMIT)


def _full_spec(shape):
    """Small constant operand (weights / bias) resident at every grid step."""
    return pl.BlockSpec(tuple(shape), lambda n: (0,) * len(shape))


def _img_spec(shape):
    """One image (batch element) per grid step."""
    nd = len(shape)
    return pl.BlockSpec((1,) + tuple(shape[1:]),
                        lambda n: (n,) + (0,) * (nd - 1))


# ---------------------------------------------------------------------------
# In-kernel helpers
# ---------------------------------------------------------------------------
def _fill_cols_3x3(cols_ref, xp, H, W, C):
    """im2col for a 3x3/pad-1 conv: K = 9*C, from a (H+2, W+2, C) padded value."""
    for ky in range(3):
        for kx in range(3):
            off = (ky * 3 + kx) * C
            cols_ref[:, off:off + C] = \
                xp[ky:ky + H, kx:kx + W, :].reshape(H * W, C)


def _fill_cols_2x2(cols_ref, xp, H, W, C, ry, rx):
    """im2col for one sub-pixel phase of ConvT(4, s=2, p=1): K = 4*C."""
    for dy in range(2):
        for dx in range(2):
            off = (dy * 2 + dx) * C
            cols_ref[:, off:off + C] = \
                xp[ry + dy:ry + dy + H, rx + dx:rx + dx + W, :].reshape(H * W, C)


def _layernorm(p, g, b, eps):
    mu = jnp.mean(p, axis=-1, keepdims=True)
    pc = p - mu
    var = jnp.mean(pc * pc, axis=-1, keepdims=True)
    return pc * jax.lax.rsqrt(var + eps) * g + b


# ---------------------------------------------------------------------------
# Kernel A: conv_in -> ResBlocks -> ReLU -> ConvT(4,2,1) [-> ReLU | -> LN]
# ---------------------------------------------------------------------------
def _decoder_body_kernel(*refs, H, W, Cin, Ch, Cdec, n_res, relu_out, ln_eps):
    it = iter(refs)
    x_ref, w_in, b_in = next(it), next(it), next(it)
    res = [(next(it), next(it), next(it), next(it)) for _ in range(n_res)]
    wd, bd = next(it), next(it)
    ln_g = ln_b = None
    if ln_eps is not None:
        ln_g, ln_b = next(it), next(it)
    o_ref = next(it)
    xin_pad, act, cols = next(it), next(it), next(it)

    HW = H * W

    def dot_k(K, w_val):
        return jnp.dot(cols[:, 0:K].astype(jnp.bfloat16), w_val,
                       preferred_element_type=jnp.float32)

    # ---- conv_in (3x3, pad=1): halo built in VMEM, one K=9*Cin matmul -----
    xin_pad[...] = jnp.zeros_like(xin_pad)
    xin_pad[1:H + 1, 1:W + 1, :] = x_ref[0]
    _fill_cols_3x3(cols, xin_pad[...], H, W, Cin)
    y = dot_k(9 * Cin, w_in[...]) + b_in[...]

    act[...] = jnp.zeros_like(act)                     # zero halo every step
    act[1:H + 1, 1:W + 1, :] = y.reshape(H, W, Ch)

    # ---- ResBlocks: ReLU -> 3x3 -> ReLU -> 1x1 -> + residual (in VMEM) ----
    for w3, b3, w1, b1 in res:
        a = act[...]                                   # pre-activation, zero halo
        _fill_cols_3x3(cols, jnp.maximum(a, 0.0), H, W, Ch)   # ReLU(0)=0 halo ok
        t = jnp.maximum(dot_k(9 * Ch, w3[...]) + b3[...], 0.0)
        y = jnp.dot(t.astype(jnp.bfloat16), w1[...],
                    preferred_element_type=jnp.float32) + b1[...]
        act[1:H + 1, 1:W + 1, :] = y.reshape(H, W, Ch) + a[1:H + 1, 1:W + 1, :]

    # ---- trailing ReLU fused into the ConvT read (halo stays zero) --------
    hp = jnp.maximum(act[...], 0.0)

    # ---- ConvT(4, s=2, p=1): 4 sub-pixel phases, K = 4*Ch each ------------
    for ry in range(2):
        for rx in range(2):
            _fill_cols_2x2(cols, hp, H, W, Ch, ry, rx)
            p = dot_k(4 * Ch, wd[ry * 2 + rx]) + bd[...]
            if relu_out:                               # mid ReLU of stride==4
                p = jnp.maximum(p, 0.0)
            if ln_eps is not None:                     # fused final LayerNorm
                p = _layernorm(p, ln_g[...], ln_b[...], ln_eps)
            o_ref[0, :, ry, :, rx * Cdec:(rx + 1) * Cdec] = \
                p.reshape(H, W, Cdec).astype(o_ref.dtype)


# ---------------------------------------------------------------------------
# Kernel B (stride==4 only): ConvT(4,2,1) on an already-ReLU'd input (+opt LN)
# ---------------------------------------------------------------------------
def _deconv_ln_kernel(*refs, H, W, Cin, Cout, ln_eps):
    it = iter(refs)
    x_ref, wd, bd = next(it), next(it), next(it)
    ln_g = ln_b = None
    if ln_eps is not None:
        ln_g, ln_b = next(it), next(it)
    o_ref = next(it)
    xpad, cols = next(it), next(it)

    xpad[...] = jnp.zeros_like(xpad)                   # in-kernel halo
    xpad[1:H + 1, 1:W + 1, :] = x_ref[0].astype(jnp.float32)
    xp = xpad[...]
    for ry in range(2):
        for rx in range(2):
            _fill_cols_2x2(cols, xp, H, W, Cin, ry, rx)
            p = jnp.dot(cols[...].astype(jnp.bfloat16), wd[ry * 2 + rx],
                        preferred_element_type=jnp.float32) + bd[...]
            if ln_eps is not None:
                p = _layernorm(p, ln_g[...], ln_b[...], ln_eps)
            o_ref[0, :, ry, :, rx * Cout:(rx + 1) * Cout] = p.reshape(H, W, Cout)


# ---------------------------------------------------------------------------
# Weight preparation (tiny one-time XLA ops, bf16 matmul operands)
# ---------------------------------------------------------------------------
def _prep_conv3x3_w(w_hwio):
    kh, kw, ci, co = w_hwio.shape
    return w_hwio.reshape(kh * kw * ci, co).astype(jnp.bfloat16)      # (9*Cin, Cout)


def _prep_deconv_w(wt):
    """PyTorch ConvTranspose2d weight (Cin, Cout, 4, 4) -> (4 phases, 4*Cin, Cout)."""
    phases = []
    for ry in range(2):
        for rx in range(2):
            taps = [wt[:, :, 3 - ry - 2 * dy, 3 - rx - 2 * dx]
                    for dy in range(2) for dx in range(2)]
            phases.append(jnp.concatenate(taps, axis=0))               # (4*Cin, Cout)
    return jnp.stack(phases, axis=0).astype(jnp.bfloat16)


# ---------------------------------------------------------------------------
# pallas_call wrappers
# ---------------------------------------------------------------------------
def _body_call(x, w_in, b_in, res_args, wd, bd, ln, *,
               n_res, Ch, Cdec, relu_out, out_dtype, eps=1e-6):
    N, H, W, Cin = x.shape
    HW = H * W
    K_max = max([9 * Cin, 4 * Ch] + ([9 * Ch] if n_res else []))

    args = [x, w_in, b_in, *res_args, wd, bd]
    in_specs = [_img_spec(x.shape), _full_spec(w_in.shape), _full_spec(b_in.shape)]
    in_specs += [_full_spec(a.shape) for a in res_args]
    in_specs += [_full_spec(wd.shape), _full_spec(bd.shape)]
    ln_eps = None
    if ln is not None:
        ln_eps = eps
        args += [ln[0], ln[1]]
        in_specs += [_full_spec(ln[0].shape), _full_spec(ln[1].shape)]

    out_shape5 = (N, H, 2, W, 2 * Cdec)
    kern = functools.partial(_decoder_body_kernel, H=H, W=W, Cin=Cin, Ch=Ch,
                             Cdec=Cdec, n_res=n_res, relu_out=relu_out,
                             ln_eps=ln_eps)
    flops = 2 * N * HW * (9 * Cin * Ch + 16 * Ch * Cdec)
    for a in res_args[::4]:
        cres = a.shape[-1]
        flops += 2 * N * HW * (9 * Ch * cres + cres * Ch)
    bytes_acc = (4 * x.size + np.dtype(out_dtype).itemsize * N * HW * 4 * Cdec
                 + 2 * (w_in.size + wd.size + sum(a.size for a in res_args)))
    out = pl.pallas_call(
        kern,
        grid=(N,),
        in_specs=in_specs,
        out_specs=_img_spec(out_shape5),
        out_shape=jax.ShapeDtypeStruct(out_shape5, out_dtype),
        scratch_shapes=[pltpu.VMEM((H + 2, W + 2, Cin), jnp.float32),  # padded input
                        pltpu.VMEM((H + 2, W + 2, Ch), jnp.float32),   # padded activation
                        pltpu.VMEM((HW, K_max), jnp.float32)],         # im2col buffer
        compiler_params=_cparams(),
        cost_estimate=pl.CostEstimate(flops=int(flops),
                                      transcendentals=int(4 * N * HW if ln else 0),
                                      bytes_accessed=int(bytes_acc)),
    )(*args)
    return out.reshape(N, 2 * H, 2 * W, Cdec)          # free row-major view


def _deconv_call(x, wd, bd, ln, *, eps=1e-6):
    N, H, W, Cin = x.shape
    Cout = wd.shape[-1]
    HW = H * W
    args = [x, wd, bd]
    in_specs = [_img_spec(x.shape), _full_spec(wd.shape), _full_spec(bd.shape)]
    ln_eps = None
    if ln is not None:
        ln_eps = eps
        args += [ln[0], ln[1]]
        in_specs += [_full_spec(ln[0].shape), _full_spec(ln[1].shape)]
    out_shape5 = (N, H, 2, W, 2 * Cout)
    kern = functools.partial(_deconv_ln_kernel, H=H, W=W, Cin=Cin, Cout=Cout,
                             ln_eps=ln_eps)
    out = pl.pallas_call(
        kern,
        grid=(N,),
        in_specs=in_specs,
        out_specs=_img_spec(out_shape5),
        out_shape=jax.ShapeDtypeStruct(out_shape5, jnp.float32),
        scratch_shapes=[pltpu.VMEM((H + 2, W + 2, Cin), jnp.float32),
                        pltpu.VMEM((HW, 4 * Cin), jnp.float32)],
        compiler_params=_cparams(),
        cost_estimate=pl.CostEstimate(
            flops=int(2 * N * HW * 16 * Cin * Cout),
            transcendentals=int(4 * N * HW if ln else 0),
            bytes_accessed=int(np.dtype(x.dtype).itemsize * x.size
                               + 4 * N * HW * 4 * Cout + 2 * wd.size)),
    )(*args)
    return out.reshape(N, 2 * H, 2 * W, Cout)           # free row-major view


# ---------------------------------------------------------------------------
# Decoder: params + forward
# ---------------------------------------------------------------------------
def init_decoder_params(key, in_channel, out_channel, channel, n_res_block,
                        n_res_channel, stride):
    keys = iter(jax.random.split(key, 64))

    def w(shape, scale=0.1):
        return scale * jax.random.normal(next(keys), shape, jnp.float32)

    p = {
        "stride": stride,
        "conv_in_w": w((3, 3, in_channel, channel)),   # HWIO
        "conv_in_b": w((channel,)),
        "res_blocks": [],
    }
    for _ in range(n_res_block):
        p["res_blocks"].append({
            "w3": w((3, 3, channel, n_res_channel)),   # HWIO
            "b3": w((n_res_channel,)),
            "w1": w((1, 1, n_res_channel, channel)),   # HWIO
            "b1": w((channel,)),
        })
    if stride == 4:
        p["ct1_w"] = w((channel, channel // 2, 4, 4))  # PyTorch ConvT layout
        p["ct1_b"] = w((channel // 2,))
        p["ct2_w"] = w((channel // 2, out_channel, 4, 4))
        p["ct2_b"] = w((out_channel,))
    elif stride == 2:
        p["ct_w"] = w((channel, out_channel, 4, 4))
        p["ct_b"] = w((out_channel,))
    else:
        raise ValueError("stride must be 2 or 4")
    p["ln_g"] = 1.0 + 0.1 * jax.random.normal(next(keys), (out_channel,), jnp.float32)
    p["ln_b"] = 0.1 * jax.random.normal(next(keys), (out_channel,), jnp.float32)
    return p


def decoder_forward(params, x_nchw, is_final=False):
    x = jnp.transpose(x_nchw, (0, 2, 3, 1)).astype(jnp.float32)   # NCHW -> NHWC
    Ch = params["conv_in_w"].shape[-1]
    n_res = len(params["res_blocks"])
    stride = params["stride"]

    w_in = _prep_conv3x3_w(params["conv_in_w"])
    b_in = params["conv_in_b"].reshape(1, -1)
    res_args = []
    for rb in params["res_blocks"]:
        res_args += [_prep_conv3x3_w(rb["w3"]), rb["b3"].reshape(1, -1),
                     rb["w1"][0, 0].astype(jnp.bfloat16), rb["b1"].reshape(1, -1)]

    def ln_args(cout):
        if not is_final:
            return None
        return (params["ln_g"].reshape(1, cout), params["ln_b"].reshape(1, cout))

    if stride == 4:
        c_half = params["ct1_w"].shape[1]
        c_out = params["ct2_w"].shape[1]
        # fused: conv_in + resblocks + ReLU + ConvT1 + ReLU  (mid stored bf16)
        mid = _body_call(x, w_in, b_in, res_args,
                         _prep_deconv_w(params["ct1_w"]),
                         params["ct1_b"].reshape(1, -1), None,
                         n_res=n_res, Ch=Ch, Cdec=c_half,
                         relu_out=True, out_dtype=jnp.bfloat16)
        # fused: ConvT2 (+ LayerNorm)
        y = _deconv_call(mid, _prep_deconv_w(params["ct2_w"]),
                         params["ct2_b"].reshape(1, -1), ln_args(c_out))
    elif stride == 2:
        c_out = params["ct_w"].shape[1]
        # single fused kernel: conv_in + resblocks + ReLU + ConvT (+ LayerNorm)
        y = _body_call(x, w_in, b_in, res_args,
                       _prep_deconv_w(params["ct_w"]),
                       params["ct_b"].reshape(1, -1), ln_args(c_out),
                       n_res=n_res, Ch=Ch, Cdec=c_out,
                       relu_out=False, out_dtype=jnp.float32)
    else:
        raise ValueError("stride must be 2 or 4")
    return jnp.transpose(y, (0, 3, 1, 2))               # NHWC -> NCHW


# ---------------------------------------------------------------------------
# Pure-numpy reference (PyTorch semantics, NCHW) for verification
# ---------------------------------------------------------------------------
def _ref_conv2d(x, w_hwio, b, pad, relu_in=False, relu_out=False):
    if relu_in:
        x = np.maximum(x, 0.0)
    w = np.transpose(np.asarray(w_hwio), (3, 2, 0, 1))  # -> OIHW
    xp = np.pad(x, ((0, 0), (0, 0), (pad, pad), (pad, pad)))
    Co, Ci, kH, kW = w.shape
    N, _, Hp, Wp = xp.shape
    H, W = Hp - kH + 1, Wp - kW + 1
    out = np.zeros((N, Co, H, W), np.float32)
    for ky in range(kH):
        for kx in range(kW):
            patch = xp[:, :, ky:ky + H, kx:kx + W]
            out += np.einsum('nchw,oc->nohw', patch, w[:, :, ky, kx])
    out += np.asarray(b)[None, :, None, None]
    if relu_out:
        out = np.maximum(out, 0.0)
    return out


def _ref_conv_transpose2d(x, wt, b, stride=2, pad=1):
    wt = np.asarray(wt)
    N, Ci, H, W = x.shape
    _, Co, kH, kW = wt.shape
    Ho = (H - 1) * stride - 2 * pad + kH
    Wo = (W - 1) * stride - 2 * pad + kW
    full = np.zeros((N, Co, (H - 1) * stride + kH, (W - 1) * stride + kW), np.float32)
    for ky in range(kH):
        for kx in range(kW):
            full[:, :, ky:(H - 1) * stride + ky + 1:stride,
                 kx:(W - 1) * stride + kx + 1:stride] += \
                np.einsum('nchw,cd->ndhw', x, wt[:, :, ky, kx])
    return full[:, :, pad:pad + Ho, pad:pad + Wo] + np.asarray(b)[None, :, None, None]


def ref_decoder(params, x_nchw, is_final):
    h = np.asarray(x_nchw, np.float32)
    h = _ref_conv2d(h, params["conv_in_w"], params["conv_in_b"], pad=1)
    for rb in params["res_blocks"]:
        t = _ref_conv2d(h, rb["w3"], rb["b3"], pad=1, relu_in=True, relu_out=True)
        h = h + _ref_conv2d(t, rb["w1"], rb["b1"], pad=0)
    h = np.maximum(h, 0.0)
    if params["stride"] == 4:
        h = _ref_conv_transpose2d(h, params["ct1_w"], params["ct1_b"])
        h = np.maximum(h, 0.0)
        h = _ref_conv_transpose2d(h, params["ct2_w"], params["ct2_b"])
    else:
        h = _ref_conv_transpose2d(h, params["ct_w"], params["ct_b"])
    if is_final:
        v = np.transpose(h, (0, 2, 3, 1))
        mean = v.mean(-1, keepdims=True)
        var = ((v - mean) ** 2).mean(-1, keepdims=True)
        v = (v - mean) / np.sqrt(var + 1e-6) * np.asarray(params["ln_g"]) \
            + np.asarray(params["ln_b"])
        h = np.transpose(v, (0, 3, 1, 2))
    return h


# ---------------------------------------------------------------------------
if __name__ == "__main__":
    key = jax.random.PRNGKey(0)
    k_in, k_p2, k_p4 = jax.random.split(key, 3)

    # small shapes: batch=2, in_channel=8, out_channel=8, channel=32,
    # n_res_block=2, n_res_channel=16, spatial=8x8
    N, in_ch, out_ch, ch, n_res, res_ch, S = 2, 8, 8, 32, 2, 16, 8
    x = jax.random.normal(k_in, (N, in_ch, S, S), jnp.float32)   # NCHW input

    ok = True
    cases = [(2, k_p2, True), (4, k_p4, True), (4, k_p4, False)]
    for stride, kp, is_final in cases:
        params = init_decoder_params(kp, in_ch, out_ch, ch, n_res, res_ch, stride)
        y = jax.block_until_ready(decoder_forward(params, x, is_final=is_final))
        y_np = np.asarray(y)
        y_ref = ref_decoder(params, x, is_final)
        if y_np.shape != y_ref.shape:
            ok = False
            print("shape mismatch", stride, is_final, y_np.shape, y_ref.shape)
            continue
        rel = np.linalg.norm(y_np - y_ref) / (np.linalg.norm(y_ref) + 1e-12)
        if not np.isfinite(rel) or rel > 3e-2:
            ok = False
            print(f"mismatch stride={stride} is_final={is_final} "
                  f"rel_l2={rel:.4e} "
                  f"max_abs={float(np.max(np.abs(y_np - y_ref))):.4e}")

    if ok:
        print("KERNEL_OK")
</pallas_src>

<mosaic_0001>
module attributes {stable_mosaic.version = 11 : i64} {
  func.func @_decoder_body_kernel(%arg0: i32, %arg1: memref<1x8x8x8xf32, #tpu.memory_space<vmem>>, %arg2: memref<72x32xbf16, #tpu.memory_space<vmem>>, %arg3: memref<1x32xf32, #tpu.memory_space<vmem>>, %arg4: memref<288x16xbf16, #tpu.memory_space<vmem>>, %arg5: memref<1x16xf32, #tpu.memory_space<vmem>>, %arg6: memref<16x32xbf16, #tpu.memory_space<vmem>>, %arg7: memref<1x32xf32, #tpu.memory_space<vmem>>, %arg8: memref<288x16xbf16, #tpu.memory_space<vmem>>, %arg9: memref<1x16xf32, #tpu.memory_space<vmem>>, %arg10: memref<16x32xbf16, #tpu.memory_space<vmem>>, %arg11: memref<1x32xf32, #tpu.memory_space<vmem>>, %arg12: memref<4x128x8xbf16, #tpu.memory_space<vmem>>, %arg13: memref<1x8xf32, #tpu.memory_space<vmem>>, %arg14: memref<1x8xf32, #tpu.memory_space<vmem>>, %arg15: memref<1x8xf32, #tpu.memory_space<vmem>>, %arg16: memref<1x8x2x8x16xf32, #tpu.memory_space<vmem>>, %arg17: memref<10x10x8xf32, #tpu.memory_space<vmem>>, %arg18: memref<10x10x32xf32, #tpu.memory_space<vmem>>, %arg19: memref<64x288xf32, #tpu.memory_space<vmem>>) attributes {dimension_semantics = [#tpu.dimension_semantics<parallel>], iteration_bounds = array<i64: 2>, scalar_prefetch = 0 : i64, scratch_operands = 3 : i64, tpu.core_type = #tpu.core_type<tc>, window_params = [{transform_indices = @transform_0, window_bounds = array<i64: 1, 8, 8, 8>}, {pipeline_mode = #tpu.pipeline_mode<synchronous>, transform_indices = @transform_1, window_bounds = array<i64: 72, 32>}, {pipeline_mode = #tpu.pipeline_mode<synchronous>, transform_indices = @transform_2, window_bounds = array<i64: 1, 32>}, {pipeline_mode = #tpu.pipeline_mode<synchronous>, transform_indices = @transform_3, window_bounds = array<i64: 288, 16>}, {pipeline_mode = #tpu.pipeline_mode<synchronous>, transform_indices = @transform_4, window_bounds = array<i64: 1, 16>}, {pipeline_mode = #tpu.pipeline_mode<synchronous>, transform_indices = @transform_5, window_bounds = array<i64: 16, 32>}, {pipeline_mode = #tpu.pipeline_mode<synchronous>, transform_indices = @transform_6, window_bounds = array<i64: 1, 32>}, {pipeline_mode = #tpu.pipeline_mode<synchronous>, transform_indices = @transform_7, window_bounds = array<i64: 288, 16>}, {pipeline_mode = #tpu.pipeline_mode<synchronous>, transform_indices = @transform_8, window_bounds = array<i64: 1, 16>}, {pipeline_mode = #tpu.pipeline_mode<synchronous>, transform_indices = @transform_9, window_bounds = array<i64: 16, 32>}, {pipeline_mode = #tpu.pipeline_mode<synchronous>, transform_indices = @transform_10, window_bounds = array<i64: 1, 32>}, {pipeline_mode = #tpu.pipeline_mode<synchronous>, transform_indices = @transform_11, window_bounds = array<i64: 4, 128, 8>}, {pipeline_mode = #tpu.pipeline_mode<synchronous>, transform_indices = @transform_12, window_bounds = array<i64: 1, 8>}, {pipeline_mode = #tpu.pipeline_mode<synchronous>, transform_indices = @transform_13, window_bounds = array<i64: 1, 8>}, {pipeline_mode = #tpu.pipeline_mode<synchronous>, transform_indices = @transform_14, window_bounds = array<i64: 1, 8>}, {transform_indices = @transform_15, window_bounds = array<i64: 1, 8, 2, 8, 16>}]} {
    %cst = arith.constant 0.000000e+00 : f32
    %0 = vector.broadcast %cst : f32 to vector<10x10x8xf32>
    %c0 = arith.constant 0 : index
    %c0_0 = arith.constant 0 : index
    %c0_1 = arith.constant 0 : index
    %1 = vector.load %arg17[%c0, %c0_0, %c0_1] : memref<10x10x8xf32, #tpu.memory_space<vmem>>, vector<10x10x8xf32>
    tpu.vector_store %arg17[%c0, %c0_0, %c0_1], %0 {strides = array<i32>} : memref<10x10x8xf32, #tpu.memory_space<vmem>>, vector<10x10x8xf32>,
    %c0_2 = arith.constant 0 : index
    %c0_3 = arith.constant 0 : index
    %c0_4 = arith.constant 0 : index
    %c0_5 = arith.constant 0 : index
    %2 = vector.load %arg1[%c0_2, %c0_3, %c0_4, %c0_5] : memref<1x8x8x8xf32, #tpu.memory_space<vmem>>, vector<1x8x8x8xf32>
    %3 = vector.shape_cast %2 : vector<1x8x8x8xf32> to vector<8x8x8xf32>
    %c1 = arith.constant 1 : index
    %c1_6 = arith.constant 1 : index
    %c0_7 = arith.constant 0 : index
    %4 = vector.load %arg17[%c1, %c1_6, %c0_7] : memref<10x10x8xf32, #tpu.memory_space<vmem>>, vector<8x8x8xf32>
    tpu.vector_store %arg17[%c1, %c1_6, %c0_7], %3 {strides = array<i32>} : memref<10x10x8xf32, #tpu.memory_space<vmem>>, vector<8x8x8xf32>,
    %c0_8 = arith.constant 0 : index
    %c0_9 = arith.constant 0 : index
    %c0_10 = arith.constant 0 : index
    %5 = vector.load %arg17[%c0_8, %c0_9, %c0_10] : memref<10x10x8xf32, #tpu.memory_space<vmem>>, vector<10x10x8xf32>
    %6 = vector.extract_strided_slice %5 {offsets = [0, 0, 0], sizes = [8, 8, 8], strides = [1, 1, 1]} : vector<10x10x8xf32> to vector<8x8x8xf32>
    %7 = vector.shape_cast %6 : vector<8x8x8xf32> to vector<64x8xf32>
    %c0_11 = arith.constant 0 : index
    %c0_12 = arith.constant 0 : index
    %8 = vector.load %arg19[%c0_11, %c0_12] : memref<64x288xf32, #tpu.memory_space<vmem>>, vector<64x8xf32>
    tpu.vector_store %arg19[%c0_11, %c0_12], %7 {strides = array<i32>} : memref<64x288xf32, #tpu.memory_space<vmem>>, vector<64x8xf32>,
    %9 = vector.extract_strided_slice %5 {offsets = [0, 1, 0], sizes = [8, 8, 8], strides = [1, 1, 1]} : vector<10x10x8xf32> to vector<8x8x8xf32>
    %10 = vector.shape_cast %9 : vector<8x8x8xf32> to vector<64x8xf32>
    %c0_13 = arith.constant 0 : index
    %c8 = arith.constant 8 : index
    %11 = vector.load %arg19[%c0_13, %c8] : memref<64x288xf32, #tpu.memory_space<vmem>>, vector<64x8xf32>
    tpu.vector_store %arg19[%c0_13, %c8], %10 {strides = array<i32>} : memref<64x288xf32, #tpu.memory_space<vmem>>, vector<64x8xf32>,
    %12 = vector.extract_strided_slice %5 {offsets = [0, 2, 0], sizes = [8, 8, 8], strides = [1, 1, 1]} : vector<10x10x8xf32> to vector<8x8x8xf32>
    %13 = vector.shape_cast %12 : vector<8x8x8xf32> to vector<64x8xf32>
    %c0_14 = arith.constant 0 : index
    %c16 = arith.constant 16 : index
    %14 = vector.load %arg19[%c0_14, %c16] : memref<64x288xf32, #tpu.memory_space<vmem>>, vector<64x8xf32>
    tpu.vector_store %arg19[%c0_14, %c16], %13 {strides = array<i32>} : memref<64x288xf32, #tpu.memory_space<vmem>>, vector<64x8xf32>,
    %15 = vector.extract_strided_slice %5 {offsets = [1, 0, 0], sizes = [8, 8, 8], strides = [1, 1, 1]} : vector<10x10x8xf32> to vector<8x8x8xf32>
    %16 = vector.shape_cast %15 : vector<8x8x8xf32> to vector<64x8xf32>
    %c0_15 = arith.constant 0 : index
    %c24 = arith.constant 24 : index
    %17 = vector.load %arg19[%c0_15, %c24] : memref<64x288xf32, #tpu.memory_space<vmem>>, vector<64x8xf32>
    tpu.vector_store %arg19[%c0_15, %c24], %16 {strides = array<i32>} : memref<64x288xf32, #tpu.memory_space<vmem>>, vector<64x8xf32>,
    %18 = vector.extract_strided_slice %5 {offsets = [1, 1, 0], sizes = [8, 8, 8], strides = [1, 1, 1]} : vector<10x10x8xf32> to vector<8x8x8xf32>
    %19 = vector.shape_cast %18 : vector<8x8x8xf32> to vector<64x8xf32>
    %c0_16 = arith.constant 0 : index
    %c32 = arith.constant 32 : index
    %20 = vector.load %arg19[%c0_16, %c32] : memref<64x288xf32, #tpu.memory_space<vmem>>, vector<64x8xf32>
    tpu.vector_store %arg19[%c0_16, %c32], %19 {strides = array<i32>} : memref<64x288xf32, #tpu.memory_space<vmem>>, vector<64x8xf32>,
    %21 = vector.extract_strided_slice %5 {offsets = [1, 2, 0], sizes = [8, 8, 8], strides = [1, 1, 1]} : vector<10x10x8xf32> to vector<8x8x8xf32>
    %22 = vector.shape_cast %21 : vector<8x8x8xf32> to vector<64x8xf32>
    %c0_17 = arith.constant 0 : index
    %c40 = arith.constant 40 : index
    %23 = vector.load %arg19[%c0_17, %c40] : memref<64x288xf32, #tpu.memory_space<vmem>>, vector<64x8xf32>
    tpu.vector_store %arg19[%c0_17, %c40], %22 {strides = array<i32>} : memref<64x288xf32, #tpu.memory_space<vmem>>, vector<64x8xf32>,
    %24 = vector.extract_strided_slice %5 {offsets = [2, 0, 0], sizes = [8, 8, 8], strides = [1, 1, 1]} : vector<10x10x8xf32> to vector<8x8x8xf32>
    %25 = vector.shape_cast %24 : vector<8x8x8xf32> to vector<64x8xf32>
    %c0_18 = arith.constant 0 : index
    %c48 = arith.constant 48 : index
    %26 = vector.load %arg19[%c0_18, %c48] : memref<64x288xf32, #tpu.memory_space<vmem>>, vector<64x8xf32>
    tpu.vector_store %arg19[%c0_18, %c48], %25 {strides = array<i32>} : memref<64x288xf32, #tpu.memory_space<vmem>>, vector<64x8xf32>,
    %27 = vector.extract_strided_slice %5 {offsets = [2, 1, 0], sizes = [8, 8, 8], strides = [1, 1, 1]} : vector<10x10x8xf32> to vector<8x8x8xf32>
    %28 = vector.shape_cast %27 : vector<8x8x8xf32> to vector<64x8xf32>
    %c0_19 = arith.constant 0 : index
    %c56 = arith.constant 56 : index
    %29 = vector.load %arg19[%c0_19, %c56] : memref<64x288xf32, #tpu.memory_space<vmem>>, vector<64x8xf32>
    tpu.vector_store %arg19[%c0_19, %c56], %28 {strides = array<i32>} : memref<64x288xf32, #tpu.memory_space<vmem>>, vector<64x8xf32>,
    %30 = vector.extract_strided_slice %5 {offsets = [2, 2, 0], sizes = [8, 8, 8], strides = [1, 1, 1]} : vector<10x10x8xf32> to vector<8x8x8xf32>
    %31 = vector.shape_cast %30 : vector<8x8x8xf32> to vector<64x8xf32>
    %c0_20 = arith.constant 0 : index
    %c64 = arith.constant 64 : index
    %32 = vector.load %arg19[%c0_20, %c64] : memref<64x288xf32, #tpu.memory_space<vmem>>, vector<64x8xf32>
    tpu.vector_store %arg19[%c0_20, %c64], %31 {strides = array<i32>} : memref<64x288xf32, #tpu.memory_space<vmem>>, vector<64x8xf32>,
    %c0_21 = arith.constant 0 : index
    %c0_22 = arith.constant 0 : index
    %33 = vector.load %arg2[%c0_21, %c0_22] : memref<72x32xbf16, #tpu.memory_space<vmem>>, vector<72x32xbf16>
    %c0_23 = arith.constant 0 : index
    %c0_24 = arith.constant 0 : index
    %34 = vector.load %arg19[%c0_23, %c0_24] : memref<64x288xf32, #tpu.memory_space<vmem>>, vector<64x72xf32>
    %35 = arith.truncf %34 : vector<64x72xf32> to vector<64x72xbf16>
    %cst_25 = arith.constant dense<0.000000e+00> : vector<64x32xf32>
    %36 = tpu.matmul %35, %33, %cst_25 {dimension_numbers = #tpu.dot_dimension_numbers<[1], [0], [0], [1], [0, 0, 1, 1], [], []>} : vector<64x72xbf16>, vector<72x32xbf16>, vector<64x32xf32> -> vector<64x32xf32>
    %c0_26 = arith.constant 0 : index
    %c0_27 = arith.constant 0 : index
    %37 = vector.load %arg3[%c0_26, %c0_27] : memref<1x32xf32, #tpu.memory_space<vmem>>, vector<1x32xf32>
    %38 = vector.broadcast %37 : vector<1x32xf32> to vector<64x32xf32>
    %39 = arith.addf %36, %38 : vector<64x32xf32>
    %cst_28 = arith.constant 0.000000e+00 : f32
    %40 = vector.broadcast %cst_28 : f32 to vector<10x10x32xf32>
    %c0_29 = arith.constant 0 : index
    %c0_30 = arith.constant 0 : index
    %c0_31 = arith.constant 0 : index
    %41 = vector.load %arg18[%c0_29, %c0_30, %c0_31] : memref<10x10x32xf32, #tpu.memory_space<vmem>>, vector<10x10x32xf32>
    tpu.vector_store %arg18[%c0_29, %c0_30, %c0_31], %40 {strides = array<i32>} : memref<10x10x32xf32, #tpu.memory_space<vmem>>, vector<10x10x32xf32>,
    %42 = vector.shape_cast %39 : vector<64x32xf32> to vector<8x8x32xf32>
    %c1_32 = arith.constant 1 : index
    %c1_33 = arith.constant 1 : index
    %c0_34 = arith.constant 0 : index
    %43 = vector.load %arg18[%c1_32, %c1_33, %c0_34] : memref<10x10x32xf32, #tpu.memory_space<vmem>>, vector<8x8x32xf32>
    tpu.vector_store %arg18[%c1_32, %c1_33, %c0_34], %42 {strides = array<i32>} : memref<10x10x32xf32, #tpu.memory_space<vmem>>, vector<8x8x32xf32>,
    %c0_35 = arith.constant 0 : index
    %c0_36 = arith.constant 0 : index
    %c0_37 = arith.constant 0 : index
    %44 = vector.load %arg18[%c0_35, %c0_36, %c0_37] : memref<10x10x32xf32, #tpu.memory_space<vmem>>, vector<10x10x32xf32>
    %cst_38 = arith.constant 0.000000e+00 : f32
    %45 = vector.broadcast %cst_38 : f32 to vector<10x10x32xf32>
    %46 = arith.maximumf %44, %45 : vector<10x10x32xf32>
    %47 = vector.extract_strided_slice %46 {offsets = [0, 0, 0], sizes = [8, 8, 32], strides = [1, 1, 1]} : vector<10x10x32xf32> to vector<8x8x32xf32>
    %48 = vector.shape_cast %47 : vector<8x8x32xf32> to vector<64x32xf32>
    %c0_39 = arith.constant 0 : index
    %c0_40 = arith.constant 0 : index
    %49 = vector.load %arg19[%c0_39, %c0_40] : memref<64x288xf32, #tpu.memory_space<vmem>>, vector<64x32xf32>
    tpu.vector_store %arg19[%c0_39, %c0_40], %48 {strides = array<i32>} : memref<64x288xf32, #tpu.memory_space<vmem>>, vector<64x32xf32>,
    %50 = vector.extract_strided_slice %46 {offsets = [0, 1, 0], sizes = [8, 8, 32], strides = [1, 1, 1]} : vector<10x10x32xf32> to vector<8x8x32xf32>
    %51 = vector.shape_cast %50 : vector<8x8x32xf32> to vector<64x32xf32>
    %c0_41 = arith.constant 0 : index
    %c32_42 = arith.constant 32 : index
    %52 = vector.load %arg19[%c0_41, %c32_42] : memref<64x288xf32, #tpu.memory_space<vmem>>, vector<64x32xf32>
    tpu.vector_store %arg19[%c0_41, %c32_42], %51 {strides = array<i32>} : memref<64x288xf32, #tpu.memory_space<vmem>>, vector<64x32xf32>,
    %53 = vector.extract_strided_slice %46 {offsets = [0, 2, 0], sizes = [8, 8, 32], strides = [1, 1, 1]} : vector<10x10x32xf32> to vector<8x8x32xf32>
    %54 = vector.shape_cast %53 : vector<8x8x32xf32> to vector<64x32xf32>
    %c0_43 = arith.constant 0 : index
    %c64_44 = arith.constant 64 : index
    %55 = vector.load %arg19[%c0_43, %c64_44] : memref<64x288xf32, #tpu.memory_space<vmem>>, vector<64x32xf32>
    tpu.vector_store %arg19[%c0_43, %c64_44], %54 {strides = array<i32>} : memref<64x288xf32, #tpu.memory_space<vmem>>, vector<64x32xf32>,
    %56 = vector.extract_strided_slice %46 {offsets = [1, 0, 0], sizes = [8, 8, 32], strides = [1, 1, 1]} : vector<10x10x32xf32> to vector<8x8x32xf32>
    %57 = vector.shape_cast %56 : vector<8x8x32xf32> to vector<64x32xf32>
    %c0_45 = arith.constant 0 : index
    %c96 = arith.constant 96 : index
    %58 = vector.load %arg19[%c0_45, %c96] : memref<64x288xf32, #tpu.memory_space<vmem>>, vector<64x32xf32>
    tpu.vector_store %arg19[%c0_45, %c96], %57 {strides = array<i32>} : memref<64x288xf32, #tpu.memory_space<vmem>>, vector<64x32xf32>,
    %59 = vector.extract_strided_slice %46 {offsets = [1, 1, 0], sizes = [8, 8, 32], strides = [1, 1, 1]} : vector<10x10x32xf32> to vector<8x8x32xf32>
    %60 = vector.shape_cast %59 : vector<8x8x32xf32> to vector<64x32xf32>
    %c0_46 = arith.constant 0 : index
    %c128 = arith.constant 128 : index
    %61 = vector.load %arg19[%c0_46, %c128] : memref<64x288xf32, #tpu.memory_space<vmem>>, vector<64x32xf32>
    tpu.vector_store %arg19[%c0_46, %c128], %60 {strides = array<i32>} : memref<64x288xf32, #tpu.memory_space<vmem>>, vector<64x32xf32>,
    %62 = vector.extract_strided_slice %46 {offsets = [1, 2, 0], sizes = [8, 8, 32], strides = [1, 1, 1]} : vector<10x10x32xf32> to vector<8x8x32xf32>
    %63 = vector.shape_cast %62 : vector<8x8x32xf32> to vector<64x32xf32>
    %c0_47 = arith.constant 0 : index
    %c160 = arith.constant 160 : index
    %64 = vector.load %arg19[%c0_47, %c160] : memref<64x288xf32, #tpu.memory_space<vmem>>, vector<64x32xf32>
    tpu.vector_store %arg19[%c0_47, %c160], %63 {strides = array<i32>} : memref<64x288xf32, #tpu.memory_space<vmem>>, vector<64x32xf32>,
    %65 = vector.extract_strided_slice %46 {offsets = [2, 0, 0], sizes = [8, 8, 32], strides = [1, 1, 1]} : vector<10x10x32xf32> to vector<8x8x32xf32>
    %66 = vector.shape_cast %65 : vector<8x8x32xf32> to vector<64x32xf32>
    %c0_48 = arith.constant 0 : index
    %c192 = arith.constant 192 : index
    %67 = vector.load %arg19[%c0_48, %c192] : memref<64x288xf32, #tpu.memory_space<vmem>>, vector<64x32xf32>
    tpu.vector_store %arg19[%c0_48, %c192], %66 {strides = array<i32>} : memref<64x288xf32, #tpu.memory_space<vmem>>, vector<64x32xf32>,
    %68 = vector.extract_strided_slice %46 {offsets = [2, 1, 0], sizes = [8, 8, 32], strides = [1, 1, 1]} : vector<10x10x32xf32> to vector<8x8x32xf32>
    %69 = vector.shape_cast %68 : vector<8x8x32xf32> to vector<64x32xf32>
    %c0_49 = arith.constant 0 : index
    %c224 = arith.constant 224 : index
    %70 = vector.load %arg19[%c0_49, %c224] : memref<64x288xf32, #tpu.memory_space<vmem>>, vector<64x32xf32>
    tpu.vector_store %arg19[%c0_49, %c224], %69 {strides = array<i32>} : memref<64x288xf32, #tpu.memory_space<vmem>>, vector<64x32xf32>,
    %71 = vector.extract_strided_slice %46 {offsets = [2, 2, 0], sizes = [8, 8, 32], strides = [1, 1, 1]} : vector<10x10x32xf32> to vector<8x8x32xf32>
    %72 = vector.shape_cast %71 : vector<8x8x32xf32> to vector<64x32xf32>
    %c0_50 = arith.constant 0 : index
    %c256 = arith.constant 256 : index
    %73 = vector.load %arg19[%c0_50, %c256] : memref<64x288xf32, #tpu.memory_space<vmem>>, vector<64x32xf32>
    tpu.vector_store %arg19[%c0_50, %c256], %72 {strides = array<i32>} : memref<64x288xf32, #tpu.memory_space<vmem>>, vector<64x32xf32>,
    %c0_51 = arith.constant 0 : index
    %c0_52 = arith.constant 0 : index
    %74 = vector.load %arg4[%c0_51, %c0_52] : memref<288x16xbf16, #tpu.memory_space<vmem>>, vector<288x16xbf16>
    %c0_53 = arith.constant 0 : index
    %c0_54 = arith.constant 0 : index
    %75 = vector.load %arg19[%c0_53, %c0_54] : memref<64x288xf32, #tpu.memory_space<vmem>>, vector<64x288xf32>
    %76 = arith.truncf %75 : vector<64x288xf32> to vector<64x288xbf16>
    %cst_55 = arith.constant dense<0.000000e+00> : vector<64x16xf32>
    %77 = tpu.matmul %76, %74, %cst_55 {dimension_numbers = #tpu.dot_dimension_numbers<[1], [0], [0], [1], [0, 0, 1, 1], [], []>} : vector<64x288xbf16>, vector<288x16xbf16>, vector<64x16xf32> -> vector<64x16xf32>
    %c0_56 = arith.constant 0 : index
    %c0_57 = arith.constant 0 : index
    %78 = vector.load %arg5[%c0_56, %c0_57] : memref<1x16xf32, #tpu.memory_space<vmem>>, vector<1x16xf32>
    %79 = vector.broadcast %78 : vector<1x16xf32> to vector<64x16xf32>
    %80 = arith.addf %77, %79 : vector<64x16xf32>
    %cst_58 = arith.constant 0.000000e+00 : f32
    %81 = vector.broadcast %cst_58 : f32 to vector<64x16xf32>
    %82 = arith.maximumf %80, %81 : vector<64x16xf32>
    %83 = arith.truncf %82 : vector<64x16xf32> to vector<64x16xbf16>
    %c0_59 = arith.constant 0 : index
    %c0_60 = arith.constant 0 : index
    %84 = vector.load %arg6[%c0_59, %c0_60] : memref<16x32xbf16, #tpu.memory_space<vmem>>, vector<16x32xbf16>
    %cst_61 = arith.constant dense<0.000000e+00> : vector<64x32xf32>
    %85 = tpu.matmul %83, %84, %cst_61 {dimension_numbers = #tpu.dot_dimension_numbers<[1], [0], [0], [1], [0, 0, 1, 1], [], []>} : vector<64x16xbf16>, vector<16x32xbf16>, vector<64x32xf32> -> vector<64x32xf32>
    %c0_62 = arith.constant 0 : index
    %c0_63 = arith.constant 0 : index
    %86 = vector.load %arg7[%c0_62, %c0_63] : memref<1x32xf32, #tpu.memory_space<vmem>>, vector<1x32xf32>
    %87 = vector.broadcast %86 : vector<1x32xf32> to vector<64x32xf32>
    %88 = arith.addf %85, %87 : vector<64x32xf32>
    %89 = vector.shape_cast %88 : vector<64x32xf32> to vector<8x8x32xf32>
    %90 = vector.extract_strided_slice %44 {offsets = [1, 1, 0], sizes = [8, 8, 32], strides = [1, 1, 1]} : vector<10x10x32xf32> to vector<8x8x32xf32>
    %91 = arith.addf %89, %90 : vector<8x8x32xf32>
    %c1_64 = arith.constant 1 : index
    %c1_65 = arith.constant 1 : index
    %c0_66 = arith.constant 0 : index
    %92 = vector.load %arg18[%c1_64, %c1_65, %c0_66] : memref<10x10x32xf32, #tpu.memory_space<vmem>>, vector<8x8x32xf32>
    tpu.vector_store %arg18[%c1_64, %c1_65, %c0_66], %91 {strides = array<i32>} : memref<10x10x32xf32, #tpu.memory_space<vmem>>, vector<8x8x32xf32>,
    %c0_67 = arith.constant 0 : index
    %c0_68 = arith.constant 0 : index
    %c0_69 = arith.constant 0 : index
    %93 = vector.load %arg18[%c0_67, %c0_68, %c0_69] : memref<10x10x32xf32, #tpu.memory_space<vmem>>, vector<10x10x32xf32>
    %cst_70 = arith.constant 0.000000e+00 : f32
    %94 = vector.broadcast %cst_70 : f32 to vector<10x10x32xf32>
    %95 = arith.maximumf %93, %94 : vector<10x10x32xf32>
    %96 = vector.extract_strided_slice %95 {offsets = [0, 0, 0], sizes = [8, 8, 32], strides = [1, 1, 1]} : vector<10x10x32xf32> to vector<8x8x32xf32>
    %97 = vector.shape_cast %96 : vector<8x8x32xf32> to vector<64x32xf32>
    %c0_71 = arith.constant 0 : index
    %c0_72 = arith.constant 0 : index
    %98 = vector.load %arg19[%c0_71, %c0_72] : memref<64x288xf32, #tpu.memory_space<vmem>>, vector<64x32xf32>
    tpu.vector_store %arg19[%c0_71, %c0_72], %97 {strides = array<i32>} : memref<64x288xf32, #tpu.memory_space<vmem>>, vector<64x32xf32>,
    %99 = vector.extract_strided_slice %95 {offsets = [0, 1, 0], sizes = [8, 8, 32], strides = [1, 1, 1]} : vector<10x10x32xf32> to vector<8x8x32xf32>
    %100 = vector.shape_cast %99 : vector<8x8x32xf32> to vector<64x32xf32>
    %c0_73 = arith.constant 0 : index
    %c32_74 = arith.constant 32 : index
    %101 = vector.load %arg19[%c0_73, %c32_74] : memref<64x288xf32, #tpu.memory_space<vmem>>, vector<64x32xf32>
    tpu.vector_store %arg19[%c0_73, %c32_74], %100 {strides = array<i32>} : memref<64x288xf32, #tpu.memory_space<vmem>>, vector<64x32xf32>,
    %102 = vector.extract_strided_slice %95 {offsets = [0, 2, 0], sizes = [8, 8, 32], strides = [1, 1, 1]} : vector<10x10x32xf32> to vector<8x8x32xf32>
    %103 = vector.shape_cast %102 : vector<8x8x32xf32> to vector<64x32xf32>
    %c0_75 = arith.constant 0 : index
    %c64_76 = arith.constant 64 : index
    %104 = vector.load %arg19[%c0_75, %c64_76] : memref<64x288xf32, #tpu.memory_space<vmem>>, vector<64x32xf32>
    tpu.vector_store %arg19[%c0_75, %c64_76], %103 {strides = array<i32>} : memref<64x288xf32, #tpu.memory_space<vmem>>, vector<64x32xf32>,
    %105 = vector.extract_strided_slice %95 {offsets = [1, 0, 0], sizes = [8, 8, 32], strides = [1, 1, 1]} : vector<10x10x32xf32> to vector<8x8x32xf32>
    %106 = vector.shape_cast %105 : vector<8x8x32xf32> to vector<64x32xf32>
    %c0_77 = arith.constant 0 : index
    %c96_78 = arith.constant 96 : index
    %107 = vector.load %arg19[%c0_77, %c96_78] : memref<64x288xf32, #tpu.memory_space<vmem>>, vector<64x32xf32>
    tpu.vector_store %arg19[%c0_77, %c96_78], %106 {strides = array<i32>} : memref<64x288xf32, #tpu.memory_space<vmem>>, vector<64x32xf32>,
    %108 = vector.extract_strided_slice %95 {offsets = [1, 1, 0], sizes = [8, 8, 32], strides = [1, 1, 1]} : vector<10x10x32xf32> to vector<8x8x32xf32>
    %109 = vector.shape_cast %108 : vector<8x8x32xf32> to vector<64x32xf32>
    %c0_79 = arith.constant 0 : index
    %c128_80 = arith.constant 128 : index
    %110 = vector.load %arg19[%c0_79, %c128_80] : memref<64x288xf32, #tpu.memory_space<vmem>>, vector<64x32xf32>
    tpu.vector_store %arg19[%c0_79, %c128_80], %109 {strides = array<i32>} : memref<64x288xf32, #tpu.memory_space<vmem>>, vector<64x32xf32>,
    %111 = vector.extract_strided_slice %95 {offsets = [1, 2, 0], sizes = [8, 8, 32], strides = [1, 1, 1]} : vector<10x10x32xf32> to vector<8x8x32xf32>
    %112 = vector.shape_cast %111 : vector<8x8x32xf32> to vector<64x32xf32>
    %c0_81 = arith.constant 0 : index
    %c160_82 = arith.constant 160 : index
    %113 = vector.load %arg19[%c0_81, %c160_82] : memref<64x288xf32, #tpu.memory_space<vmem>>, vector<64x32xf32>
    tpu.vector_store %arg19[%c0_81, %c160_82], %112 {strides = array<i32>} : memref<64x288xf32, #tpu.memory_space<vmem>>, vector<64x32xf32>,
    %114 = vector.extract_strided_slice %95 {offsets = [2, 0, 0], sizes = [8, 8, 32], strides = [1, 1, 1]} : vector<10x10x32xf32> to vector<8x8x32xf32>
    %115 = vector.shape_cast %114 : vector<8x8x32xf32> to vector<64x32xf32>
    %c0_83 = arith.constant 0 : index
    %c192_84 = arith.constant 192 : index
    %116 = vector.load %arg19[%c0_83, %c192_84] : memref<64x288xf32, #tpu.memory_space<vmem>>, vector<64x32xf32>
    tpu.vector_store %arg19[%c0_83, %c192_84], %115 {strides = array<i32>} : memref<64x288xf32, #tpu.memory_space<vmem>>, vector<64x32xf32>,
    %117 = vector.extract_strided_slice %95 {offsets = [2, 1, 0], sizes = [8, 8, 32], strides = [1, 1, 1]} : vector<10x10x32xf32> to vector<8x8x32xf32>
    %118 = vector.shape_cast %117 : vector<8x8x32xf32> to vector<64x32xf32>
    %c0_85 = arith.constant 0 : index
    %c224_86 = arith.constant 224 : index
    %119 = vector.load %arg19[%c0_85, %c224_86] : memref<64x288xf32, #tpu.memory_space<vmem>>, vector<64x32xf32>
    tpu.vector_store %arg19[%c0_85, %c224_86], %118 {strides = array<i32>} : memref<64x288xf32, #tpu.memory_space<vmem>>, vector<64x32xf32>,
    %120 = vector.extract_strided_slice %95 {offsets = [2, 2, 0], sizes = [8, 8, 32], strides = [1, 1, 1]} : vector<10x10x32xf32> to vector<8x8x32xf32>
    %121 = vector.shape_cast %120 : vector<8x8x32xf32> to vector<64x32xf32>
    %c0_87 = arith.constant 0 : index
    %c256_88 = arith.constant 256 : index
    %122 = vector.load %arg19[%c0_87, %c256_88] : memref<64x288xf32, #tpu.memory_space<vmem>>, vector<64x32xf32>
    tpu.vector_store %arg19[%c0_87, %c256_88], %121 {strides = array<i32>} : memref<64x288xf32, #tpu.memory_space<vmem>>, vector<64x32xf32>,
    %c0_89 = arith.constant 0 : index
    %c0_90 = arith.constant 0 : index
    %123 = vector.load %arg8[%c0_89, %c0_90] : memref<288x16xbf16, #tpu.memory_space<vmem>>, vector<288x16xbf16>
    %c0_91 = arith.constant 0 : index
    %c0_92 = arith.constant 0 : index
    %124 = vector.load %arg19[%c0_91, %c0_92] : memref<64x288xf32, #tpu.memory_space<vmem>>, vector<64x288xf32>
    %125 = arith.truncf %124 : vector<64x288xf32> to vector<64x288xbf16>
    %cst_93 = arith.constant dense<0.000000e+00> : vector<64x16xf32>
    %126 = tpu.matmul %125, %123, %cst_93 {dimension_numbers = #tpu.dot_dimension_numbers<[1], [0], [0], [1], [0, 0, 1, 1], [], []>} : vector<64x288xbf16>, vector<288x16xbf16>, vector<64x16xf32> -> vector<64x16xf32>
    %c0_94 = arith.constant 0 : index
    %c0_95 = arith.constant 0 : index
    %127 = vector.load %arg9[%c0_94, %c0_95] : memref<1x16xf32, #tpu.memory_space<vmem>>, vector<1x16xf32>
    %128 = vector.broadcast %127 : vector<1x16xf32> to vector<64x16xf32>
    %129 = arith.addf %126, %128 : vector<64x16xf32>
    %cst_96 = arith.constant 0.000000e+00 : f32
    %130 = vector.broadcast %cst_96 : f32 to vector<64x16xf32>
    %131 = arith.maximumf %129, %130 : vector<64x16xf32>
    %132 = arith.truncf %131 : vector<64x16xf32> to vector<64x16xbf16>
    %c0_97 = arith.constant 0 : index
    %c0_98 = arith.constant 0 : index
    %133 = vector.load %arg10[%c0_97, %c0_98] : memref<16x32xbf16, #tpu.memory_space<vmem>>, vector<16x32xbf16>
    %cst_99 = arith.constant dense<0.000000e+00> : vector<64x32xf32>
    %134 = tpu.matmul %132, %133, %cst_99 {dimension_numbers = #tpu.dot_dimension_numbers<[1], [0], [0], [1], [0, 0, 1, 1], [], []>} : vector<64x16xbf16>, vector<16x32xbf16>, vector<64x32xf32> -> vector<64x32xf32>
    %c0_100 = arith.constant 0 : index
    %c0_101 = arith.constant 0 : index
    %135 = vector.load %arg11[%c0_100, %c0_101] : memref<1x32xf32, #tpu.memory_space<vmem>>, vector<1x32xf32>
    %136 = vector.broadcast %135 : vector<1x32xf32> to vector<64x32xf32>
    %137 = arith.addf %134, %136 : vector<64x32xf32>
    %138 = vector.shape_cast %137 : vector<64x32xf32> to vector<8x8x32xf32>
    %139 = vector.extract_strided_slice %93 {offsets = [1, 1, 0], sizes = [8, 8, 32], strides = [1, 1, 1]} : vector<10x10x32xf32> to vector<8x8x32xf32>
    %140 = arith.addf %138, %139 : vector<8x8x32xf32>
    %c1_102 = arith.constant 1 : index
    %c1_103 = arith.constant 1 : index
    %c0_104 = arith.constant 0 : index
    %141 = vector.load %arg18[%c1_102, %c1_103, %c0_104] : memref<10x10x32xf32, #tpu.memory_space<vmem>>, vector<8x8x32xf32>
    tpu.vector_store %arg18[%c1_102, %c1_103, %c0_104], %140 {strides = array<i32>} : memref<10x10x32xf32, #tpu.memory_space<vmem>>, vector<8x8x32xf32>,
    %c0_105 = arith.constant 0 : index
    %c0_106 = arith.constant 0 : index
    %c0_107 = arith.constant 0 : index
    %142 = vector.load %arg18[%c0_105, %c0_106, %c0_107] : memref<10x10x32xf32, #tpu.memory_space<vmem>>, vector<10x10x32xf32>
    %cst_108 = arith.constant 0.000000e+00 : f32
    %143 = vector.broadcast %cst_108 : f32 to vector<10x10x32xf32>
    %144 = arith.maximumf %142, %143 : vector<10x10x32xf32>
    %145 = vector.extract_strided_slice %144 {offsets = [0, 0, 0], sizes = [8, 8, 32], strides = [1, 1, 1]} : vector<10x10x32xf32> to vector<8x8x32xf32>
    %146 = vector.shape_cast %145 : vector<8x8x32xf32> to vector<64x32xf32>
    %c0_109 = arith.constant 0 : index
    %c0_110 = arith.constant 0 : index
    %147 = vector.load %arg19[%c0_109, %c0_110] : memref<64x288xf32, #tpu.memory_space<vmem>>, vector<64x32xf32>
    tpu.vector_store %arg19[%c0_109, %c0_110], %146 {strides = array<i32>} : memref<64x288xf32, #tpu.memory_space<vmem>>, vector<64x32xf32>,
    %148 = vector.extract_strided_slice %144 {offsets = [0, 1, 0], sizes = [8, 8, 32], strides = [1, 1, 1]} : vector<10x10x32xf32> to vector<8x8x32xf32>
    %149 = vector.shape_cast %148 : vector<8x8x32xf32> to vector<64x32xf32>
    %c0_111 = arith.constant 0 : index
    %c32_112 = arith.constant 32 : index
    %150 = vector.load %arg19[%c0_111, %c32_112] : memref<64x288xf32, #tpu.memory_space<vmem>>, vector<64x32xf32>
    tpu.vector_store %arg19[%c0_111, %c32_112], %149 {strides = array<i32>} : memref<64x288xf32, #tpu.memory_space<vmem>>, vector<64x32xf32>,
    %151 = vector.extract_strided_slice %144 {offsets = [1, 0, 0], sizes = [8, 8, 32], strides = [1, 1, 1]} : vector<10x10x32xf32> to vector<8x8x32xf32>
    %152 = vector.shape_cast %151 : vector<8x8x32xf32> to vector<64x32xf32>
    %c0_113 = arith.constant 0 : index
    %c64_114 = arith.constant 64 : index
    %153 = vector.load %arg19[%c0_113, %c64_114] : memref<64x288xf32, #tpu.memory_space<vmem>>, vector<64x32xf32>
    tpu.vector_store %arg19[%c0_113, %c64_114], %152 {strides = array<i32>} : memref<64x288xf32, #tpu.memory_space<vmem>>, vector<64x32xf32>,
    %154 = vector.extract_strided_slice %144 {offsets = [1, 1, 0], sizes = [8, 8, 32], strides = [1, 1, 1]} : vector<10x10x32xf32> to vector<8x8x32xf32>
    %155 = vector.shape_cast %154 : vector<8x8x32xf32> to vector<64x32xf32>
    %c0_115 = arith.constant 0 : index
    %c96_116 = arith.constant 96 : index
    %156 = vector.load %arg19[%c0_115, %c96_116] : memref<64x288xf32, #tpu.memory_space<vmem>>, vector<64x32xf32>
    tpu.vector_store %arg19[%c0_115, %c96_116], %155 {strides = array<i32>} : memref<64x288xf32, #tpu.memory_space<vmem>>, vector<64x32xf32>,
    %c0_117 = arith.constant 0 : index
    %c0_118 = arith.constant 0 : index
    %c0_119 = arith.constant 0 : index
    %157 = vector.load %arg12[%c0_117, %c0_118, %c0_119] : memref<4x128x8xbf16, #tpu.memory_space<vmem>>, vector<1x128x8xbf16>
    %158 = vector.shape_cast %157 : vector<1x128x8xbf16> to vector<128x8xbf16>
    %c0_120 = arith.constant 0 : index
    %c0_121 = arith.constant 0 : index
    %159 = vector.load %arg19[%c0_120, %c0_121] : memref<64x288xf32, #tpu.memory_space<vmem>>, vector<64x128xf32>
    %160 = arith.truncf %159 : vector<64x128xf32> to vector<64x128xbf16>
    %cst_122 = arith.constant dense<0.000000e+00> : vector<64x8xf32>
    %161 = tpu.matmul %160, %158, %cst_122 {dimension_numbers = #tpu.dot_dimension_numbers<[1], [0], [0], [1], [0, 0, 1, 1], [], []>} : vector<64x128xbf16>, vector<128x8xbf16>, vector<64x8xf32> -> vector<64x8xf32>
    %c0_123 = arith.constant 0 : index
    %c0_124 = arith.constant 0 : index
    %162 = vector.load %arg13[%c0_123, %c0_124] : memref<1x8xf32, #tpu.memory_space<vmem>>, vector<1x8xf32>
    %163 = vector.broadcast %162 : vector<1x8xf32> to vector<64x8xf32>
    %164 = arith.addf %161, %163 : vector<64x8xf32>
    %c0_125 = arith.constant 0 : index
    %c0_126 = arith.constant 0 : index
    %165 = vector.load %arg14[%c0_125, %c0_126] : memref<1x8xf32, #tpu.memory_space<vmem>>, vector<1x8xf32>
    %c0_127 = arith.constant 0 : index
    %c0_128 = arith.constant 0 : index
    %166 = vector.load %arg15[%c0_127, %c0_128] : memref<1x8xf32, #tpu.memory_space<vmem>>, vector<1x8xf32>
    %cst_129 = arith.constant dense<0.000000e+00> : vector<64xf32>
    %167 = vector.multi_reduction <add>, %164, %cst_129 [1] : vector<64x8xf32> to vector<64xf32>
    %168 = vector.shape_cast %167 : vector<64xf32> to vector<64x1xf32>
    %cst_130 = arith.constant 8.000000e+00 : f32
    %169 = vector.broadcast %cst_130 : f32 to vector<64x1xf32>
    %170 = arith.divf %168, %169 : vector<64x1xf32>
    %171 = vector.broadcast %170 : vector<64x1xf32> to vector<64x8xf32>
    %172 = arith.subf %164, %171 : vector<64x8xf32>
    %173 = arith.mulf %172, %172 : vector<64x8xf32>
    %cst_131 = arith.constant dense<0.000000e+00> : vector<64xf32>
    %174 = vector.multi_reduction <add>, %173, %cst_131 [1] : vector<64x8xf32> to vector<64xf32>
    %175 = vector.shape_cast %174 : vector<64xf32> to vector<64x1xf32>
    %cst_132 = arith.constant 8.000000e+00 : f32
    %176 = vector.broadcast %cst_132 : f32 to vector<64x1xf32>
    %177 = arith.divf %175, %176 : vector<64x1xf32>
    %cst_133 = arith.constant 9.99999997E-7 : f32
    %178 = vector.broadcast %cst_133 : f32 to vector<64x1xf32>
    %179 = arith.addf %177, %178 : vector<64x1xf32>
    %180 = math.rsqrt %179 : vector<64x1xf32>
    %181 = vector.broadcast %180 : vector<64x1xf32> to vector<64x8xf32>
    %182 = arith.mulf %172, %181 : vector<64x8xf32>
    %183 = vector.broadcast %165 : vector<1x8xf32> to vector<64x8xf32>
    %184 = arith.mulf %182, %183 : vector<64x8xf32>
    %185 = vector.broadcast %166 : vector<1x8xf32> to vector<64x8xf32>
    %186 = arith.addf %184, %185 : vector<64x8xf32>
    %187 = vector.shape_cast %186 : vector<64x8xf32> to vector<8x8x8xf32>
    %c0_134 = arith.constant 0 : index
    %c0_135 = arith.constant 0 : index
    %c0_136 = arith.constant 0 : index
    %c0_137 = arith.constant 0 : index
    %c0_138 = arith.constant 0 : index
    %188 = vector.load %arg16[%c0_134, %c0_135, %c0_136, %c0_137, %c0_138] : memref<1x8x2x8x16xf32, #tpu.memory_space<vmem>>, vector<1x8x1x8x8xf32>
    %189 = vector.shape_cast %188 : vector<1x8x1x8x8xf32> to vector<8x8x8xf32>
    %190 = vector.shape_cast %187 : vector<8x8x8xf32> to vector<1x8x1x8x8xf32>
    tpu.vector_store %arg16[%c0_134, %c0_135, %c0_136, %c0_137, %c0_138], %190 {strides = array<i32>} : memref<1x8x2x8x16xf32, #tpu.memory_space<vmem>>, vector<1x8x1x8x8xf32>,
    %191 = vector.extract_strided_slice %144 {offsets = [0, 1, 0], sizes = [8, 8, 32], strides = [1, 1, 1]} : vector<10x10x32xf32> to vector<8x8x32xf32>
    %192 = vector.shape_cast %191 : vector<8x8x32xf32> to vector<64x32xf32>
    %c0_139 = arith.constant 0 : index
    %c0_140 = arith.constant 0 : index
    %193 = vector.load %arg19[%c0_139, %c0_140] : memref<64x288xf32, #tpu.memory_space<vmem>>, vector<64x32xf32>
    tpu.vector_store %arg19[%c0_139, %c0_140], %192 {strides = array<i32>} : memref<64x288xf32, #tpu.memory_space<vmem>>, vector<64x32xf32>,
    %194 = vector.extract_strided_slice %144 {offsets = [0, 2, 0], sizes = [8, 8, 32], strides = [1, 1, 1]} : vector<10x10x32xf32> to vector<8x8x32xf32>
    %195 = vector.shape_cast %194 : vector<8x8x32xf32> to vector<64x32xf32>
    %c0_141 = arith.constant 0 : index
    %c32_142 = arith.constant 32 : index
    %196 = vector.load %arg19[%c0_141, %c32_142] : memref<64x288xf32, #tpu.memory_space<vmem>>, vector<64x32xf32>
    tpu.vector_store %arg19[%c0_141, %c32_142], %195 {strides = array<i32>} : memref<64x288xf32, #tpu.memory_space<vmem>>, vector<64x32xf32>,
    %197 = vector.extract_strided_slice %144 {offsets = [1, 1, 0], sizes = [8, 8, 32], strides = [1, 1, 1]} : vector<10x10x32xf32> to vector<8x8x32xf32>
    %198 = vector.shape_cast %197 : vector<8x8x32xf32> to vector<64x32xf32>
    %c0_143 = arith.constant 0 : index
    %c64_144 = arith.constant 64 : index
    %199 = vector.load %arg19[%c0_143, %c64_144] : memref<64x288xf32, #tpu.memory_space<vmem>>, vector<64x32xf32>
    tpu.vector_store %arg19[%c0_143, %c64_144], %198 {strides = array<i32>} : memref<64x288xf32, #tpu.memory_space<vmem>>, vector<64x32xf32>,
    %200 = vector.extract_strided_slice %144 {offsets = [1, 2, 0], sizes = [8, 8, 32], strides = [1, 1, 1]} : vector<10x10x32xf32> to vector<8x8x32xf32>
    %201 = vector.shape_cast %200 : vector<8x8x32xf32> to vector<64x32xf32>
    %c0_145 = arith.constant 0 : index
    %c96_146 = arith.constant 96 : index
    %202 = vector.load %arg19[%c0_145, %c96_146] : memref<64x288xf32, #tpu.memory_space<vmem>>, vector<64x32xf32>
    tpu.vector_store %arg19[%c0_145, %c96_146], %201 {strides = array<i32>} : memref<64x288xf32, #tpu.memory_space<vmem>>, vector<64x32xf32>,
    %c1_147 = arith.constant 1 : index
    %c0_148 = arith.constant 0 : index
    %c0_149 = arith.constant 0 : index
    %203 = vector.load %arg12[%c1_147, %c0_148, %c0_149] : memref<4x128x8xbf16, #tpu.memory_space<vmem>>, vector<1x128x8xbf16>
    %204 = vector.shape_cast %203 : vector<1x128x8xbf16> to vector<128x8xbf16>
    %c0_150 = arith.constant 0 : index
    %c0_151 = arith.constant 0 : index
    %205 = vector.load %arg19[%c0_150, %c0_151] : memref<64x288xf32, #tpu.memory_space<vmem>>, vector<64x128xf32>
    %206 = arith.truncf %205 : vector<64x128xf32> to vector<64x128xbf16>
    %cst_152 = arith.constant dense<0.000000e+00> : vector<64x8xf32>
    %207 = tpu.matmul %206, %204, %cst_152 {dimension_numbers = #tpu.dot_dimension_numbers<[1], [0], [0], [1], [0, 0, 1, 1], [], []>} : vector<64x128xbf16>, vector<128x8xbf16>, vector<64x8xf32> -> vector<64x8xf32>
    %c0_153 = arith.constant 0 : index
    %c0_154 = arith.constant 0 : index
    %208 = vector.load %arg13[%c0_153, %c0_154] : memref<1x8xf32, #tpu.memory_space<vmem>>, vector<1x8xf32>
    %209 = vector.broadcast %208 : vector<1x8xf32> to vector<64x8xf32>
    %210 = arith.addf %207, %209 : vector<64x8xf32>
    %c0_155 = arith.constant 0 : index
    %c0_156 = arith.constant 0 : index
    %211 = vector.load %arg14[%c0_155, %c0_156] : memref<1x8xf32, #tpu.memory_space<vmem>>, vector<1x8xf32>
    %c0_157 = arith.constant 0 : index
    %c0_158 = arith.constant 0 : index
    %212 = vector.load %arg15[%c0_157, %c0_158] : memref<1x8xf32, #tpu.memory_space<vmem>>, vector<1x8xf32>
    %cst_159 = arith.constant dense<0.000000e+00> : vector<64xf32>
    %213 = vector.multi_reduction <add>, %210, %cst_159 [1] : vector<64x8xf32> to vector<64xf32>
    %214 = vector.shape_cast %213 : vector<64xf32> to vector<64x1xf32>
    %cst_160 = arith.constant 8.000000e+00 : f32
    %215 = vector.broadcast %cst_160 : f32 to vector<64x1xf32>
    %216 = arith.divf %214, %215 : vector<64x1xf32>
    %217 = vector.broadcast %216 : vector<64x1xf32> to vector<64x8xf32>
    %218 = arith.subf %210, %217 : vector<64x8xf32>
    %219 = arith.mulf %218, %218 : vector<64x8xf32>
    %cst_161 = arith.constant dense<0.000000e+00> : vector<64xf32>
    %220 = vector.multi_reduction <add>, %219, %cst_161 [1] : vector<64x8xf32> to vector<64xf32>
    %221 = vector.shape_cast %220 : vector<64xf32> to vector<64x1xf32>
    %cst_162 = arith.constant 8.000000e+00 : f32
    %222 = vector.broadcast %cst_162 : f32 to vector<64x1xf32>
    %223 = arith.divf %221, %222 : vector<64x1xf32>
    %cst_163 = arith.constant 9.99999997E-7 : f32
    %224 = vector.broadcast %cst_163 : f32 to vector<64x1xf32>
    %225 = arith.addf %223, %224 : vector<64x1xf32>
    %226 = math.rsqrt %225 : vector<64x1xf32>
    %227 = vector.broadcast %226 : vector<64x1xf32> to vector<64x8xf32>
    %228 = arith.mulf %218, %227 : vector<64x8xf32>
    %229 = vector.broadcast %211 : vector<1x8xf32> to vector<64x8xf32>
    %230 = arith.mulf %228, %229 : vector<64x8xf32>
    %231 = vector.broadcast %212 : vector<1x8xf32> to vector<64x8xf32>
    %232 = arith.addf %230, %231 : vector<64x8xf32>
    %233 = vector.shape_cast %232 : vector<64x8xf32> to vector<8x8x8xf32>
    %c0_164 = arith.constant 0 : index
    %c0_165 = arith.constant 0 : index
    %c0_166 = arith.constant 0 : index
    %c0_167 = arith.constant 0 : index
    %c8_168 = arith.constant 8 : index
    %234 = vector.load %arg16[%c0_164, %c0_165, %c0_166, %c0_167, %c8_168] : memref<1x8x2x8x16xf32, #tpu.memory_space<vmem>>, vector<1x8x1x8x8xf32>
    %235 = vector.shape_cast %234 : vector<1x8x1x8x8xf32> to vector<8x8x8xf32>
    %236 = vector.shape_cast %233 : vector<8x8x8xf32> to vector<1x8x1x8x8xf32>
    tpu.vector_store %arg16[%c0_164, %c0_165, %c0_166, %c0_167, %c8_168], %236 {strides = array<i32>} : memref<1x8x2x8x16xf32, #tpu.memory_space<vmem>>, vector<1x8x1x8x8xf32>,
    %237 = vector.extract_strided_slice %144 {offsets = [1, 0, 0], sizes = [8, 8, 32], strides = [1, 1, 1]} : vector<10x10x32xf32> to vector<8x8x32xf32>
    %238 = vector.shape_cast %237 : vector<8x8x32xf32> to vector<64x32xf32>
    %c0_169 = arith.constant 0 : index
    %c0_170 = arith.constant 0 : index
    %239 = vector.load %arg19[%c0_169, %c0_170] : memref<64x288xf32, #tpu.memory_space<vmem>>, vector<64x32xf32>
    tpu.vector_store %arg19[%c0_169, %c0_170], %238 {strides = array<i32>} : memref<64x288xf32, #tpu.memory_space<vmem>>, vector<64x32xf32>,
    %240 = vector.extract_strided_slice %144 {offsets = [1, 1, 0], sizes = [8, 8, 32], strides = [1, 1, 1]} : vector<10x10x32xf32> to vector<8x8x32xf32>
    %241 = vector.shape_cast %240 : vector<8x8x32xf32> to vector<64x32xf32>
    %c0_171 = arith.constant 0 : index
    %c32_172 = arith.constant 32 : index
    %242 = vector.load %arg19[%c0_171, %c32_172] : memref<64x288xf32, #tpu.memory_space<vmem>>, vector<64x32xf32>
    tpu.vector_store %arg19[%c0_171, %c32_172], %241 {strides = array<i32>} : memref<64x288xf32, #tpu.memory_space<vmem>>, vector<64x32xf32>,
    %243 = vector.extract_strided_slice %144 {offsets = [2, 0, 0], sizes = [8, 8, 32], strides = [1, 1, 1]} : vector<10x10x32xf32> to vector<8x8x32xf32>
    %244 = vector.shape_cast %243 : vector<8x8x32xf32> to vector<64x32xf32>
    %c0_173 = arith.constant 0 : index
    %c64_174 = arith.constant 64 : index
    %245 = vector.load %arg19[%c0_173, %c64_174] : memref<64x288xf32, #tpu.memory_space<vmem>>, vector<64x32xf32>
    tpu.vector_store %arg19[%c0_173, %c64_174], %244 {strides = array<i32>} : memref<64x288xf32, #tpu.memory_space<vmem>>, vector<64x32xf32>,
    %246 = vector.extract_strided_slice %144 {offsets = [2, 1, 0], sizes = [8, 8, 32], strides = [1, 1, 1]} : vector<10x10x32xf32> to vector<8x8x32xf32>
    %247 = vector.shape_cast %246 : vector<8x8x32xf32> to vector<64x32xf32>
    %c0_175 = arith.constant 0 : index
    %c96_176 = arith.constant 96 : index
    %248 = vector.load %arg19[%c0_175, %c96_176] : memref<64x288xf32, #tpu.memory_space<vmem>>, vector<64x32xf32>
    tpu.vector_store %arg19[%c0_175, %c96_176], %247 {strides = array<i32>} : memref<64x288xf32, #tpu.memory_space<vmem>>, vector<64x32xf32>,
    %c2 = arith.constant 2 : index
    %c0_177 = arith.constant 0 : index
    %c0_178 = arith.constant 0 : index
    %249 = vector.load %arg12[%c2, %c0_177, %c0_178] : memref<4x128x8xbf16, #tpu.memory_space<vmem>>, vector<1x128x8xbf16>
    %250 = vector.shape_cast %249 : vector<1x128x8xbf16> to vector<128x8xbf16>
    %c0_179 = arith.constant 0 : index
    %c0_180 = arith.constant 0 : index
    %251 = vector.load %arg19[%c0_179, %c0_180] : memref<64x288xf32, #tpu.memory_space<vmem>>, vector<64x128xf32>
    %252 = arith.truncf %251 : vector<64x128xf32> to vector<64x128xbf16>
    %cst_181 = arith.constant dense<0.000000e+00> : vector<64x8xf32>
    %253 = tpu.matmul %252, %250, %cst_181 {dimension_numbers = #tpu.dot_dimension_numbers<[1], [0], [0], [1], [0, 0, 1, 1], [], []>} : vector<64x128xbf16>, vector<128x8xbf16>, vector<64x8xf32> -> vector<64x8xf32>
    %c0_182 = arith.constant 0 : index
    %c0_183 = arith.constant 0 : index
    %254 = vector.load %arg13[%c0_182, %c0_183] : memref<1x8xf32, #tpu.memory_space<vmem>>, vector<1x8xf32>
    %255 = vector.broadcast %254 : vector<1x8xf32> to vector<64x8xf32>
    %256 = arith.addf %253, %255 : vector<64x8xf32>
    %c0_184 = arith.constant 0 : index
    %c0_185 = arith.constant 0 : index
    %257 = vector.load %arg14[%c0_184, %c0_185] : memref<1x8xf32, #tpu.memory_space<vmem>>, vector<1x8xf32>
    %c0_186 = arith.constant 0 : index
    %c0_187 = arith.constant 0 : index
    %258 = vector.load %arg15[%c0_186, %c0_187] : memref<1x8xf32, #tpu.memory_space<vmem>>, vector<1x8xf32>
    %cst_188 = arith.constant dense<0.000000e+00> : vector<64xf32>
    %259 = vector.multi_reduction <add>, %256, %cst_188 [1] : vector<64x8xf32> to vector<64xf32>
    %260 = vector.shape_cast %259 : vector<64xf32> to vector<64x1xf32>
    %cst_189 = arith.constant 8.000000e+00 : f32
    %261 = vector.broadcast %cst_189 : f32 to vector<64x1xf32>
    %262 = arith.divf %260, %261 : vector<64x1xf32>
    %263 = vector.broadcast %262 : vector<64x1xf32> to vector<64x8xf32>
    %264 = arith.subf %256, %263 : vector<64x8xf32>
    %265 = arith.mulf %264, %264 : vector<64x8xf32>
    %cst_190 = arith.constant dense<0.000000e+00> : vector<64xf32>
    %266 = vector.multi_reduction <add>, %265, %cst_190 [1] : vector<64x8xf32> to vector<64xf32>
    %267 = vector.shape_cast %266 : vector<64xf32> to vector<64x1xf32>
    %cst_191 = arith.constant 8.000000e+00 : f32
    %268 = vector.broadcast %cst_191 : f32 to vector<64x1xf32>
    %269 = arith.divf %267, %268 : vector<64x1xf32>
    %cst_192 = arith.constant 9.99999997E-7 : f32
    %270 = vector.broadcast %cst_192 : f32 to vector<64x1xf32>
    %271 = arith.addf %269, %270 : vector<64x1xf32>
    %272 = math.rsqrt %271 : vector<64x1xf32>
    %273 = vector.broadcast %272 : vector<64x1xf32> to vector<64x8xf32>
    %274 = arith.mulf %264, %273 : vector<64x8xf32>
    %275 = vector.broadcast %257 : vector<1x8xf32> to vector<64x8xf32>
    %276 = arith.mulf %274, %275 : vector<64x8xf32>
    %277 = vector.broadcast %258 : vector<1x8xf32> to vector<64x8xf32>
    %278 = arith.addf %276, %277 : vector<64x8xf32>
    %279 = vector.shape_cast %278 : vector<64x8xf32> to vector<8x8x8xf32>
    %c0_193 = arith.constant 0 : index
    %c0_194 = arith.constant 0 : index
    %c1_195 = arith.constant 1 : index
    %c0_196 = arith.constant 0 : index
    %c0_197 = arith.constant 0 : index
    %280 = vector.load %arg16[%c0_193, %c0_194, %c1_195, %c0_196, %c0_197] : memref<1x8x2x8x16xf32, #tpu.memory_space<vmem>>, vector<1x8x1x8x8xf32>
    %281 = vector.shape_cast %280 : vector<1x8x1x8x8xf32> to vector<8x8x8xf32>
    %282 = vector.shape_cast %279 : vector<8x8x8xf32> to vector<1x8x1x8x8xf32>
    tpu.vector_store %arg16[%c0_193, %c0_194, %c1_195, %c0_196, %c0_197], %282 {strides = array<i32>} : memref<1x8x2x8x16xf32, #tpu.memory_space<vmem>>, vector<1x8x1x8x8xf32>,
    %283 = vector.extract_strided_slice %144 {offsets = [1, 1, 0], sizes = [8, 8, 32], strides = [1, 1, 1]} : vector<10x10x32xf32> to vector<8x8x32xf32>
    %284 = vector.shape_cast %283 : vector<8x8x32xf32> to vector<64x32xf32>
    %c0_198 = arith.constant 0 : index
    %c0_199 = arith.constant 0 : index
    %285 = vector.load %arg19[%c0_198, %c0_199] : memref<64x288xf32, #tpu.memory_space<vmem>>, vector<64x32xf32>
    tpu.vector_store %arg19[%c0_198, %c0_199], %284 {strides = array<i32>} : memref<64x288xf32, #tpu.memory_space<vmem>>, vector<64x32xf32>,
    %286 = vector.extract_strided_slice %144 {offsets = [1, 2, 0], sizes = [8, 8, 32], strides = [1, 1, 1]} : vector<10x10x32xf32> to vector<8x8x32xf32>
    %287 = vector.shape_cast %286 : vector<8x8x32xf32> to vector<64x32xf32>
    %c0_200 = arith.constant 0 : index
    %c32_201 = arith.constant 32 : index
    %288 = vector.load %arg19[%c0_200, %c32_201] : memref<64x288xf32, #tpu.memory_space<vmem>>, vector<64x32xf32>
    tpu.vector_store %arg19[%c0_200, %c32_201], %287 {strides = array<i32>} : memref<64x288xf32, #tpu.memory_space<vmem>>, vector<64x32xf32>,
    %289 = vector.extract_strided_slice %144 {offsets = [2, 1, 0], sizes = [8, 8, 32], strides = [1, 1, 1]} : vector<10x10x32xf32> to vector<8x8x32xf32>
    %290 = vector.shape_cast %289 : vector<8x8x32xf32> to vector<64x32xf32>
    %c0_202 = arith.constant 0 : index
    %c64_203 = arith.constant 64 : index
    %291 = vector.load %arg19[%c0_202, %c64_203] : memref<64x288xf32, #tpu.memory_space<vmem>>, vector<64x32xf32>
    tpu.vector_store %arg19[%c0_202, %c64_203], %290 {strides = array<i32>} : memref<64x288xf32, #tpu.memory_space<vmem>>, vector<64x32xf32>,
    %292 = vector.extract_strided_slice %144 {offsets = [2, 2, 0], sizes = [8, 8, 32], strides = [1, 1, 1]} : vector<10x10x32xf32> to vector<8x8x32xf32>
    %293 = vector.shape_cast %292 : vector<8x8x32xf32> to vector<64x32xf32>
    %c0_204 = arith.constant 0 : index
    %c96_205 = arith.constant 96 : index
    %294 = vector.load %arg19[%c0_204, %c96_205] : memref<64x288xf32, #tpu.memory_space<vmem>>, vector<64x32xf32>
    tpu.vector_store %arg19[%c0_204, %c96_205], %293 {strides = array<i32>} : memref<64x288xf32, #tpu.memory_space<vmem>>, vector<64x32xf32>,
    %c3 = arith.constant 3 : index
    %c0_206 = arith.constant 0 : index
    %c0_207 = arith.constant 0 : index
    %295 = vector.load %arg12[%c3, %c0_206, %c0_207] : memref<4x128x8xbf16, #tpu.memory_space<vmem>>, vector<1x128x8xbf16>
    %296 = vector.shape_cast %295 : vector<1x128x8xbf16> to vector<128x8xbf16>
    %c0_208 = arith.constant 0 : index
    %c0_209 = arith.constant 0 : index
    %297 = vector.load %arg19[%c0_208, %c0_209] : memref<64x288xf32, #tpu.memory_space<vmem>>, vector<64x128xf32>
    %298 = arith.truncf %297 : vector<64x128xf32> to vector<64x128xbf16>
    %cst_210 = arith.constant dense<0.000000e+00> : vector<64x8xf32>
    %299 = tpu.matmul %298, %296, %cst_210 {dimension_numbers = #tpu.dot_dimension_numbers<[1], [0], [0], [1], [0, 0, 1, 1], [], []>} : vector<64x128xbf16>, vector<128x8xbf16>, vector<64x8xf32> -> vector<64x8xf32>
    %c0_211 = arith.constant 0 : index
    %c0_212 = arith.constant 0 : index
    %300 = vector.load %arg13[%c0_211, %c0_212] : memref<1x8xf32, #tpu.memory_space<vmem>>, vector<1x8xf32>
    %301 = vector.broadcast %300 : vector<1x8xf32> to vector<64x8xf32>
    %302 = arith.addf %299, %301 : vector<64x8xf32>
    %c0_213 = arith.constant 0 : index
    %c0_214 = arith.constant 0 : index
    %303 = vector.load %arg14[%c0_213, %c0_214] : memref<1x8xf32, #tpu.memory_space<vmem>>, vector<1x8xf32>
    %c0_215 = arith.constant 0 : index
    %c0_216 = arith.constant 0 : index
    %304 = vector.load %arg15[%c0_215, %c0_216] : memref<1x8xf32, #tpu.memory_space<vmem>>, vector<1x8xf32>
    %cst_217 = arith.constant dense<0.000000e+00> : vector<64xf32>
    %305 = vector.multi_reduction <add>, %302, %cst_217 [1] : vector<64x8xf32> to vector<64xf32>
    %306 = vector.shape_cast %305 : vector<64xf32> to vector<64x1xf32>
    %cst_218 = arith.constant 8.000000e+00 : f32
    %307 = vector.broadcast %cst_218 : f32 to vector<64x1xf32>
    %308 = arith.divf %306, %307 : vector<64x1xf32>
    %309 = vector.broadcast %308 : vector<64x1xf32> to vector<64x8xf32>
    %310 = arith.subf %302, %309 : vector<64x8xf32>
    %311 = arith.mulf %310, %310 : vector<64x8xf32>
    %cst_219 = arith.constant dense<0.000000e+00> : vector<64xf32>
    %312 = vector.multi_reduction <add>, %311, %cst_219 [1] : vector<64x8xf32> to vector<64xf32>
    %313 = vector.shape_cast %312 : vector<64xf32> to vector<64x1xf32>
    %cst_220 = arith.constant 8.000000e+00 : f32
    %314 = vector.broadcast %cst_220 : f32 to vector<64x1xf32>
    %315 = arith.divf %313, %314 : vector<64x1xf32>
    %cst_221 = arith.constant 9.99999997E-7 : f32
    %316 = vector.broadcast %cst_221 : f32 to vector<64x1xf32>
    %317 = arith.addf %315, %316 : vector<64x1xf32>
    %318 = math.rsqrt %317 : vector<64x1xf32>
    %319 = vector.broadcast %318 : vector<64x1xf32> to vector<64x8xf32>
    %320 = arith.mulf %310, %319 : vector<64x8xf32>
    %321 = vector.broadcast %303 : vector<1x8xf32> to vector<64x8xf32>
    %322 = arith.mulf %320, %321 : vector<64x8xf32>
    %323 = vector.broadcast %304 : vector<1x8xf32> to vector<64x8xf32>
    %324 = arith.addf %322, %323 : vector<64x8xf32>
    %325 = vector.shape_cast %324 : vector<64x8xf32> to vector<8x8x8xf32>
    %c0_222 = arith.constant 0 : index
    %c0_223 = arith.constant 0 : index
    %c1_224 = arith.constant 1 : index
    %c0_225 = arith.constant 0 : index
    %c8_226 = arith.constant 8 : index
    %326 = vector.load %arg16[%c0_222, %c0_223, %c1_224, %c0_225, %c8_226] : memref<1x8x2x8x16xf32, #tpu.memory_space<vmem>>, vector<1x8x1x8x8xf32>
    %327 = vector.shape_cast %326 : vector<1x8x1x8x8xf32> to vector<8x8x8xf32>
    %328 = vector.shape_cast %325 : vector<8x8x8xf32> to vector<1x8x1x8x8xf32>
    tpu.vector_store %arg16[%c0_222, %c0_223, %c1_224, %c0_225, %c8_226], %328 {strides = array<i32>} : memref<1x8x2x8x16xf32, #tpu.memory_space<vmem>>, vector<1x8x1x8x8xf32>,
    return
  }
  func.func @transform_0(%arg0: i32) -> (i32, i32, i32, i32) {
    %c0_i32 = arith.constant 0 : i32
    %c0_i32_0 = arith.constant 0 : i32
    %c0_i32_1 = arith.constant 0 : i32
    %c0_i32_2 = arith.constant 0 : i32
    return %arg0, %c0_i32, %c0_i32_0, %c0_i32_1 : i32, i32, i32, i32
  }
  func.func @transform_1(%arg0: i32) -> (i32, i32) {
    %c0_i32 = arith.constant 0 : i32
    %c0_i32_0 = arith.constant 0 : i32
    %c0_i32_1 = arith.constant 0 : i32
    return %c0_i32, %c0_i32_0 : i32, i32
  }
  func.func @transform_2(%arg0: i32) -> (i32, i32) {
    %c0_i32 = arith.constant 0 : i32
    %c0_i32_0 = arith.constant 0 : i32
    %c0_i32_1 = arith.constant 0 : i32
    return %c0_i32, %c0_i32_0 : i32, i32
  }
  func.func @transform_3(%arg0: i32) -> (i32, i32) {
    %c0_i32 = arith.constant 0 : i32
    %c0_i32_0 = arith.constant 0 : i32
    %c0_i32_1 = arith.constant 0 : i32
    return %c0_i32, %c0_i32_0 : i32, i32
  }
  func.func @transform_4(%arg0: i32) -> (i32, i32) {
    %c0_i32 = arith.constant 0 : i32
    %c0_i32_0 = arith.constant 0 : i32
    %c0_i32_1 = arith.constant 0 : i32
    return %c0_i32, %c0_i32_0 : i32, i32
  }
  func.func @transform_5(%arg0: i32) -> (i32, i32) {
    %c0_i32 = arith.constant 0 : i32
    %c0_i32_0 = arith.constant 0 : i32
    %c0_i32_1 = arith.constant 0 : i32
    return %c0_i32, %c0_i32_0 : i32, i32
  }
  func.func @transform_6(%arg0: i32) -> (i32, i32) {
    %c0_i32 = arith.constant 0 : i32
    %c0_i32_0 = arith.constant 0 : i32
    %c0_i32_1 = arith.constant 0 : i32
    return %c0_i32, %c0_i32_0 : i32, i32
  }
  func.func @transform_7(%arg0: i32) -> (i32, i32) {
    %c0_i32 = arith.constant 0 : i32
    %c0_i32_0 = arith.constant 0 : i32
    %c0_i32_1 = arith.constant 0 : i32
    return %c0_i32, %c0_i32_0 : i32, i32
  }
  func.func @transform_8(%arg0: i32) -> (i32, i32) {
    %c0_i32 = arith.constant 0 : i32
    %c0_i32_0 = arith.constant 0 : i32
    %c0_i32_1 = arith.constant 0 : i32
    return %c0_i32, %c0_i32_0 : i32, i32
  }
  func.func @transform_9(%arg0: i32) -> (i32, i32) {
    %c0_i32 = arith.constant 0 : i32
    %c0_i32_0 = arith.constant 0 : i32
    %c0_i32_1 = arith.constant 0 : i32
    return %c0_i32, %c0_i32_0 : i32, i32
  }
  func.func @transform_10(%arg0: i32) -> (i32, i32) {
    %c0_i32 = arith.constant 0 : i32
    %c0_i32_0 = arith.constant 0 : i32
    %c0_i32_1 = arith.constant 0 : i32
    return %c0_i32, %c0_i32_0 : i32, i32
  }
  func.func @transform_11(%arg0: i32) -> (i32, i32, i32) {
    %c0_i32 = arith.constant 0 : i32
    %c0_i32_0 = arith.constant 0 : i32
    %c0_i32_1 = arith.constant 0 : i32
    %c0_i32_2 = arith.constant 0 : i32
    return %c0_i32, %c0_i32_0, %c0_i32_1 : i32, i32, i32
  }
  func.func @transform_12(%arg0: i32) -> (i32, i32) {
    %c0_i32 = arith.constant 0 : i32
    %c0_i32_0 = arith.constant 0 : i32
    %c0_i32_1 = arith.constant 0 : i32
    return %c0_i32, %c0_i32_0 : i32, i32
  }
  func.func @transform_13(%arg0: i32) -> (i32, i32) {
    %c0_i32 = arith.constant 0 : i32
    %c0_i32_0 = arith.constant 0 : i32
    %c0_i32_1 = arith.constant 0 : i32
    return %c0_i32, %c0_i32_0 : i32, i32
  }
  func.func @transform_14(%arg0: i32) -> (i32, i32) {
    %c0_i32 = arith.constant 0 : i32
    %c0_i32_0 = arith.constant 0 : i32
    %c0_i32_1 = arith.constant 0 : i32
    return %c0_i32, %c0_i32_0 : i32, i32
  }
  func.func @transform_15(%arg0: i32) -> (i32, i32, i32, i32, i32) {
    %c0_i32 = arith.constant 0 : i32
    %c0_i32_0 = arith.constant 0 : i32
    %c0_i32_1 = arith.constant 0 : i32
    %c0_i32_2 = arith.constant 0 : i32
    %c0_i32_3 = arith.constant 0 : i32
    return %arg0, %c0_i32, %c0_i32_0, %c0_i32_1, %c0_i32_2 : i32, i32, i32, i32, i32
  }
}

</mosaic_0001>

<llo_original>
// kernel: tpu_custom_call.1
$region0: #{tpu_custom_call.1}
  #allocation0 [shape = 'u32[]', space=smem, size = 0x4, offset = 0x4, fixed_abs, tag = 'smem constant byte address 0x4 - core index']
  #allocation1 [shape = 'u32[144,128]{1,0:T(1,128)}', space=vmem, size = 0x12000, scoped, tag = 'internal scratch']
  #allocation2 [shape = 'f32[10,10,8]{2,1,0:T(8,128)}', space=vmem, size = 0x14000, scoped, tag = 'scratch operand']
  #allocation3 [shape = 'f32[10,10,32]{2,1,0:T(8,128)}', space=vmem, size = 0x14000, scoped, tag = 'scratch operand']
  #allocation4 [shape = 'f32[64,288]{1,0:T(8,128)}', space=vmem, size = 0x18000, scoped, tag = 'scratch operand']
  %s0 = inlined_call_operand.vmem [shape: f32[2,8,8,8], index: 0, kind: input, shape index: {}]
  %s1 = inlined_call_operand.vmem [shape: bf16[72,32], index: 1, kind: input, shape index: {}]
  %s2 = inlined_call_operand.vmem [shape: f32[1,32], index: 2, kind: input, shape index: {}]
  %s3 = inlined_call_operand.vmem [shape: bf16[288,16], index: 3, kind: input, shape index: {}]
  %s4 = inlined_call_operand.vmem [shape: f32[1,16], index: 4, kind: input, shape index: {}]
  %s5 = inlined_call_operand.vmem [shape: bf16[16,32], index: 5, kind: input, shape index: {}]
  %s6 = inlined_call_operand.vmem [shape: f32[1,32], index: 6, kind: input, shape index: {}]
  %s7 = inlined_call_operand.vmem [shape: bf16[288,16], index: 7, kind: input, shape index: {}]
  %s8 = inlined_call_operand.vmem [shape: f32[1,16], index: 8, kind: input, shape index: {}]
  %s9 = inlined_call_operand.vmem [shape: bf16[16,32], index: 9, kind: input, shape index: {}]
  %s10 = inlined_call_operand.vmem [shape: f32[1,32], index: 10, kind: input, shape index: {}]
  %s11 = inlined_call_operand.vmem [shape: bf16[4,128,8], index: 11, kind: input, shape index: {}]
  %s12 = inlined_call_operand.vmem [shape: f32[1,8], index: 12, kind: input, shape index: {}]
  %s13 = inlined_call_operand.vmem [shape: f32[1,8], index: 13, kind: input, shape index: {}]
  %s14 = inlined_call_operand.vmem [shape: f32[1,8], index: 14, kind: input, shape index: {}]
  %s15 = inlined_call_operand.hbm [shape: f32[2,8,2,8,16], index: 15, kind: output, shape index: {}]
  %s16 = sld [smem:[#allocation0]]
  $region93: #{tpu_custom_call.1} parent=0
    _
  %s18 = ssub.s32 1, %s16
  %s19 = scalar_select 0, %s18, %s16
  $region1: #{tpu_custom_call.1} parent=0
    #allocation5 [shape = 'u8[131072]{0}', space=vmem, size = 0x20000, scoped, tag = 'output window, operand 0']
    #allocation6 [shape = 's32[2]{0}', space=sflag, size = 0x8, scoped, tag = 'scoped memory for tpu_custom_call.1']
    %20 = vsyncpa [#allocation6], 0
    %s21 = scalar_lea.sflag [#allocation6], 1
    %22 = vsyncpa %s21, 0
    loop: start=0, step=1, limit=4
    $region2: #{tpu_custom_call.1} parent=1 // loop_pre_header
      _
    $region3: #{tpu_custom_call.1} parent=1 // loop_header
      %s24 = sphi 0, %s28
      %p25 = scmp.ge.s32.totalorder %s24, 4
      %s34 = sphi 0, %s36
      %s37 = sphi 0, %s34
      %s38 = sphi 0, %s37
      %s54 = sphi 0, %s38
      %s58 = sphi 0, %s58
      %s60 = sphi 0, %s58
      %s61 = sphi 0, %s60
      %s75 = sphi 0, %s61
      %s79 = sphi 0, %s79
      %s81 = sphi 0, %s79
      %s82 = sphi 0, %s81
      %s96 = sphi 0, %s82
      %s100 = sphi 0, %s100
      %s102 = sphi 0, %s100
      %s103 = sphi 0, %s102
      %s117 = sphi 0, %s103
      %s121 = sphi 0, %s121
      %s123 = sphi 0, %s121
      %s124 = sphi 0, %s123
      %s138 = sphi 0, %s124
      %s142 = sphi 0, %s142
      %s144 = sphi 0, %s142
      %s145 = sphi 0, %s144
      %s159 = sphi 0, %s145
      %s163 = sphi 0, %s163
      %s165 = sphi 0, %s163
      %s166 = sphi 0, %s165
      %s180 = sphi 0, %s166
      %s184 = sphi 0, %s184
      %s186 = sphi 0, %s184
      %s187 = sphi 0, %s186
      %s201 = sphi 0, %s187
      %s205 = sphi 0, %s205
      %s207 = sphi 0, %s205
      %s208 = sphi 0, %s207
      %s222 = sphi 0, %s208
      %s226 = sphi 0, %s226
      %s228 = sphi 0, %s226
      %s229 = sphi 0, %s228
      %s243 = sphi 0, %s229
      %s247 = sphi 0, %s247
      %s249 = sphi 0, %s247
      %s250 = sphi 0, %s249
      %s264 = sphi 0, %s250
      %s268 = sphi 0, %s268
      %s270 = sphi 0, %s268
      %s271 = sphi 0, %s270
      %s285 = sphi 0, %s271
      %s289 = sphi 0, %s289
      %s291 = sphi 0, %s289
      %s292 = sphi 0, %s291
      %s306 = sphi 0, %s292
      %s310 = sphi 0, %s310
      %s312 = sphi 0, %s310
      %s313 = sphi 0, %s312
      %s327 = sphi 0, %s313
      %s331 = sphi 0, %s331
      %s333 = sphi 0, %s331
      %s334 = sphi 0, %s333
      %s348 = sphi 0, %s334
      %s354 = sphi 0, %s356
      %s357 = sphi 0, %s354
      %s358 = sphi 0, %s357
      %s374 = sphi 0, %s358
    $region4: #{tpu_custom_call.1} parent=1 // loop_header_branch
      %27 = sbr.rel (%p25) target = $region8
    $region5: #{tpu_custom_call.1} parent=1 // loop_body
      %s29 = ssub.s32 %s24, 1
      %s30 = ssub.s32 %s24, 2
      %s31 = sadd.s32 %s24, 1
      %s32 = ssub.s32 %s24, %s31
      %p33 = scmp.eq.s32.totalorder %s32, 0
      %s35 = sadd.s32 %s34, 1
      %s36 = scalar_select %p33, %s34, %s35
      %p39 = pneg %p33
      %p40 = scmp.eq.s32.totalorder %s24, 1
      %p41 = por %p39, %p40
      %p42 = scmp.ne.s32.totalorder %s34, %s37
      %p43 = scmp.eq.s32.totalorder %s24, 0
      %p44 = por %p42, %p43
      %p45 = scmp.ne.s32.totalorder %s34, %s37
      %p46 = scmp.eq.s32.totalorder %s29, 1
      %p47 = por %p45, %p46
      %p48 = scmp.ne.s32.totalorder %s37, %s38
      %p49 = scmp.eq.s32.totalorder %s29, 0
      %p50 = por %p48, %p49
      %p51 = scmp.ne.s32.totalorder %s37, %s38
      %p52 = scmp.eq.s32.totalorder %s30, 1
      %p53 = por %p51, %p52
      %p55 = scmp.ne.s32.totalorder %s38, %s54
      %p56 = scmp.eq.s32.totalorder %s30, 0
      %p57 = por %p55, %p56
      %s59 = sadd.s32 %s58, 1
      %p62 = scmp.eq.s32.totalorder %s24, 1
      %p63 = scmp.ne.s32.totalorder %s58, %s60
      %p64 = scmp.eq.s32.totalorder %s24, 0
      %p65 = por %p63, %p64
      %p66 = scmp.ne.s32.totalorder %s58, %s60
      %p67 = scmp.eq.s32.totalorder %s29, 1
      %p68 = por %p66, %p67
      %p69 = scmp.ne.s32.totalorder %s60, %s61
      %p70 = scmp.eq.s32.totalorder %s29, 0
      %p71 = por %p69, %p70
      %p72 = scmp.ne.s32.totalorder %s60, %s61
      %p73 = scmp.eq.s32.totalorder %s30, 1
      %p74 = por %p72, %p73
      %p76 = scmp.ne.s32.totalorder %s61, %s75
      %p77 = scmp.eq.s32.totalorder %s30, 0
      %p78 = por %p76, %p77
      %s80 = sadd.s32 %s79, 1
      %p83 = scmp.eq.s32.totalorder %s24, 1
      %p84 = scmp.ne.s32.totalorder %s79, %s81
      %p85 = scmp.eq.s32.totalorder %s24, 0
      %p86 = por %p84, %p85
      %p87 = scmp.ne.s32.totalorder %s79, %s81
      %p88 = scmp.eq.s32.totalorder %s29, 1
      %p89 = por %p87, %p88
      %p90 = scmp.ne.s32.totalorder %s81, %s82
      %p91 = scmp.eq.s32.totalorder %s29, 0
      %p92 = por %p90, %p91
      %p93 = scmp.ne.s32.totalorder %s81, %s82
      %p94 = scmp.eq.s32.totalorder %s30, 1
      %p95 = por %p93, %p94
      %p97 = scmp.ne.s32.totalorder %s82, %s96
      %p98 = scmp.eq.s32.totalorder %s30, 0
      %p99 = por %p97, %p98
      %s101 = sadd.s32 %s100, 1
      %p104 = scmp.eq.s32.totalorder %s24, 1
      %p105 = scmp.ne.s32.totalorder %s100, %s102
      %p106 = scmp.eq.s32.totalorder %s24, 0
      %p107 = por %p105, %p106
      %p108 = scmp.ne.s32.totalorder %s100, %s102
      %p109 = scmp.eq.s32.totalorder %s29, 1
      %p110 = por %p108, %p109
      %p111 = scmp.ne.s32.totalorder %s102, %s103
      %p112 = scmp.eq.s32.totalorder %s29, 0
      %p113 = por %p111, %p112
      %p114 = scmp.ne.s32.totalorder %s102, %s103
      %p115 = scmp.eq.s32.totalorder %s30, 1
      %p116 = por %p114, %p115
      %p118 = scmp.ne.s32.totalorder %s103, %s117
      %p119 = scmp.eq.s32.totalorder %s30, 0
      %p120 = por %p118, %p119
      %s122 = sadd.s32 %s121, 1
      %p125 = scmp.eq.s32.totalorder %s24, 1
      %p126 = scmp.ne.s32.totalorder %s121, %s123
      %p127 = scmp.eq.s32.totalorder %s24, 0
      %p128 = por %p126, %p127
      %p129 = scmp.ne.s32.totalorder %s121, %s123
      %p130 = scmp.eq.s32.totalorder %s29, 1
      %p131 = por %p129, %p130
      %p132 = scmp.ne.s32.totalorder %s123, %s124
      %p133 = scmp.eq.s32.totalorder %s29, 0
      %p134 = por %p132, %p133
      %p135 = scmp.ne.s32.totalorder %s123, %s124
      %p136 = scmp.eq.s32.totalorder %s30, 1
      %p137 = por %p135, %p136
      %p139 = scmp.ne.s32.totalorder %s124, %s138
      %p140 = scmp.eq.s32.totalorder %s30, 0
      %p141 = por %p139, %p140
      %s143 = sadd.s32 %s142, 1
      %p146 = scmp.eq.s32.totalorder %s24, 1
      %p147 = scmp.ne.s32.totalorder %s142, %s144
      %p148 = scmp.eq.s32.totalorder %s24, 0
      %p149 = por %p147, %p148
      %p150 = scmp.ne.s32.totalorder %s142, %s144
      %p151 = scmp.eq.s32.totalorder %s29, 1
      %p152 = por %p150, %p151
      %p153 = scmp.ne.s32.totalorder %s144, %s145
      %p154 = scmp.eq.s32.totalorder %s29, 0
      %p155 = por %p153, %p154
      %p156 = scmp.ne.s32.totalorder %s144, %s145
      %p157 = scmp.eq.s32.totalorder %s30, 1
      %p158 = por %p156, %p157
      %p160 = scmp.ne.s32.totalorder %s145, %s159
      %p161 = scmp.eq.s32.totalorder %s30, 0
      %p162 = por %p160, %p161
      %s164 = sadd.s32 %s163, 1
      %p167 = scmp.eq.s32.totalorder %s24, 1
      %p168 = scmp.ne.s32.totalorder %s163, %s165
      %p169 = scmp.eq.s32.totalorder %s24, 0
      %p170 = por %p168, %p169
      %p171 = scmp.ne.s32.totalorder %s163, %s165
      %p172 = scmp.eq.s32.totalorder %s29, 1
      %p173 = por %p171, %p172
      %p174 = scmp.ne.s32.totalorder %s165, %s166
      %p175 = scmp.eq.s32.totalorder %s29, 0
      %p176 = por %p174, %p175
      %p177 = scmp.ne.s32.totalorder %s165, %s166
      %p178 = scmp.eq.s32.totalorder %s30, 1
      %p179 = por %p177, %p178
      %p181 = scmp.ne.s32.totalorder %s166, %s180
      %p182 = scmp.eq.s32.totalorder %s30, 0
      %p183 = por %p181, %p182
      %s185 = sadd.s32 %s184, 1
      %p188 = scmp.eq.s32.totalorder %s24, 1
      %p189 = scmp.ne.s32.totalorder %s184, %s186
      %p190 = scmp.eq.s32.totalorder %s24, 0
      %p191 = por %p189, %p190
      %p192 = scmp.ne.s32.totalorder %s184, %s186
      %p193 = scmp.eq.s32.totalorder %s29, 1
      %p194 = por %p192, %p193
      %p195 = scmp.ne.s32.totalorder %s186, %s187
      %p196 = scmp.eq.s32.totalorder %s29, 0
      %p197 = por %p195, %p196
      %p198 = scmp.ne.s32.totalorder %s186, %s187
      %p199 = scmp.eq.s32.totalorder %s30, 1
      %p200 = por %p198, %p199
      %p202 = scmp.ne.s32.totalorder %s187, %s201
      %p203 = scmp.eq.s32.totalorder %s30, 0
      %p204 = por %p202, %p203
      %s206 = sadd.s32 %s205, 1
      %p209 = scmp.eq.s32.totalorder %s24, 1
      %p210 = scmp.ne.s32.totalorder %s205, %s207
      %p211 = scmp.eq.s32.totalorder %s24, 0
      %p212 = por %p210, %p211
      %p213 = scmp.ne.s32.totalorder %s205, %s207
      %p214 = scmp.eq.s32.totalorder %s29, 1
      %p215 = por %p213, %p214
      %p216 = scmp.ne.s32.totalorder %s207, %s208
      %p217 = scmp.eq.s32.totalorder %s29, 0
      %p218 = por %p216, %p217
      %p219 = scmp.ne.s32.totalorder %s207, %s208
      %p220 = scmp.eq.s32.totalorder %s30, 1
      %p221 = por %p219, %p220
      %p223 = scmp.ne.s32.totalorder %s208, %s222
      %p224 = scmp.eq.s32.totalorder %s30, 0
      %p225 = por %p223, %p224
      %s227 = sadd.s32 %s226, 1
      %p230 = scmp.eq.s32.totalorder %s24, 1
      %p231 = scmp.ne.s32.totalorder %s226, %s228
      %p232 = scmp.eq.s32.totalorder %s24, 0
      %p233 = por %p231, %p232
      %p234 = scmp.ne.s32.totalorder %s226, %s228
      %p235 = scmp.eq.s32.totalorder %s29, 1
      %p236 = por %p234, %p235
      %p237 = scmp.ne.s32.totalorder %s228, %s229
      %p238 = scmp.eq.s32.totalorder %s29, 0
      %p239 = por %p237, %p238
      %p240 = scmp.ne.s32.totalorder %s228, %s229
      %p241 = scmp.eq.s32.totalorder %s30, 1
      %p242 = por %p240, %p241
      %p244 = scmp.ne.s32.totalorder %s229, %s243
      %p245 = scmp.eq.s32.totalorder %s30, 0
      %p246 = por %p244, %p245
      %s248 = sadd.s32 %s247, 1
      %p251 = scmp.eq.s32.totalorder %s24, 1
      %p252 = scmp.ne.s32.totalorder %s247, %s249
      %p253 = scmp.eq.s32.totalorder %s24, 0
      %p254 = por %p252, %p253
      %p255 = scmp.ne.s32.totalorder %s247, %s249
      %p256 = scmp.eq.s32.totalorder %s29, 1
      %p257 = por %p255, %p256
      %p258 = scmp.ne.s32.totalorder %s249, %s250
      %p259 = scmp.eq.s32.totalorder %s29, 0
      %p260 = por %p258, %p259
      %p261 = scmp.ne.s32.totalorder %s249, %s250
      %p262 = scmp.eq.s32.totalorder %s30, 1
      %p263 = por %p261, %p262
      %p265 = scmp.ne.s32.totalorder %s250, %s264
      %p266 = scmp.eq.s32.totalorder %s30, 0
      %p267 = por %p265, %p266
      %s269 = sadd.s32 %s268, 1
      %p272 = scmp.eq.s32.totalorder %s24, 1
      %p273 = scmp.ne.s32.totalorder %s268, %s270
      %p274 = scmp.eq.s32.totalorder %s24, 0
      %p275 = por %p273, %p274
      %p276 = scmp.ne.s32.totalorder %s268, %s270
      %p277 = scmp.eq.s32.totalorder %s29, 1
      %p278 = por %p276, %p277
      %p279 = scmp.ne.s32.totalorder %s270, %s271
      %p280 = scmp.eq.s32.totalorder %s29, 0
      %p281 = por %p279, %p280
      %p282 = scmp.ne.s32.totalorder %s270, %s271
      %p283 = scmp.eq.s32.totalorder %s30, 1
      %p284 = por %p282, %p283
      %p286 = scmp.ne.s32.totalorder %s271, %s285
      %p287 = scmp.eq.s32.totalorder %s30, 0
      %p288 = por %p286, %p287
      %s290 = sadd.s32 %s289, 1
      %p293 = scmp.eq.s32.totalorder %s24, 1
      %p294 = scmp.ne.s32.totalorder %s289, %s291
      %p295 = scmp.eq.s32.totalorder %s24, 0
      %p296 = por %p294, %p295
      %p297 = scmp.ne.s32.totalorder %s289, %s291
      %p298 = scmp.eq.s32.totalorder %s29, 1
      %p299 = por %p297, %p298
      %p300 = scmp.ne.s32.totalorder %s291, %s292
      %p301 = scmp.eq.s32.totalorder %s29, 0
      %p302 = por %p300, %p301
      %p303 = scmp.ne.s32.totalorder %s291, %s292
      %p304 = scmp.eq.s32.totalorder %s30, 1
      %p305 = por %p303, %p304
      %p307 = scmp.ne.s32.totalorder %s292, %s306
      %p308 = scmp.eq.s32.totalorder %s30, 0
      %p309 = por %p307, %p308
      %s311 = sadd.s32 %s310, 1
      %p314 = scmp.eq.s32.totalorder %s24, 1
      %p315 = scmp.ne.s32.totalorder %s310, %s312
      %p316 = scmp.eq.s32.totalorder %s24, 0
      %p317 = por %p315, %p316
      %p318 = scmp.ne.s32.totalorder %s310, %s312
      %p319 = scmp.eq.s32.totalorder %s29, 1
      %p320 = por %p318, %p319
      %p321 = scmp.ne.s32.totalorder %s312, %s313
      %p322 = scmp.eq.s32.totalorder %s29, 0
      %p323 = por %p321, %p322
      %p324 = scmp.ne.s32.totalorder %s312, %s313
      %p325 = scmp.eq.s32.totalorder %s30, 1
      %p326 = por %p324, %p325
      %p328 = scmp.ne.s32.totalorder %s313, %s327
      %p329 = scmp.eq.s32.totalorder %s30, 0
      %p330 = por %p328, %p329
      %s332 = sadd.s32 %s331, 1
      %p335 = scmp.eq.s32.totalorder %s24, 1
      %p336 = scmp.ne.s32.totalorder %s331, %s333
      %p337 = scmp.eq.s32.totalorder %s24, 0
      %p338 = por %p336, %p337
      %p339 = scmp.ne.s32.totalorder %s331, %s333
      %p340 = scmp.eq.s32.totalorder %s29, 1
      %p341 = por %p339, %p340
      %p342 = scmp.ne.s32.totalorder %s333, %s334
      %p343 = scmp.eq.s32.totalorder %s29, 0
      %p344 = por %p342, %p343
      %p345 = scmp.ne.s32.totalorder %s333, %s334
      %p346 = scmp.eq.s32.totalorder %s30, 1
      %p347 = por %p345, %p346
      %p349 = scmp.ne.s32.totalorder %s334, %s348
      %p350 = scmp.eq.s32.totalorder %s30, 0
      %p351 = por %p349, %p350
      %s352 = ssub.s32 %s24, %s31
      %p353 = scmp.eq.s32.totalorder %s352, 0
      %s355 = sadd.s32 %s354, 1
      %s356 = scalar_select %p353, %s354, %s355
      %p359 = pneg %p353
      %p360 = scmp.eq.s32.totalorder %s24, 1
      %p361 = por %p359, %p360
      %p362 = scmp.ne.s32.totalorder %s354, %s357
      %p363 = scmp.eq.s32.totalorder %s24, 0
      %p364 = por %p362, %p363
      %p365 = scmp.ne.s32.totalorder %s354, %s357
      %p366 = scmp.eq.s32.totalorder %s29, 1
      %p367 = por %p365, %p366
      %p368 = scmp.ne.s32.totalorder %s357, %s358
      %p369 = scmp.eq.s32.totalorder %s29, 0
      %p370 = por %p368, %p369
      %p371 = scmp.ne.s32.totalorder %s357, %s358
      %p372 = scmp.eq.s32.totalorder %s30, 1
      %p373 = por %p371, %p372
      %p375 = scmp.ne.s32.totalorder %s358, %s374
      %p376 = scmp.eq.s32.totalorder %s30, 0
      %p377 = por %p375, %p376
      %p378 = scmp.le.s32.totalorder 1, %s24
      %p379 = scmp.lt.s32.totalorder %s24, 3
      %p380 = pnand %p378, %p379
      %p381 = pneg %p380
      // Predicated region
      $region9: #{tpu_custom_call.1} parent=5 // pred_check
        _
      $region10: #{tpu_custom_call.1} parent=5 // pred_check_branch
        %383 = sbr.rel (%p380) target = $region12
      $region11: #{tpu_custom_call.1} parent=5 // pred_region
        %s384 = ssub.s32 %s24, 1
        // Predicated region
        $region13: #{tpu_custom_call.1} parent=11 // pred_check
          %p385 = pneg %p71
        $region14: #{tpu_custom_call.1} parent=11 // pred_check_branch
          %387 = sbr.rel (%p385) target = $region16
        $region15: #{tpu_custom_call.1} parent=11 // pred_region
          _
        $region16: #{tpu_custom_call.1} parent=11 // pred_fallthru
          _
        // Predicated region
        $region17: #{tpu_custom_call.1} parent=11 // pred_check
          %p388 = pneg %p92
        $region18: #{tpu_custom_call.1} parent=11 // pred_check_branch
          %390 = sbr.rel (%p388) target = $region20
        $region19: #{tpu_custom_call.1} parent=11 // pred_region
          _
        $region20: #{tpu_custom_call.1} parent=11 // pred_fallthru
          _
        // Predicated region
        $region21: #{tpu_custom_call.1} parent=11 // pred_check
          %p391 = pneg %p113
        $region22: #{tpu_custom_call.1} parent=11 // pred_check_branch
          %393 = sbr.rel (%p391) target = $region24
        $region23: #{tpu_custom_call.1} parent=11 // pred_region
          _
        $region24: #{tpu_custom_call.1} parent=11 // pred_fallthru
          _
        // Predicated region
        $region25: #{tpu_custom_call.1} parent=11 // pred_check
          %p394 = pneg %p134
        $region26: #{tpu_custom_call.1} parent=11 // pred_check_branch
          %396 = sbr.rel (%p394) target = $region28
        $region27: #{tpu_custom_call.1} parent=11 // pred_region
          _
        $region28: #{tpu_custom_call.1} parent=11 // pred_fallthru
          _
        // Predicated region
        $region29: #{tpu_custom_call.1} parent=11 // pred_check
          %p397 = pneg %p155
        $region30: #{tpu_custom_call.1} parent=11 // pred_check_branch
          %399 = sbr.rel (%p397) target = $region32
        $region31: #{tpu_custom_call.1} parent=11 // pred_region
          _
        $region32: #{tpu_custom_call.1} parent=11 // pred_fallthru
          _
        // Predicated region
        $region33: #{tpu_custom_call.1} parent=11 // pred_check
          %p400 = pneg %p176
        $region34: #{tpu_custom_call.1} parent=11 // pred_check_branch
          %402 = sbr.rel (%p400) target = $region36
        $region35: #{tpu_custom_call.1} parent=11 // pred_region
          _
        $region36: #{tpu_custom_call.1} parent=11 // pred_fallthru
          _
        // Predicated region
        $region37: #{tpu_custom_call.1} parent=11 // pred_check
          %p403 = pneg %p197
        $region38: #{tpu_custom_call.1} parent=11 // pred_check_branch
          %405 = sbr.rel (%p403) target = $region40
        $region39: #{tpu_custom_call.1} parent=11 // pred_region
          _
        $region40: #{tpu_custom_call.1} parent=11 // pred_fallthru
          _
        // Predicated region
        $region41: #{tpu_custom_call.1} parent=11 // pred_check
          %p406 = pneg %p218
        $region42: #{tpu_custom_call.1} parent=11 // pred_check_branch
          %408 = sbr.rel (%p406) target = $region44
        $region43: #{tpu_custom_call.1} parent=11 // pred_region
          _
        $region44: #{tpu_custom_call.1} parent=11 // pred_fallthru
          _
        // Predicated region
        $region45: #{tpu_custom_call.1} parent=11 // pred_check
          %p409 = pneg %p239
        $region46: #{tpu_custom_call.1} parent=11 // pred_check_branch
          %411 = sbr.rel (%p409) target = $region48
        $region47: #{tpu_custom_call.1} parent=11 // pred_region
          _
        $region48: #{tpu_custom_call.1} parent=11 // pred_fallthru
          _
        // Predicated region
        $region49: #{tpu_custom_call.1} parent=11 // pred_check
          %p412 = pneg %p260
        $region50: #{tpu_custom_call.1} parent=11 // pred_check_branch
          %414 = sbr.rel (%p412) target = $region52
        $region51: #{tpu_custom_call.1} parent=11 // pred_region
          _
        $region52: #{tpu_custom_call.1} parent=11 // pred_fallthru
          _
        // Predicated region
        $region53: #{tpu_custom_call.1} parent=11 // pred_check
          %p415 = pneg %p281
        $region54: #{tpu_custom_call.1} parent=11 // pred_check_branch
          %417 = sbr.rel (%p415) target = $region56
        $region55: #{tpu_custom_call.1} parent=11 // pred_region
          _
        $region56: #{tpu_custom_call.1} parent=11 // pred_fallthru
          _
        // Predicated region
        $region57: #{tpu_custom_call.1} parent=11 // pred_check
          %p418 = pneg %p302
        $region58: #{tpu_custom_call.1} parent=11 // pred_check_branch
          %420 = sbr.rel (%p418) target = $region60
        $region59: #{tpu_custom_call.1} parent=11 // pred_region
          _
        $region60: #{tpu_custom_call.1} parent=11 // pred_fallthru
          _
        // Predicated region
        $region61: #{tpu_custom_call.1} parent=11 // pred_check
          %p421 = pneg %p323
        $region62: #{tpu_custom_call.1} parent=11 // pred_check_branch
          %423 = sbr.rel (%p421) target = $region64
        $region63: #{tpu_custom_call.1} parent=11 // pred_region
          _
        $region64: #{tpu_custom_call.1} parent=11 // pred_fallthru
          _
        // Predicated region
        $region65: #{tpu_custom_call.1} parent=11 // pred_check
          %p424 = pneg %p344
        $region66: #{tpu_custom_call.1} parent=11 // pred_check_branch
          %426 = sbr.rel (%p424) target = $region68
        $region67: #{tpu_custom_call.1} parent=11 // pred_region
          _
        $region68: #{tpu_custom_call.1} parent=11 // pred_fallthru
          _
      $region12: #{tpu_custom_call.1} parent=5 // pred_fallthru
        _
      %p427 = scmp.lt.s32.totalorder %s24, 2
      // Predicated region
      $region69: #{tpu_custom_call.1} parent=5 // pred_check
        %p428 = pneg %p427
      $region70: #{tpu_custom_call.1} parent=5 // pred_check_branch
        %430 = sbr.rel (%p428) target = $region72
      $region71: #{tpu_custom_call.1} parent=5 // pred_region
        // Predicated region
        $region73: #{tpu_custom_call.1} parent=71 // pred_check
          %p431 = pneg %p44
        $region74: #{tpu_custom_call.1} parent=71 // pred_check_branch
          %433 = sbr.rel (%p431) target = $region76
        $region75: #{tpu_custom_call.1} parent=71 // pred_region
          %p434 = scmp.lt.s32.totalorder %s24, 1
          %s435 = scalar_select %p434, %s24, 1
          %s436 = smul.addr %s435, 8
          %s437 = smul.addr %s436, 8
          %s438 = scalar_lea.vmem %s0, %s437
        $region76: #{tpu_custom_call.1} parent=71 // pred_fallthru
          _
      $region72: #{tpu_custom_call.1} parent=5 // pred_fallthru
        _
      %p439 = scmp.le.s32.totalorder 1, %s24
      %p440 = scmp.lt.s32.totalorder %s24, 3
      %p441 = pnand %p439, %p440
      %p442 = pneg %p441
      // Predicated region
      $region77: #{tpu_custom_call.1} parent=5 // pred_check
        _
      $region78: #{tpu_custom_call.1} parent=5 // pred_check_branch
        %444 = sbr.rel (%p441) target = $region80
      $region79: #{tpu_custom_call.1} parent=5 // pred_region
        %s445 = ssub.s32 %s24, 1
        %p446 = scmp.lt.s32.totalorder %s29, 1
        %s447 = scalar_select %p446, %s29, 1
        %s448 = smul.addr %s447, 8
        %s449 = smul.addr %s448, 8
        %s450 = scalar_lea.vmem %s0, %s449
        %p451 = pneg %p50
        %p452 = pneg %p47
        %p453 = pneg %p71
        %p454 = pneg %p68
        %p455 = pneg %p92
        %p456 = pneg %p89
        %p457 = pneg %p113
        %p458 = pneg %p110
        %p459 = pneg %p134
        %p460 = pneg %p131
        %p461 = pneg %p155
        %p462 = pneg %p152
        %p463 = pneg %p176
        %p464 = pneg %p173
        %p465 = pneg %p197
        %p466 = pneg %p194
        %p467 = pneg %p218
        %p468 = pneg %p215
        %p469 = pneg %p239
        %p470 = pneg %p236
        %p471 = pneg %p260
        %p472 = pneg %p257
        %p473 = pneg %p281
        %p474 = pneg %p278
        %p475 = pneg %p302
        %p476 = pneg %p299
        %p477 = pneg %p323
        %p478 = pneg %p320
        %p479 = pneg %p344
        %p480 = pneg %p341
        %p481 = pneg %p370
        %p482 = pneg %p367
        %s483 = sand.u32 %s357, 1
        %s484 = scalar_lea.sflag [#allocation6], %s483
        %s485 = sand.u32 %s357, 1
        %s486 = smul.addr %s485, 128
        %s487 = scalar_lea.vmem [#allocation5], %s486
        %p488 = scmp.lt.s32.totalorder %s29, 1
        %s489 = scalar_select %p488, %s29, 1
        %s490 = smul.addr %s489, 8
        %s491 = smul.addr %s490, 8
        %s492 = scalar_lea.vmem %s0, %s491
        %vm494 = vcmask 64512
        %495 = vst.msk [vmem:[#allocation2] sm:$0xff] %vm494, 0.0
        %vm496 = vcmask 58368
        %497 = vst.msk [vmem:[#allocation2 + $0x8] sm:$0x3] %vm496, 0.0
        %498 = vst.msk [vmem:[#allocation2 + $0x10] sm:$0xff] %vm494, 0.0
        %499 = vst.msk [vmem:[#allocation2 + $0x18] sm:$0x3] %vm496, 0.0
        %500 = vst.msk [vmem:[#allocation2 + $0x20] sm:$0xff] %vm494, 0.0
        %501 = vst.msk [vmem:[#allocation2 + $0x28] sm:$0x3] %vm496, 0.0
        %502 = vst.msk [vmem:[#allocation2 + $0x30] sm:$0xff] %vm494, 0.0
        %503 = vst.msk [vmem:[#allocation2 + $0x38] sm:$0x3] %vm496, 0.0
        %504 = vst.msk [vmem:[#allocation2 + $0x40] sm:$0xff] %vm494, 0.0
        %505 = vst.msk [vmem:[#allocation2 + $0x48] sm:$0x3] %vm496, 0.0
        %506 = vst.msk [vmem:[#allocation2 + $0x50] sm:$0xff] %vm494, 0.0
        %507 = vst.msk [vmem:[#allocation2 + $0x58] sm:$0x3] %vm496, 0.0
        %508 = vst.msk [vmem:[#allocation2 + $0x60] sm:$0xff] %vm494, 0.0
        %509 = vst.msk [vmem:[#allocation2 + $0x68] sm:$0x3] %vm496, 0.0
        %510 = vst.msk [vmem:[#allocation2 + $0x70] sm:$0xff] %vm494, 0.0
        %511 = vst.msk [vmem:[#allocation2 + $0x78] sm:$0x3] %vm496, 0.0
        %512 = vst.msk [vmem:[#allocation2 + $0x80] sm:$0xff] %vm494, 0.0
        %513 = vst.msk [vmem:[#allocation2 + $0x88] sm:$0x3] %vm496, 0.0
        %514 = vst.msk [vmem:[#allocation2 + $0x90] sm:$0xff] %vm494, 0.0
        %515 = vst.msk [vmem:[#allocation2 + $0x98] sm:$0x3] %vm496, 0.0
        %v516 = vld [vmem:[%s492] sm:$0xff]
        %v517 = vld [vmem:[%s492 + $0x8] sm:$0xff]
        %v518 = vld [vmem:[%s492 + $0x10] sm:$0xff]
        %v519 = vld [vmem:[%s492 + $0x18] sm:$0xff]
        %v520 = vld [vmem:[%s492 + $0x20] sm:$0xff]
        %v521 = vld [vmem:[%s492 + $0x28] sm:$0xff]
        %v522 = vld [vmem:[%s492 + $0x30] sm:$0xff]
        %v523 = vld [vmem:[%s492 + $0x38] sm:$0xff]
        %s524 = scalar_lea.vmem [#allocation2], 16
        %525 = vst.msk [vmem:[%s524 + $0x1] sm:$0xff] %vm494, %v516
        %526 = vst.msk [vmem:[%s524 + $0x11] sm:$0xff] %vm494, %v517
        %527 = vst.msk [vmem:[%s524 + $0x21] sm:$0xff] %vm494, %v518
        %528 = vst.msk [vmem:[%s524 + $0x31] sm:$0xff] %vm494, %v519
        %529 = vst.msk [vmem:[%s524 + $0x41] sm:$0xff] %vm494, %v520
        %530 = vst.msk [vmem:[%s524 + $0x51] sm:$0xff] %vm494, %v521
        %531 = vst.msk [vmem:[%s524 + $0x61] sm:$0xff] %vm494, %v522
        %532 = vst.msk [vmem:[%s524 + $0x71] sm:$0xff] %vm494, %v523
        %v533 = vld [vmem:[#allocation2] sm:$0xff]
        %v534 = vld [vmem:[#allocation2 + $0x8] sm:$0x3]
        %v535 = vld [vmem:[#allocation2 + $0x10] sm:$0xff]
        %v536 = vld [vmem:[#allocation2 + $0x18] sm:$0x3]
        %v537 = vld [vmem:[#allocation2 + $0x20] sm:$0xff]
        %v538 = vld [vmem:[#allocation2 + $0x28] sm:$0x3]
        %v539 = vld [vmem:[#allocation2 + $0x30] sm:$0xff]
        %v540 = vld [vmem:[#allocation2 + $0x38] sm:$0x3]
        %v541 = vld [vmem:[#allocation2 + $0x40] sm:$0xff]
        %v542 = vld [vmem:[#allocation2 + $0x48] sm:$0x3]
        %v543 = vld [vmem:[#allocation2 + $0x50] sm:$0xff]
        %v544 = vld [vmem:[#allocation2 + $0x58] sm:$0x3]
        %v545 = vld [vmem:[#allocation2 + $0x60] sm:$0xff]
        %v546 = vld [vmem:[#allocation2 + $0x68] sm:$0x3]
        %v547 = vld [vmem:[#allocation2 + $0x70] sm:$0xff]
        %v548 = vld [vmem:[#allocation2 + $0x78] sm:$0x3]
        %v549 = vld [vmem:[#allocation2 + $0x80] sm:$0xff]
        %v550 = vld [vmem:[#allocation2 + $0x88] sm:$0x3]
        %v551 = vld [vmem:[#allocation2 + $0x90] sm:$0xff]
        %v552 = vld [vmem:[#allocation2 + $0x98] sm:$0x3]
        %553 = vst.msk [vmem:[#allocation4] sm:$0xff] %vm494, %v533
        %554 = vst.msk [vmem:[#allocation4 + $0x18] sm:$0xff] %vm494, %v535
        %555 = vst.msk [vmem:[#allocation4 + $0x30] sm:$0xff] %vm494, %v537
        %556 = vst.msk [vmem:[#allocation4 + $0x48] sm:$0xff] %vm494, %v539
        %557 = vst.msk [vmem:[#allocation4 + $0x60] sm:$0xff] %vm494, %v541
        %558 = vst.msk [vmem:[#allocation4 + $0x78] sm:$0xff] %vm494, %v543
        %559 = vst.msk [vmem:[#allocation4 + $0x90] sm:$0xff] %vm494, %v545
        %560 = vst.msk [vmem:[#allocation4 + $0xa8] sm:$0xff] %vm494, %v547
        %vm577 = vcmask 1046528
        %v578 = vrot.slane %v533, 1
        %v579 = vrot.slane %v534, 1
        %v580 = vsel %vm577, %v578, %v579
        %v581 = vrot.slane %v535, 1
        %v582 = vrot.slane %v536, 1
        %v583 = vsel %vm577, %v581, %v582
        %v584 = vrot.slane %v537, 1
        %v585 = vrot.slane %v538, 1
        %v586 = vsel %vm577, %v584, %v585
        %v587 = vrot.slane %v539, 1
        %v588 = vrot.slane %v540, 1
        %v589 = vsel %vm577, %v587, %v588
        %v590 = vrot.slane %v541, 1
        %v591 = vrot.slane %v542, 1
        %v592 = vsel %vm577, %v590, %v591
        %v593 = vrot.slane %v543, 1
        %v594 = vrot.slane %v544, 1
        %v595 = vsel %vm577, %v593, %v594
        %v596 = vrot.slane %v545, 1
        %v597 = vrot.slane %v546, 1
        %v598 = vsel %vm577, %v596, %v597
        %v599 = vrot.slane %v547, 1
        %v600 = vrot.slane %v548, 1
        %v601 = vsel %vm577, %v599, %v600
        %602 = vrot.lane.b32.xlu0 %v580, 8
        %v603 = vpop.permute.xlu0 %602
        %604 = vrot.lane.b32.xlu0 %v583, 8
        %v605 = vpop.permute.xlu0 %604
        %606 = vrot.lane.b32.xlu0 %v586, 8
        %v607 = vpop.permute.xlu0 %606
        %608 = vrot.lane.b32.xlu0 %v589, 8
        %v609 = vpop.permute.xlu0 %608
        %610 = vrot.lane.b32.xlu0 %v592, 8
        %v611 = vpop.permute.xlu0 %610
        %612 = vrot.lane.b32.xlu0 %v595, 8
        %v613 = vpop.permute.xlu0 %612
        %614 = vrot.lane.b32.xlu0 %v598, 8
        %v615 = vpop.permute.xlu0 %614
        %616 = vrot.lane.b32.xlu0 %v601, 8
        %v617 = vpop.permute.xlu0 %616
        %vm626 = vcmask 130112
        %627 = vst.msk [vmem:[#allocation4] sm:$0xff] %vm626, %v603
        %628 = vst.msk [vmem:[#allocation4 + $0x18] sm:$0xff] %vm626, %v605
        %629 = vst.msk [vmem:[#allocation4 + $0x30] sm:$0xff] %vm626, %v607
        %630 = vst.msk [vmem:[#allocation4 + $0x48] sm:$0xff] %vm626, %v609
        %631 = vst.msk [vmem:[#allocation4 + $0x60] sm:$0xff] %vm626, %v611
        %632 = vst.msk [vmem:[#allocation4 + $0x78] sm:$0xff] %vm626, %v613
        %633 = vst.msk [vmem:[#allocation4 + $0x90] sm:$0xff] %vm626, %v615
        %634 = vst.msk [vmem:[#allocation4 + $0xa8] sm:$0xff] %vm626, %v617
        %vm635 = vcmask 1045504
        %v636 = vrot.slane %v533, 2
        %v637 = vrot.slane %v534, 2
        %v638 = vsel %vm635, %v636, %v637
        %v639 = vrot.slane %v535, 2
        %v640 = vrot.slane %v536, 2
        %v641 = vsel %vm635, %v639, %v640
        %v642 = vrot.slane %v537, 2
        %v643 = vrot.slane %v538, 2
        %v644 = vsel %vm635, %v642, %v643
        %v645 = vrot.slane %v539, 2
        %v646 = vrot.slane %v540, 2
        %v647 = vsel %vm635, %v645, %v646
        %v648 = vrot.slane %v541, 2
        %v649 = vrot.slane %v542, 2
        %v650 = vsel %vm635, %v648, %v649
        %v651 = vrot.slane %v543, 2
        %v652 = vrot.slane %v544, 2
        %v653 = vsel %vm635, %v651, %v652
        %v654 = vrot.slane %v545, 2
        %v655 = vrot.slane %v546, 2
        %v656 = vsel %vm635, %v654, %v655
        %v657 = vrot.slane %v547, 2
        %v658 = vrot.slane %v548, 2
        %v659 = vsel %vm635, %v657, %v658
        %660 = vrot.lane.b32.xlu0 %v638, 16
        %v661 = vpop.permute.xlu0 %660
        %662 = vrot.lane.b32.xlu0 %v641, 16
        %v663 = vpop.permute.xlu0 %662
        %664 = vrot.lane.b32.xlu0 %v644, 16
        %v665 = vpop.permute.xlu0 %664
        %666 = vrot.lane.b32.xlu0 %v647, 16
        %v667 = vpop.permute.xlu0 %666
        %668 = vrot.lane.b32.xlu0 %v650, 16
        %v669 = vpop.permute.xlu0 %668
        %670 = vrot.lane.b32.xlu0 %v653, 16
        %v671 = vpop.permute.xlu0 %670
        %672 = vrot.lane.b32.xlu0 %v656, 16
        %v673 = vpop.permute.xlu0 %672
        %674 = vrot.lane.b32.xlu0 %v659, 16
        %v675 = vpop.permute.xlu0 %674
        %vm684 = vcmask 195712
        %685 = vst.msk [vmem:[#allocation4] sm:$0xff] %vm684, %v661
        %686 = vst.msk [vmem:[#allocation4 + $0x18] sm:$0xff] %vm684, %v663
        %687 = vst.msk [vmem:[#allocation4 + $0x30] sm:$0xff] %vm684, %v665
        %688 = vst.msk [vmem:[#allocation4 + $0x48] sm:$0xff] %vm684, %v667
        %689 = vst.msk [vmem:[#allocation4 + $0x60] sm:$0xff] %vm684, %v669
        %690 = vst.msk [vmem:[#allocation4 + $0x78] sm:$0xff] %vm684, %v671
        %691 = vst.msk [vmem:[#allocation4 + $0x90] sm:$0xff] %vm684, %v673
        %692 = vst.msk [vmem:[#allocation4 + $0xa8] sm:$0xff] %vm684, %v675
        %694 = vrot.lane.b32.xlu0 %v535, 24
        %v695 = vpop.permute.xlu0 %694
        %696 = vrot.lane.b32.xlu0 %v537, 24
        %v697 = vpop.permute.xlu0 %696
        %698 = vrot.lane.b32.xlu0 %v539, 24
        %v699 = vpop.permute.xlu0 %698
        %700 = vrot.lane.b32.xlu0 %v541, 24
        %v701 = vpop.permute.xlu0 %700
        %702 = vrot.lane.b32.xlu0 %v543, 24
        %v703 = vpop.permute.xlu0 %702
        %704 = vrot.lane.b32.xlu0 %v545, 24
        %v705 = vpop.permute.xlu0 %704
        %706 = vrot.lane.b32.xlu0 %v547, 24
        %v707 = vpop.permute.xlu0 %706
        %708 = vrot.lane.b32.xlu0 %v549, 24
        %v709 = vpop.permute.xlu0 %708
        %vm718 = vcmask 261312
        %719 = vst.msk [vmem:[#allocation4] sm:$0xff] %vm718, %v695
        %720 = vst.msk [vmem:[#allocation4 + $0x18] sm:$0xff] %vm718, %v697
        %721 = vst.msk [vmem:[#allocation4 + $0x30] sm:$0xff] %vm718, %v699
        %722 = vst.msk [vmem:[#allocation4 + $0x48] sm:$0xff] %vm718, %v701
        %723 = vst.msk [vmem:[#allocation4 + $0x60] sm:$0xff] %vm718, %v703
        %724 = vst.msk [vmem:[#allocation4 + $0x78] sm:$0xff] %vm718, %v705
        %725 = vst.msk [vmem:[#allocation4 + $0x90] sm:$0xff] %vm718, %v707
        %726 = vst.msk [vmem:[#allocation4 + $0xa8] sm:$0xff] %vm718, %v709
        %v728 = vrot.slane %v549, 1
        %v729 = vrot.slane %v550, 1
        %v730 = vsel %vm577, %v728, %v729
        %731 = vrot.lane.b32.xlu0 %v583, 32
        %v732 = vpop.permute.xlu0 %731
        %733 = vrot.lane.b32.xlu0 %v586, 32
        %v734 = vpop.permute.xlu0 %733
        %735 = vrot.lane.b32.xlu0 %v589, 32
        %v736 = vpop.permute.xlu0 %735
        %737 = vrot.lane.b32.xlu0 %v592, 32
        %v738 = vpop.permute.xlu0 %737
        %739 = vrot.lane.b32.xlu0 %v595, 32
        %v740 = vpop.permute.xlu0 %739
        %741 = vrot.lane.b32.xlu0 %v598, 32
        %v742 = vpop.permute.xlu0 %741
        %743 = vrot.lane.b32.xlu0 %v601, 32
        %v744 = vpop.permute.xlu0 %743
        %745 = vrot.lane.b32.xlu0 %v730, 32
        %v746 = vpop.permute.xlu0 %745
        %vm755 = vcmask 326912
        %756 = vst.msk [vmem:[#allocation4] sm:$0xff] %vm755, %v732
        %757 = vst.msk [vmem:[#allocation4 + $0x18] sm:$0xff] %vm755, %v734
        %758 = vst.msk [vmem:[#allocation4 + $0x30] sm:$0xff] %vm755, %v736
        %759 = vst.msk [vmem:[#allocation4 + $0x48] sm:$0xff] %vm755, %v738
        %760 = vst.msk [vmem:[#allocation4 + $0x60] sm:$0xff] %vm755, %v740
        %761 = vst.msk [vmem:[#allocation4 + $0x78] sm:$0xff] %vm755, %v742
        %762 = vst.msk [vmem:[#allocation4 + $0x90] sm:$0xff] %vm755, %v744
        %763 = vst.msk [vmem:[#allocation4 + $0xa8] sm:$0xff] %vm755, %v746
        %v764 = vrot.slane %v549, 2
        %v765 = vrot.slane %v550, 2
        %v766 = vsel %vm635, %v764, %v765
        %767 = vrot.lane.b32.xlu0 %v641, 40
        %v768 = vpop.permute.xlu0 %767
        %769 = vrot.lane.b32.xlu0 %v644, 40
        %v770 = vpop.permute.xlu0 %769
        %771 = vrot.lane.b32.xlu0 %v647, 40
        %v772 = vpop.permute.xlu0 %771
        %773 = vrot.lane.b32.xlu0 %v650, 40
        %v774 = vpop.permute.xlu0 %773
        %775 = vrot.lane.b32.xlu0 %v653, 40
        %v776 = vpop.permute.xlu0 %775
        %777 = vrot.lane.b32.xlu0 %v656, 40
        %v778 = vpop.permute.xlu0 %777
        %779 = vrot.lane.b32.xlu0 %v659, 40
        %v780 = vpop.permute.xlu0 %779
        %781 = vrot.lane.b32.xlu0 %v766, 40
        %v782 = vpop.permute.xlu0 %781
        %vm791 = vcmask 392512
        %792 = vst.msk [vmem:[#allocation4] sm:$0xff] %vm791, %v768
        %793 = vst.msk [vmem:[#allocation4 + $0x18] sm:$0xff] %vm791, %v770
        %794 = vst.msk [vmem:[#allocation4 + $0x30] sm:$0xff] %vm791, %v772
        %795 = vst.msk [vmem:[#allocation4 + $0x48] sm:$0xff] %vm791, %v774
        %796 = vst.msk [vmem:[#allocation4 + $0x60] sm:$0xff] %vm791, %v776
        %797 = vst.msk [vmem:[#allocation4 + $0x78] sm:$0xff] %vm791, %v778
        %798 = vst.msk [vmem:[#allocation4 + $0x90] sm:$0xff] %vm791, %v780
        %799 = vst.msk [vmem:[#allocation4 + $0xa8] sm:$0xff] %vm791, %v782
        %801 = vrot.lane.b32.xlu0 %v537, 48
        %v802 = vpop.permute.xlu0 %801
        %803 = vrot.lane.b32.xlu0 %v539, 48
        %v804 = vpop.permute.xlu0 %803
        %805 = vrot.lane.b32.xlu0 %v541, 48
        %v806 = vpop.permute.xlu0 %805
        %807 = vrot.lane.b32.xlu0 %v543, 48
        %v808 = vpop.permute.xlu0 %807
        %809 = vrot.lane.b32.xlu0 %v545, 48
        %v810 = vpop.permute.xlu0 %809
        %811 = vrot.lane.b32.xlu0 %v547, 48
        %v812 = vpop.permute.xlu0 %811
        %813 = vrot.lane.b32.xlu0 %v549, 48
        %v814 = vpop.permute.xlu0 %813
        %815 = vrot.lane.b32.xlu0 %v551, 48
        %v816 = vpop.permute.xlu0 %815
        %vm825 = vcmask 458112
        %826 = vst.msk [vmem:[#allocation4] sm:$0xff] %vm825, %v802
        %827 = vst.msk [vmem:[#allocation4 + $0x18] sm:$0xff] %vm825, %v804
        %828 = vst.msk [vmem:[#allocation4 + $0x30] sm:$0xff] %vm825, %v806
        %829 = vst.msk [vmem:[#allocation4 + $0x48] sm:$0xff] %vm825, %v808
        %830 = vst.msk [vmem:[#allocation4 + $0x60] sm:$0xff] %vm825, %v810
        %831 = vst.msk [vmem:[#allocation4 + $0x78] sm:$0xff] %vm825, %v812
        %832 = vst.msk [vmem:[#allocation4 + $0x90] sm:$0xff] %vm825, %v814
        %833 = vst.msk [vmem:[#allocation4 + $0xa8] sm:$0xff] %vm825, %v816
        %v835 = vrot.slane %v551, 1
        %v836 = vrot.slane %v552, 1
        %v837 = vsel %vm577, %v835, %v836
        %838 = vrot.lane.b32.xlu0 %v586, 56
        %v839 = vpop.permute.xlu0 %838
        %840 = vrot.lane.b32.xlu0 %v589, 56
        %v841 = vpop.permute.xlu0 %840
        %842 = vrot.lane.b32.xlu0 %v592, 56
        %v843 = vpop.permute.xlu0 %842
        %844 = vrot.lane.b32.xlu0 %v595, 56
        %v845 = vpop.permute.xlu0 %844
        %846 = vrot.lane.b32.xlu0 %v598, 56
        %v847 = vpop.permute.xlu0 %846
        %848 = vrot.lane.b32.xlu0 %v601, 56
        %v849 = vpop.permute.xlu0 %848
        %850 = vrot.lane.b32.xlu0 %v730, 56
        %v851 = vpop.permute.xlu0 %850
        %852 = vrot.lane.b32.xlu0 %v837, 56
        %v853 = vpop.permute.xlu0 %852
        %vm862 = vcmask 523712
        %863 = vst.msk [vmem:[#allocation4] sm:$0xff] %vm862, %v839
        %864 = vst.msk [vmem:[#allocation4 + $0x18] sm:$0xff] %vm862, %v841
        %865 = vst.msk [vmem:[#allocation4 + $0x30] sm:$0xff] %vm862, %v843
        %866 = vst.msk [vmem:[#allocation4 + $0x48] sm:$0xff] %vm862, %v845
        %867 = vst.msk [vmem:[#allocation4 + $0x60] sm:$0xff] %vm862, %v847
        %868 = vst.msk [vmem:[#allocation4 + $0x78] sm:$0xff] %vm862, %v849
        %869 = vst.msk [vmem:[#allocation4 + $0x90] sm:$0xff] %vm862, %v851
        %870 = vst.msk [vmem:[#allocation4 + $0xa8] sm:$0xff] %vm862, %v853
        %v871 = vrot.slane %v551, 2
        %v872 = vrot.slane %v552, 2
        %v873 = vsel %vm635, %v871, %v872
        %874 = vrot.lane.b32.xlu0 %v644, 64
        %v875 = vpop.permute.xlu0 %874
        %876 = vrot.lane.b32.xlu0 %v647, 64
        %v877 = vpop.permute.xlu0 %876
        %878 = vrot.lane.b32.xlu0 %v650, 64
        %v879 = vpop.permute.xlu0 %878
        %880 = vrot.lane.b32.xlu0 %v653, 64
        %v881 = vpop.permute.xlu0 %880
        %882 = vrot.lane.b32.xlu0 %v656, 64
        %v883 = vpop.permute.xlu0 %882
        %884 = vrot.lane.b32.xlu0 %v659, 64
        %v885 = vpop.permute.xlu0 %884
        %886 = vrot.lane.b32.xlu0 %v766, 64
        %v887 = vpop.permute.xlu0 %886
        %888 = vrot.lane.b32.xlu0 %v873, 64
        %v889 = vpop.permute.xlu0 %888
        %vm898 = vcmask 589312
        %899 = vst.msk [vmem:[#allocation4] sm:$0xff] %vm898, %v875
        %900 = vst.msk [vmem:[#allocation4 + $0x18] sm:$0xff] %vm898, %v877
        %901 = vst.msk [vmem:[#allocation4 + $0x30] sm:$0xff] %vm898, %v879
        %902 = vst.msk [vmem:[#allocation4 + $0x48] sm:$0xff] %vm898, %v881
        %903 = vst.msk [vmem:[#allocation4 + $0x60] sm:$0xff] %vm898, %v883
        %904 = vst.msk [vmem:[#allocation4 + $0x78] sm:$0xff] %vm898, %v885
        %905 = vst.msk [vmem:[#allocation4 + $0x90] sm:$0xff] %vm898, %v887
        %906 = vst.msk [vmem:[#allocation4 + $0xa8] sm:$0xff] %vm898, %v889
        %v907 = vld [vmem:[%s1] sm:$0xf]
        %v908 = vld [vmem:[%s1 + $0x4] sm:$0xf]
        %v909 = vld [vmem:[%s1 + $0x8] sm:$0xf]
        %v910 = vld [vmem:[%s1 + $0xc] sm:$0xf]
        %v911 = vld [vmem:[%s1 + $0x10] sm:$0xf]
        %v912 = vld [vmem:[%s1 + $0x14] sm:$0xf]
        %v913 = vld [vmem:[%s1 + $0x18] sm:$0xf]
        %v914 = vld [vmem:[%s1 + $0x1c] sm:$0xf]
        %v915 = vld [vmem:[%s1 + $0x20] sm:$0xf]
        %v916 = vld [vmem:[#allocation4] sm:$0xff]
        %v917 = vld [vmem:[#allocation4 + $0x18] sm:$0xff]
        %v918 = vld [vmem:[#allocation4 + $0x30] sm:$0xff]
        %v919 = vld [vmem:[#allocation4 + $0x48] sm:$0xff]
        %v920 = vld [vmem:[#allocation4 + $0x60] sm:$0xff]
        %v921 = vld [vmem:[#allocation4 + $0x78] sm:$0xff]
        %v922 = vld [vmem:[#allocation4 + $0x90] sm:$0xff]
        %v923 = vld [vmem:[#allocation4 + $0xa8] sm:$0xff]
        %v924 = vpack.c.bf16 %v917, %v916
        %v925 = vpack.c.bf16 %v919, %v918
        %v926 = vpack.c.bf16 %v921, %v920
        %v927 = vpack.c.bf16 %v923, %v922
        %v928 = vld [vmem:[%s2] sm:$0x1]
        %v930 = vlaneseq
        %v931 = vshrl.u32 %v930, 7
        %v932 = vsub.s32 0, %v931
        %v933 = vrot.slane %v928, %v932
        %v944 = vunpack.c.l.b16 %v907
        %v945 = vunpack.c.l.b16 %v908
        %v946 = vunpack.c.l.b16 %v909
        %v947 = vunpack.c.l.b16 %v910
        %v948 = vunpack.c.l.b16 %v911
        %v949 = vunpack.c.l.b16 %v912
        %v950 = vunpack.c.l.b16 %v913
        %v951 = vunpack.c.l.b16 %v914
        %v952 = vunpack.c.l.b16 %v915
        %v953 = vpack.c.b16 %v945, %v944
        %v954 = vpack.c.b16 %v947, %v946
        %v955 = vpack.c.b16 %v949, %v948
        %v956 = vpack.c.b16 %v951, %v950
        %v957 = vpack.c.b16 %v952, %v952
        %vm962 = vcmask 588800
        %v964 = vsel %vm962, %v924, 0
        %v967 = vsel %vm962, %v925, 0
        %v970 = vsel %vm962, %v926, 0
        %v973 = vsel %vm962, %v927, 0
        %vm975 = vcmask 1043456
        %v977 = vsel %vm975, %v957, 0
        %979 = vmatprep.subr.bf16.mxu0 0
        %980 = vmatpush1.bf16.msra.mxu0 %v953
        %981 = vmatprep.subr.bf16.mxu0 0
        %982 = vmatpush1.bf16.msra.mxu0 %v954
        %983 = vmatprep.subr.bf16.mxu0 0
        %984 = vmatpush1.bf16.msra.mxu0 %v955
        %985 = vmatprep.subr.bf16.mxu0 0
        %986 = vmatpush1.bf16.msra.mxu0 %v956
        %987 = vmatprep.subr.bf16.mxu0 0
        %988 = vmatpush1.bf16.msra.mxu0 %v977
        %989 = vmatprep.subr.bf16.mxu0 0
        %990 = vmatpush1.bf16.msra.mxu0 0
        %991 = vmatprep.subr.bf16.mxu0 0
        %992 = vmatpush1.bf16.msra.mxu0 0
        %993 = vmatprep.subr.bf16.mxu0 0
        %994 = vmatpush1.bf16.msra.mxu0 0
        %995 = vmatprep.subr.bf16.mxu0 0
        %996 = vmatpush1.bf16.msra.mxu0 0
        %997 = vmatprep.subr.bf16.mxu0 0
        %998 = vmatpush1.bf16.msra.mxu0 0
        %999 = vmatprep.subr.bf16.mxu0 0
        %1000 = vmatpush1.bf16.msra.mxu0 0
        %1001 = vmatprep.subr.bf16.mxu0 0
        %1002 = vmatpush1.bf16.msra.mxu0 0
        %1003 = vmatprep.subr.bf16.mxu0 0
        %1004 = vmatpush1.bf16.msra.mxu0 0
        %1005 = vmatprep.subr.bf16.mxu0 0
        %1006 = vmatpush1.bf16.msra.mxu0 0
        %1007 = vmatprep.subr.bf16.mxu0 0
        %1008 = vmatpush1.bf16.msra.mxu0 0
        %1009 = vmatprep.subr.bf16.mxu0 0
        %1010 = vmatpush1.bf16.msra.mxu0 0
        %1011 = vmatprep.mubr.bf16.mxu0 0
        %1012 = vmatmul.mubr.bf16.gmra.mrb[0].mxu0 %v964
        %v1013 = vpop.f32.mrb[0].mxu0
        %v1014 = vadd.f32 %v933, %v1013
        %v1015 = vpop.f32.mrb[0].mxu0
        %v1016 = vpop.f32.mrb[0].mxu0
        %v1017 = vadd.f32 %v933, %v1016
        %v1018 = vpop.f32.mrb[0].mxu0
        %1019 = vmatprep.mubr.bf16.mxu0 0
        %1020 = vmatmul.mubr.bf16.gmra.mrb[0].mxu0 %v967
        %v1021 = vpop.f32.mrb[0].mxu0
        %v1022 = vadd.f32 %v933, %v1021
        %v1023 = vpop.f32.mrb[0].mxu0
        %v1024 = vpop.f32.mrb[0].mxu0
        %v1025 = vadd.f32 %v933, %v1024
        %v1026 = vpop.f32.mrb[0].mxu0
        %1027 = vmatprep.mubr.bf16.mxu0 0
        %1028 = vmatmul.mubr.bf16.gmra.mrb[0].mxu0 %v970
        %v1029 = vpop.f32.mrb[0].mxu0
        %v1030 = vadd.f32 %v933, %v1029
        %v1031 = vpop.f32.mrb[0].mxu0
        %v1032 = vpop.f32.mrb[0].mxu0
        %v1033 = vadd.f32 %v933, %v1032
        %v1034 = vpop.f32.mrb[0].mxu0
        %1035 = vmatprep.mubr.bf16.mxu0 0
        %1036 = vmatmul.mubr.bf16.gmra.mrb[0].mxu0 %v973
        %v1037 = vpop.f32.mrb[0].mxu0
        %v1038 = vadd.f32 %v933, %v1037
        %v1039 = vpop.f32.mrb[0].mxu0
        %v1040 = vpop.f32.mrb[0].mxu0
        %v1041 = vadd.f32 %v933, %v1040
        %v1042 = vpop.f32.mrb[0].mxu0
        %1043 = vdwg.mxu0
        %vm1044 = vcmask 261120
        %1045 = vst.msk [vmem:[#allocation3] sm:$0xff] %vm1044, 0.0
        %vm1046 = vcmask 254976
        %1047 = vst.msk [vmem:[#allocation3 + $0x8] sm:$0x3] %vm1046, 0.0
        %1048 = vst.msk [vmem:[#allocation3 + $0x10] sm:$0xff] %vm1044, 0.0
        %1049 = vst.msk [vmem:[#allocation3 + $0x18] sm:$0x3] %vm1046, 0.0
        %1050 = vst.msk [vmem:[#allocation3 + $0x20] sm:$0xff] %vm1044, 0.0
        %1051 = vst.msk [vmem:[#allocation3 + $0x28] sm:$0x3] %vm1046, 0.0
        %1052 = vst.msk [vmem:[#allocation3 + $0x30] sm:$0xff] %vm1044, 0.0
        %1053 = vst.msk [vmem:[#allocation3 + $0x38] sm:$0x3] %vm1046, 0.0
        %1054 = vst.msk [vmem:[#allocation3 + $0x40] sm:$0xff] %vm1044, 0.0
        %1055 = vst.msk [vmem:[#allocation3 + $0x48] sm:$0x3] %vm1046, 0.0
        %1056 = vst.msk [vmem:[#allocation3 + $0x50] sm:$0xff] %vm1044, 0.0
        %1057 = vst.msk [vmem:[#allocation3 + $0x58] sm:$0x3] %vm1046, 0.0
        %1058 = vst.msk [vmem:[#allocation3 + $0x60] sm:$0xff] %vm1044, 0.0
        %1059 = vst.msk [vmem:[#allocation3 + $0x68] sm:$0x3] %vm1046, 0.0
        %1060 = vst.msk [vmem:[#allocation3 + $0x70] sm:$0xff] %vm1044, 0.0
        %1061 = vst.msk [vmem:[#allocation3 + $0x78] sm:$0x3] %vm1046, 0.0
        %1062 = vst.msk [vmem:[#allocation3 + $0x80] sm:$0xff] %vm1044, 0.0
        %1063 = vst.msk [vmem:[#allocation3 + $0x88] sm:$0x3] %vm1046, 0.0
        %1064 = vst.msk [vmem:[#allocation3 + $0x90] sm:$0xff] %vm1044, 0.0
        %1065 = vst.msk [vmem:[#allocation3 + $0x98] sm:$0x3] %vm1046, 0.0
        %s1066 = scalar_lea.vmem [#allocation3], 16
        %1067 = vst.msk [vmem:[%s1066 + $0x1] sm:$0xff] %vm1044, %v1014
        %1068 = vst.msk [vmem:[%s1066 + $0x11] sm:$0xff] %vm1044, %v1017
        %1069 = vst.msk [vmem:[%s1066 + $0x21] sm:$0xff] %vm1044, %v1022
        %1070 = vst.msk [vmem:[%s1066 + $0x31] sm:$0xff] %vm1044, %v1025
        %1071 = vst.msk [vmem:[%s1066 + $0x41] sm:$0xff] %vm1044, %v1030
        %1072 = vst.msk [vmem:[%s1066 + $0x51] sm:$0xff] %vm1044, %v1033
        %1073 = vst.msk [vmem:[%s1066 + $0x61] sm:$0xff] %vm1044, %v1038
        %1074 = vst.msk [vmem:[%s1066 + $0x71] sm:$0xff] %vm1044, %v1041
        %v1075 = vld [vmem:[#allocation3] sm:$0xff]
        %v1076 = vld [vmem:[#allocation3 + $0x8] sm:$0x3]
        %v1077 = vld [vmem:[#allocation3 + $0x10] sm:$0xff]
        %v1078 = vld [vmem:[#allocation3 + $0x18] sm:$0x3]
        %v1079 = vld [vmem:[#allocation3 + $0x20] sm:$0xff]
        %v1080 = vld [vmem:[#allocation3 + $0x28] sm:$0x3]
        %v1081 = vld [vmem:[#allocation3 + $0x30] sm:$0xff]
        %v1082 = vld [vmem:[#allocation3 + $0x38] sm:$0x3]
        %v1083 = vld [vmem:[#allocation3 + $0x40] sm:$0xff]
        %v1084 = vld [vmem:[#allocation3 + $0x48] sm:$0x3]
        %v1085 = vld [vmem:[#allocation3 + $0x50] sm:$0xff]
        %v1086 = vld [vmem:[#allocation3 + $0x58] sm:$0x3]
        %v1087 = vld [vmem:[#allocation3 + $0x60] sm:$0xff]
        %v1088 = vld [vmem:[#allocation3 + $0x68] sm:$0x3]
        %v1089 = vld [vmem:[#allocation3 + $0x70] sm:$0xff]
        %v1090 = vld [vmem:[#allocation3 + $0x78] sm:$0x3]
        %v1091 = vld [vmem:[#allocation3 + $0x80] sm:$0xff]
        %v1092 = vld [vmem:[#allocation3 + $0x88] sm:$0x3]
        %v1093 = vld [vmem:[#allocation3 + $0x90] sm:$0xff]
        %v1094 = vld [vmem:[#allocation3 + $0x98] sm:$0x3]
        %v1095 = vmax.f32 %v1075, 0.0
        %v1096 = vmax.f32 %v1076, 0.0
        %v1097 = vmax.f32 %v1077, 0.0
        %v1098 = vmax.f32 %v1078, 0.0
        %v1099 = vmax.f32 %v1079, 0.0
        %v1100 = vmax.f32 %v1080, 0.0
        %v1101 = vmax.f32 %v1081, 0.0
        %v1102 = vmax.f32 %v1082, 0.0
        %v1103 = vmax.f32 %v1083, 0.0
        %v1104 = vmax.f32 %v1084, 0.0
        %v1105 = vmax.f32 %v1085, 0.0
        %v1106 = vmax.f32 %v1086, 0.0
        %v1107 = vmax.f32 %v1087, 0.0
        %v1108 = vmax.f32 %v1088, 0.0
        %v1109 = vmax.f32 %v1089, 0.0
        %v1110 = vmax.f32 %v1090, 0.0
        %v1111 = vmax.f32 %v1091, 0.0
        %v1112 = vmax.f32 %v1092, 0.0
        %v1113 = vmax.f32 %v1093, 0.0
        %v1114 = vmax.f32 %v1094, 0.0
        %1115 = vst.msk [vmem:[#allocation4] sm:$0xff] %vm1044, %v1095
        %1116 = vst.msk [vmem:[#allocation4 + $0x18] sm:$0xff] %vm1044, %v1097
        %1117 = vst.msk [vmem:[#allocation4 + $0x30] sm:$0xff] %vm1044, %v1099
        %1118 = vst.msk [vmem:[#allocation4 + $0x48] sm:$0xff] %vm1044, %v1101
        %1119 = vst.msk [vmem:[#allocation4 + $0x60] sm:$0xff] %vm1044, %v1103
        %1120 = vst.msk [vmem:[#allocation4 + $0x78] sm:$0xff] %vm1044, %v1105
        %1121 = vst.msk [vmem:[#allocation4 + $0x90] sm:$0xff] %vm1044, %v1107
        %1122 = vst.msk [vmem:[#allocation4 + $0xa8] sm:$0xff] %vm1044, %v1109
        %v1139 = vrot.slane %v1095, 1
        %v1140 = vrot.slane %v1096, 1
        %v1141 = vsel %vm577, %v1139, %v1140
        %v1142 = vrot.slane %v1097, 1
        %v1143 = vrot.slane %v1098, 1
        %v1144 = vsel %vm577, %v1142, %v1143
        %v1145 = vrot.slane %v1099, 1
        %v1146 = vrot.slane %v1100, 1
        %v1147 = vsel %vm577, %v1145, %v1146
        %v1148 = vrot.slane %v1101, 1
        %v1149 = vrot.slane %v1102, 1
        %v1150 = vsel %vm577, %v1148, %v1149
        %v1151 = vrot.slane %v1103, 1
        %v1152 = vrot.slane %v1104, 1
        %v1153 = vsel %vm577, %v1151, %v1152
        %v1154 = vrot.slane %v1105, 1
        %v1155 = vrot.slane %v1106, 1
        %v1156 = vsel %vm577, %v1154, %v1155
        %v1157 = vrot.slane %v1107, 1
        %v1158 = vrot.slane %v1108, 1
        %v1159 = vsel %vm577, %v1157, %v1158
        %v1160 = vrot.slane %v1109, 1
        %v1161 = vrot.slane %v1110, 1
        %v1162 = vsel %vm577, %v1160, %v1161
        %1163 = vrot.lane.b32.xlu0 %v1141, 32
        %v1164 = vpop.permute.xlu0 %1163
        %1165 = vrot.lane.b32.xlu0 %v1144, 32
        %v1166 = vpop.permute.xlu0 %1165
        %1167 = vrot.lane.b32.xlu0 %v1147, 32
        %v1168 = vpop.permute.xlu0 %1167
        %1169 = vrot.lane.b32.xlu0 %v1150, 32
        %v1170 = vpop.permute.xlu0 %1169
        %1171 = vrot.lane.b32.xlu0 %v1153, 32
        %v1172 = vpop.permute.xlu0 %1171
        %1173 = vrot.lane.b32.xlu0 %v1156, 32
        %v1174 = vpop.permute.xlu0 %1173
        %1175 = vrot.lane.b32.xlu0 %v1159, 32
        %v1176 = vpop.permute.xlu0 %1175
        %1177 = vrot.lane.b32.xlu0 %v1162, 32
        %v1178 = vpop.permute.xlu0 %1177
        %vm1187 = vcmask 523520
        %1188 = vst.msk [vmem:[#allocation4] sm:$0xff] %vm1187, %v1164
        %1189 = vst.msk [vmem:[#allocation4 + $0x18] sm:$0xff] %vm1187, %v1166
        %1190 = vst.msk [vmem:[#allocation4 + $0x30] sm:$0xff] %vm1187, %v1168
        %1191 = vst.msk [vmem:[#allocation4 + $0x48] sm:$0xff] %vm1187, %v1170
        %1192 = vst.msk [vmem:[#allocation4 + $0x60] sm:$0xff] %vm1187, %v1172
        %1193 = vst.msk [vmem:[#allocation4 + $0x78] sm:$0xff] %vm1187, %v1174
        %1194 = vst.msk [vmem:[#allocation4 + $0x90] sm:$0xff] %vm1187, %v1176
        %1195 = vst.msk [vmem:[#allocation4 + $0xa8] sm:$0xff] %vm1187, %v1178
        %v1196 = vrot.slane %v1095, 2
        %v1197 = vrot.slane %v1096, 2
        %v1198 = vsel %vm635, %v1196, %v1197
        %v1199 = vrot.slane %v1097, 2
        %v1200 = vrot.slane %v1098, 2
        %v1201 = vsel %vm635, %v1199, %v1200
        %v1202 = vrot.slane %v1099, 2
        %v1203 = vrot.slane %v1100, 2
        %v1204 = vsel %vm635, %v1202, %v1203
        %v1205 = vrot.slane %v1101, 2
        %v1206 = vrot.slane %v1102, 2
        %v1207 = vsel %vm635, %v1205, %v1206
        %v1208 = vrot.slane %v1103, 2
        %v1209 = vrot.slane %v1104, 2
        %v1210 = vsel %vm635, %v1208, %v1209
        %v1211 = vrot.slane %v1105, 2
        %v1212 = vrot.slane %v1106, 2
        %v1213 = vsel %vm635, %v1211, %v1212
        %v1214 = vrot.slane %v1107, 2
        %v1215 = vrot.slane %v1108, 2
        %v1216 = vsel %vm635, %v1214, %v1215
        %v1217 = vrot.slane %v1109, 2
        %v1218 = vrot.slane %v1110, 2
        %v1219 = vsel %vm635, %v1217, %v1218
        %1220 = vrot.lane.b32.xlu0 %v1198, 64
        %v1221 = vpop.permute.xlu0 %1220
        %1222 = vrot.lane.b32.xlu0 %v1201, 64
        %v1223 = vpop.permute.xlu0 %1222
        %1224 = vrot.lane.b32.xlu0 %v1204, 64
        %v1225 = vpop.permute.xlu0 %1224
        %1226 = vrot.lane.b32.xlu0 %v1207, 64
        %v1227 = vpop.permute.xlu0 %1226
        %1228 = vrot.lane.b32.xlu0 %v1210, 64
        %v1229 = vpop.permute.xlu0 %1228
        %1230 = vrot.lane.b32.xlu0 %v1213, 64
        %v1231 = vpop.permute.xlu0 %1230
        %1232 = vrot.lane.b32.xlu0 %v1216, 64
        %v1233 = vpop.permute.xlu0 %1232
        %1234 = vrot.lane.b32.xlu0 %v1219, 64
        %v1235 = vpop.permute.xlu0 %1234
        %vm1244 = vcmask 785920
        %1245 = vst.msk [vmem:[#allocation4] sm:$0xff] %vm1244, %v1221
        %1246 = vst.msk [vmem:[#allocation4 + $0x18] sm:$0xff] %vm1244, %v1223
        %1247 = vst.msk [vmem:[#allocation4 + $0x30] sm:$0xff] %vm1244, %v1225
        %1248 = vst.msk [vmem:[#allocation4 + $0x48] sm:$0xff] %vm1244, %v1227
        %1249 = vst.msk [vmem:[#allocation4 + $0x60] sm:$0xff] %vm1244, %v1229
        %1250 = vst.msk [vmem:[#allocation4 + $0x78] sm:$0xff] %vm1244, %v1231
        %1251 = vst.msk [vmem:[#allocation4 + $0x90] sm:$0xff] %vm1244, %v1233
        %1252 = vst.msk [vmem:[#allocation4 + $0xa8] sm:$0xff] %vm1244, %v1235
        %1254 = vrot.lane.b32.xlu0 %v1097, 96
        %v1255 = vpop.permute.xlu0 %1254
        %1256 = vrot.lane.b32.xlu0 %v1099, 96
        %v1257 = vpop.permute.xlu0 %1256
        %1258 = vrot.lane.b32.xlu0 %v1101, 96
        %v1259 = vpop.permute.xlu0 %1258
        %1260 = vrot.lane.b32.xlu0 %v1103, 96
        %v1261 = vpop.permute.xlu0 %1260
        %1262 = vrot.lane.b32.xlu0 %v1105, 96
        %v1263 = vpop.permute.xlu0 %1262
        %1264 = vrot.lane.b32.xlu0 %v1107, 96
        %v1265 = vpop.permute.xlu0 %1264
        %1266 = vrot.lane.b32.xlu0 %v1109, 96
        %v1267 = vpop.permute.xlu0 %1266
        %1268 = vrot.lane.b32.xlu0 %v1111, 96
        %v1269 = vpop.permute.xlu0 %1268
        %vm1278 = vcmask 1048320
        %1279 = vst.msk [vmem:[#allocation4] sm:$0xff] %vm1278, %v1255
        %1280 = vst.msk [vmem:[#allocation4 + $0x18] sm:$0xff] %vm1278, %v1257
        %1281 = vst.msk [vmem:[#allocation4 + $0x30] sm:$0xff] %vm1278, %v1259
        %1282 = vst.msk [vmem:[#allocation4 + $0x48] sm:$0xff] %vm1278, %v1261
        %1283 = vst.msk [vmem:[#allocation4 + $0x60] sm:$0xff] %vm1278, %v1263
        %1284 = vst.msk [vmem:[#allocation4 + $0x78] sm:$0xff] %vm1278, %v1265
        %1285 = vst.msk [vmem:[#allocation4 + $0x90] sm:$0xff] %vm1278, %v1267
        %1286 = vst.msk [vmem:[#allocation4 + $0xa8] sm:$0xff] %vm1278, %v1269
        %v1288 = vrot.slane %v1111, 1
        %v1289 = vrot.slane %v1112, 1
        %v1290 = vsel %vm577, %v1288, %v1289
        %1299 = vst.msk [vmem:[#allocation4 + $0x8] sm:$0xff] %vm1044, %v1144
        %1300 = vst.msk [vmem:[#allocation4 + $0x20] sm:$0xff] %vm1044, %v1147
        %1301 = vst.msk [vmem:[#allocation4 + $0x38] sm:$0xff] %vm1044, %v1150
        %1302 = vst.msk [vmem:[#allocation4 + $0x50] sm:$0xff] %vm1044, %v1153
        %1303 = vst.msk [vmem:[#allocation4 + $0x68] sm:$0xff] %vm1044, %v1156
        %1304 = vst.msk [vmem:[#allocation4 + $0x80] sm:$0xff] %vm1044, %v1159
        %1305 = vst.msk [vmem:[#allocation4 + $0x98] sm:$0xff] %vm1044, %v1162
        %1306 = vst.msk [vmem:[#allocation4 + $0xb0] sm:$0xff] %vm1044, %v1290
        %v1307 = vrot.slane %v1111, 2
        %v1308 = vrot.slane %v1112, 2
        %v1309 = vsel %vm635, %v1307, %v1308
        %1310 = vrot.lane.b32.xlu0 %v1201, 32
        %v1311 = vpop.permute.xlu0 %1310
        %1312 = vrot.lane.b32.xlu0 %v1204, 32
        %v1313 = vpop.permute.xlu0 %1312
        %1314 = vrot.lane.b32.xlu0 %v1207, 32
        %v1315 = vpop.permute.xlu0 %1314
        %1316 = vrot.lane.b32.xlu0 %v1210, 32
        %v1317 = vpop.permute.xlu0 %1316
        %1318 = vrot.lane.b32.xlu0 %v1213, 32
        %v1319 = vpop.permute.xlu0 %1318
        %1320 = vrot.lane.b32.xlu0 %v1216, 32
        %v1321 = vpop.permute.xlu0 %1320
        %1322 = vrot.lane.b32.xlu0 %v1219, 32
        %v1323 = vpop.permute.xlu0 %1322
        %1324 = vrot.lane.b32.xlu0 %v1309, 32
        %v1325 = vpop.permute.xlu0 %1324
        %1334 = vst.msk [vmem:[#allocation4 + $0x8] sm:$0xff] %vm1187, %v1311
        %1335 = vst.msk [vmem:[#allocation4 + $0x20] sm:$0xff] %vm1187, %v1313
        %1336 = vst.msk [vmem:[#allocation4 + $0x38] sm:$0xff] %vm1187, %v1315
        %1337 = vst.msk [vmem:[#allocation4 + $0x50] sm:$0xff] %vm1187, %v1317
        %1338 = vst.msk [vmem:[#allocation4 + $0x68] sm:$0xff] %vm1187, %v1319
        %1339 = vst.msk [vmem:[#allocation4 + $0x80] sm:$0xff] %vm1187, %v1321
        %1340 = vst.msk [vmem:[#allocation4 + $0x98] sm:$0xff] %vm1187, %v1323
        %1341 = vst.msk [vmem:[#allocation4 + $0xb0] sm:$0xff] %vm1187, %v1325
        %1343 = vrot.lane.b32.xlu0 %v1099, 64
        %v1344 = vpop.permute.xlu0 %1343
        %1345 = vrot.lane.b32.xlu0 %v1101, 64
        %v1346 = vpop.permute.xlu0 %1345
        %1347 = vrot.lane.b32.xlu0 %v1103, 64
        %v1348 = vpop.permute.xlu0 %1347
        %1349 = vrot.lane.b32.xlu0 %v1105, 64
        %v1350 = vpop.permute.xlu0 %1349
        %1351 = vrot.lane.b32.xlu0 %v1107, 64
        %v1352 = vpop.permute.xlu0 %1351
        %1353 = vrot.lane.b32.xlu0 %v1109, 64
        %v1354 = vpop.permute.xlu0 %1353
        %1355 = vrot.lane.b32.xlu0 %v1111, 64
        %v1356 = vpop.permute.xlu0 %1355
        %1357 = vrot.lane.b32.xlu0 %v1113, 64
        %v1358 = vpop.permute.xlu0 %1357
        %1367 = vst.msk [vmem:[#allocation4 + $0x8] sm:$0xff] %vm1244, %v1344
        %1368 = vst.msk [vmem:[#allocation4 + $0x20] sm:$0xff] %vm1244, %v1346
        %1369 = vst.msk [vmem:[#allocation4 + $0x38] sm:$0xff] %vm1244, %v1348
        %1370 = vst.msk [vmem:[#allocation4 + $0x50] sm:$0xff] %vm1244, %v1350
        %1371 = vst.msk [vmem:[#allocation4 + $0x68] sm:$0xff] %vm1244, %v1352
        %1372 = vst.msk [vmem:[#allocation4 + $0x80] sm:$0xff] %vm1244, %v1354
        %1373 = vst.msk [vmem:[#allocation4 + $0x98] sm:$0xff] %vm1244, %v1356
        %1374 = vst.msk [vmem:[#allocation4 + $0xb0] sm:$0xff] %vm1244, %v1358
        %v1376 = vrot.slane %v1113, 1
        %v1377 = vrot.slane %v1114, 1
        %v1378 = vsel %vm577, %v1376, %v1377
        %1379 = vrot.lane.b32.xlu0 %v1147, 96
        %v1380 = vpop.permute.xlu0 %1379
        %1381 = vrot.lane.b32.xlu0 %v1150, 96
        %v1382 = vpop.permute.xlu0 %1381
        %1383 = vrot.lane.b32.xlu0 %v1153, 96
        %v1384 = vpop.permute.xlu0 %1383
        %1385 = vrot.lane.b32.xlu0 %v1156, 96
        %v1386 = vpop.permute.xlu0 %1385
        %1387 = vrot.lane.b32.xlu0 %v1159, 96
        %v1388 = vpop.permute.xlu0 %1387
        %1389 = vrot.lane.b32.xlu0 %v1162, 96
        %v1390 = vpop.permute.xlu0 %1389
        %1391 = vrot.lane.b32.xlu0 %v1290, 96
        %v1392 = vpop.permute.xlu0 %1391
        %1393 = vrot.lane.b32.xlu0 %v1378, 96
        %v1394 = vpop.permute.xlu0 %1393
        %1403 = vst.msk [vmem:[#allocation4 + $0x8] sm:$0xff] %vm1278, %v1380
        %1404 = vst.msk [vmem:[#allocation4 + $0x20] sm:$0xff] %vm1278, %v1382
        %1405 = vst.msk [vmem:[#allocation4 + $0x38] sm:$0xff] %vm1278, %v1384
        %1406 = vst.msk [vmem:[#allocation4 + $0x50] sm:$0xff] %vm1278, %v1386
        %1407 = vst.msk [vmem:[#allocation4 + $0x68] sm:$0xff] %vm1278, %v1388
        %1408 = vst.msk [vmem:[#allocation4 + $0x80] sm:$0xff] %vm1278, %v1390
        %1409 = vst.msk [vmem:[#allocation4 + $0x98] sm:$0xff] %vm1278, %v1392
        %1410 = vst.msk [vmem:[#allocation4 + $0xb0] sm:$0xff] %vm1278, %v1394
        %v1411 = vrot.slane %v1113, 2
        %v1412 = vrot.slane %v1114, 2
        %v1413 = vsel %vm635, %v1411, %v1412
        %1422 = vst.msk [vmem:[#allocation4 + $0x10] sm:$0xff] %vm1044, %v1204
        %1423 = vst.msk [vmem:[#allocation4 + $0x28] sm:$0xff] %vm1044, %v1207
        %1424 = vst.msk [vmem:[#allocation4 + $0x40] sm:$0xff] %vm1044, %v1210
        %1425 = vst.msk [vmem:[#allocation4 + $0x58] sm:$0xff] %vm1044, %v1213
        %1426 = vst.msk [vmem:[#allocation4 + $0x70] sm:$0xff] %vm1044, %v1216
        %1427 = vst.msk [vmem:[#allocation4 + $0x88] sm:$0xff] %vm1044, %v1219
        %1428 = vst.msk [vmem:[#allocation4 + $0xa0] sm:$0xff] %vm1044, %v1309
        %1429 = vst.msk [vmem:[#allocation4 + $0xb8] sm:$0xff] %vm1044, %v1413
        %v1430 = vld [vmem:[%s3] sm:$0xf]
        %v1431 = vld [vmem:[%s3 + $0x4] sm:$0xf]
        %v1432 = vld [vmem:[%s3 + $0x8] sm:$0xf]
        %v1433 = vld [vmem:[%s3 + $0xc] sm:$0xf]
        %v1434 = vld [vmem:[%s3 + $0x10] sm:$0xf]
        %v1435 = vld [vmem:[%s3 + $0x14] sm:$0xf]
        %v1436 = vld [vmem:[%s3 + $0x18] sm:$0xf]
        %v1437 = vld [vmem:[%s3 + $0x1c] sm:$0xf]
        %v1438 = vld [vmem:[%s3 + $0x20] sm:$0xf]
        %v1439 = vld [vmem:[%s3 + $0x24] sm:$0xf]
        %v1440 = vld [vmem:[%s3 + $0x28] sm:$0xf]
        %v1441 = vld [vmem:[%s3 + $0x2c] sm:$0xf]
        %v1442 = vld [vmem:[%s3 + $0x30] sm:$0xf]
        %v1443 = vld [vmem:[%s3 + $0x34] sm:$0xf]
        %v1444 = vld [vmem:[%s3 + $0x38] sm:$0xf]
        %v1445 = vld [vmem:[%s3 + $0x3c] sm:$0xf]
        %v1446 = vld [vmem:[%s3 + $0x40] sm:$0xf]
        %v1447 = vld [vmem:[%s3 + $0x44] sm:$0xf]
        %v1448 = vld [vmem:[%s3 + $0x48] sm:$0xf]
        %v1449 = vld [vmem:[%s3 + $0x4c] sm:$0xf]
        %v1450 = vld [vmem:[%s3 + $0x50] sm:$0xf]
        %v1451 = vld [vmem:[%s3 + $0x54] sm:$0xf]
        %v1452 = vld [vmem:[%s3 + $0x58] sm:$0xf]
        %v1453 = vld [vmem:[%s3 + $0x5c] sm:$0xf]
        %v1454 = vld [vmem:[%s3 + $0x60] sm:$0xf]
        %v1455 = vld [vmem:[%s3 + $0x64] sm:$0xf]
        %v1456 = vld [vmem:[%s3 + $0x68] sm:$0xf]
        %v1457 = vld [vmem:[%s3 + $0x6c] sm:$0xf]
        %v1458 = vld [vmem:[%s3 + $0x70] sm:$0xf]
        %v1459 = vld [vmem:[%s3 + $0x74] sm:$0xf]
        %v1460 = vld [vmem:[%s3 + $0x78] sm:$0xf]
        %v1461 = vld [vmem:[%s3 + $0x7c] sm:$0xf]
        %v1462 = vld [vmem:[%s3 + $0x80] sm:$0xf]
        %v1463 = vld [vmem:[%s3 + $0x84] sm:$0xf]
        %v1464 = vld [vmem:[%s3 + $0x88] sm:$0xf]
        %v1465 = vld [vmem:[%s3 + $0x8c] sm:$0xf]
        %v1466 = vld [vmem:[#allocation4] sm:$0xff]
        %v1467 = vld [vmem:[#allocation4 + $0x8] sm:$0xff]
        %v1468 = vld [vmem:[#allocation4 + $0x10] sm:$0xff]
        %v1469 = vld [vmem:[#allocation4 + $0x18] sm:$0xff]
        %v1470 = vld [vmem:[#allocation4 + $0x20] sm:$0xff]
        %v1471 = vld [vmem:[#allocation4 + $0x28] sm:$0xff]
        %v1472 = vld [vmem:[#allocation4 + $0x30] sm:$0xff]
        %v1473 = vld [vmem:[#allocation4 + $0x38] sm:$0xff]
        %v1474 = vld [vmem:[#allocation4 + $0x40] sm:$0xff]
        %v1475 = vld [vmem:[#allocation4 + $0x48] sm:$0xff]
        %v1476 = vld [vmem:[#allocation4 + $0x50] sm:$0xff]
        %v1477 = vld [vmem:[#allocation4 + $0x58] sm:$0xff]
        %v1478 = vld [vmem:[#allocation4 + $0x60] sm:$0xff]
        %v1479 = vld [vmem:[#allocation4 + $0x68] sm:$0xff]
        %v1480 = vld [vmem:[#allocation4 + $0x70] sm:$0xff]
        %v1481 = vld [vmem:[#allocation4 + $0x78] sm:$0xff]
        %v1482 = vld [vmem:[#allocation4 + $0x80] sm:$0xff]
        %v1483 = vld [vmem:[#allocation4 + $0x88] sm:$0xff]
        %v1484 = vld [vmem:[#allocation4 + $0x90] sm:$0xff]
        %v1485 = vld [vmem:[#allocation4 + $0x98] sm:$0xff]
        %v1486 = vld [vmem:[#allocation4 + $0xa0] sm:$0xff]
        %v1487 = vld [vmem:[#allocation4 + $0xa8] sm:$0xff]
        %v1488 = vld [vmem:[#allocation4 + $0xb0] sm:$0xff]
        %v1489 = vld [vmem:[#allocation4 + $0xb8] sm:$0xff]
        %v1490 = vpack.c.bf16 %v1469, %v1466
        %v1491 = vpack.c.bf16 %v1470, %v1467
        %v1492 = vpack.c.bf16 %v1471, %v1468
        %v1493 = vpack.c.bf16 %v1475, %v1472
        %v1494 = vpack.c.bf16 %v1476, %v1473
        %v1495 = vpack.c.bf16 %v1477, %v1474
        %v1496 = vpack.c.bf16 %v1481, %v1478
        %v1497 = vpack.c.bf16 %v1482, %v1479
        %v1498 = vpack.c.bf16 %v1483, %v1480
        %v1499 = vpack.c.bf16 %v1487, %v1484
        %v1500 = vpack.c.bf16 %v1488, %v1485
        %v1501 = vpack.c.bf16 %v1489, %v1486
        %v1502 = vld [vmem:[%s4] sm:$0x1]
        %v1504 = vlaneseq
        %v1505 = vshrl.u32 %v1504, 7
        %v1506 = vsub.s32 0, %v1505
        %v1507 = vrot.slane %v1502, %v1506
        %v1545 = vunpack.c.l.b16 %v1430
        %v1546 = vunpack.c.l.b16 %v1431
        %v1547 = vunpack.c.l.b16 %v1432
        %v1548 = vunpack.c.l.b16 %v1433
        %v1549 = vunpack.c.l.b16 %v1434
        %v1550 = vunpack.c.l.b16 %v1435
        %v1551 = vunpack.c.l.b16 %v1436
        %v1552 = vunpack.c.l.b16 %v1437
        %v1553 = vunpack.c.l.b16 %v1438
        %v1554 = vunpack.c.l.b16 %v1439
        %v1555 = vunpack.c.l.b16 %v1440
        %v1556 = vunpack.c.l.b16 %v1441
        %v1557 = vunpack.c.l.b16 %v1442
        %v1558 = vunpack.c.l.b16 %v1443
        %v1559 = vunpack.c.l.b16 %v1444
        %v1560 = vunpack.c.l.b16 %v1445
        %v1561 = vunpack.c.l.b16 %v1446
        %v1562 = vunpack.c.l.b16 %v1447
        %v1563 = vunpack.c.l.b16 %v1448
        %v1564 = vunpack.c.l.b16 %v1449
        %v1565 = vunpack.c.l.b16 %v1450
        %v1566 = vunpack.c.l.b16 %v1451
        %v1567 = vunpack.c.l.b16 %v1452
        %v1568 = vunpack.c.l.b16 %v1453
        %v1569 = vunpack.c.l.b16 %v1454
        %v1570 = vunpack.c.l.b16 %v1455
        %v1571 = vunpack.c.l.b16 %v1456
        %v1572 = vunpack.c.l.b16 %v1457
        %v1573 = vunpack.c.l.b16 %v1458
        %v1574 = vunpack.c.l.b16 %v1459
        %v1575 = vunpack.c.l.b16 %v1460
        %v1576 = vunpack.c.l.b16 %v1461
        %v1577 = vunpack.c.l.b16 %v1462
        %v1578 = vunpack.c.l.b16 %v1463
        %v1579 = vunpack.c.l.b16 %v1464
        %v1580 = vunpack.c.l.b16 %v1465
        %v1581 = vpack.c.b16 %v1546, %v1545
        %v1582 = vpack.c.b16 %v1548, %v1547
        %v1583 = vpack.c.b16 %v1550, %v1549
        %v1584 = vpack.c.b16 %v1552, %v1551
        %v1585 = vpack.c.b16 %v1554, %v1553
        %v1586 = vpack.c.b16 %v1556, %v1555
        %v1587 = vpack.c.b16 %v1558, %v1557
        %v1588 = vpack.c.b16 %v1560, %v1559
        %v1589 = vpack.c.b16 %v1562, %v1561
        %v1590 = vpack.c.b16 %v1564, %v1563
        %v1591 = vpack.c.b16 %v1566, %v1565
        %v1592 = vpack.c.b16 %v1568, %v1567
        %v1593 = vpack.c.b16 %v1570, %v1569
        %v1594 = vpack.c.b16 %v1572, %v1571
        %v1595 = vpack.c.b16 %v1574, %v1573
        %v1596 = vpack.c.b16 %v1576, %v1575
        %v1597 = vpack.c.b16 %v1578, %v1577
        %v1598 = vpack.c.b16 %v1580, %v1579
        %v1618 = vsel %vm1044, %v1492, 0
        %v1621 = vsel %vm1044, %v1495, 0
        %v1624 = vsel %vm1044, %v1498, 0
        %v1627 = vsel %vm1044, %v1501, 0
        %1629 = vmatprep.subr.bf16.mxu0 0
        %1630 = vmatpush1.bf16.msra.mxu0 %v1581
        %1631 = vmatprep.subr.bf16.mxu0 0
        %1632 = vmatpush1.bf16.msra.mxu0 %v1582
        %1633 = vmatprep.subr.bf16.mxu0 0
        %1634 = vmatpush1.bf16.msra.mxu0 %v1583
        %1635 = vmatprep.subr.bf16.mxu0 0
        %1636 = vmatpush1.bf16.msra.mxu0 %v1584
        %1637 = vmatprep.subr.bf16.mxu0 0
        %1638 = vmatpush1.bf16.msra.mxu0 %v1585
        %1639 = vmatprep.subr.bf16.mxu0 0
        %1640 = vmatpush1.bf16.msra.mxu0 %v1586
        %1641 = vmatprep.subr.bf16.mxu0 0
        %1642 = vmatpush1.bf16.msra.mxu0 %v1587
        %1643 = vmatprep.subr.bf16.mxu0 0
        %1644 = vmatpush1.bf16.msra.mxu0 %v1588
        %1645 = vmatprep.subr.bf16.mxu0 0
        %1646 = vmatpush1.bf16.msra.mxu0 %v1589
        %1647 = vmatprep.subr.bf16.mxu0 0
        %1648 = vmatpush1.bf16.msra.mxu0 %v1590
        %1649 = vmatprep.subr.bf16.mxu0 0
        %1650 = vmatpush1.bf16.msra.mxu0 %v1591
        %1651 = vmatprep.subr.bf16.mxu0 0
        %1652 = vmatpush1.bf16.msra.mxu0 %v1592
        %1653 = vmatprep.subr.bf16.mxu0 0
        %1654 = vmatpush1.bf16.msra.mxu0 %v1593
        %1655 = vmatprep.subr.bf16.mxu0 0
        %1656 = vmatpush1.bf16.msra.mxu0 %v1594
        %1657 = vmatprep.subr.bf16.mxu0 0
        %1658 = vmatpush1.bf16.msra.mxu0 %v1595
        %1659 = vmatprep.subr.bf16.mxu0 0
        %1660 = vmatpush1.bf16.msra.mxu0 %v1596
        %1661 = vmatprep.mubr.bf16.mxu0 %v1491
        %1662 = vmatmul.mubr.bf16.gmra.mrb[0].mxu0 %v1490
        %v1663 = vpop.f32.mrb[0].mxu0
        %v1664 = vadd.f32 %v1507, %v1663
        %v1665 = vpop.f32.mrb[0].mxu0
        %v1666 = vpop.f32.mrb[0].mxu0
        %v1667 = vadd.f32 %v1507, %v1666
        %v1668 = vpop.f32.mrb[0].mxu0
        %1669 = vmatprep.mubr.bf16.mxu0 %v1494
        %1670 = vmatmul.mubr.bf16.gmra.mrb[0].mxu0 %v1493
        %v1671 = vpop.f32.mrb[0].mxu0
        %v1672 = vadd.f32 %v1507, %v1671
        %v1673 = vpop.f32.mrb[0].mxu0
        %v1674 = vpop.f32.mrb[0].mxu0
        %v1675 = vadd.f32 %v1507, %v1674
        %v1676 = vpop.f32.mrb[0].mxu0
        %1677 = vmatprep.mubr.bf16.mxu0 %v1497
        %1678 = vmatmul.mubr.bf16.gmra.mrb[0].mxu0 %v1496
        %v1679 = vpop.f32.mrb[0].mxu0
        %v1680 = vadd.f32 %v1507, %v1679
        %v1681 = vpop.f32.mrb[0].mxu0
        %v1682 = vpop.f32.mrb[0].mxu0
        %v1683 = vadd.f32 %v1507, %v1682
        %v1684 = vpop.f32.mrb[0].mxu0
        %1685 = vmatprep.mubr.bf16.mxu0 %v1500
        %1686 = vmatmul.mubr.bf16.gmra.mrb[0].mxu0 %v1499
        %v1687 = vpop.f32.mrb[0].mxu0
        %v1688 = vadd.f32 %v1507, %v1687
        %v1689 = vpop.f32.mrb[0].mxu0
        %v1690 = vpop.f32.mrb[0].mxu0
        %v1691 = vadd.f32 %v1507, %v1690
        %v1692 = vpop.f32.mrb[0].mxu0
        %1693 = vdwg.mxu0
        %1694 = vmatprep.subr.bf16.mxu0 0
        %1695 = vmatpush1.bf16.msra.mxu0 %v1597
        %1696 = vmatprep.subr.bf16.mxu0 0
        %1697 = vmatpush1.bf16.msra.mxu0 %v1598
        %1698 = vmatprep.subr.bf16.mxu0 0
        %1699 = vmatpush1.bf16.msra.mxu0 0
        %1700 = vmatprep.subr.bf16.mxu0 0
        %1701 = vmatpush1.bf16.msra.mxu0 0
        %1702 = vmatprep.subr.bf16.mxu0 0
        %1703 = vmatpush1.bf16.msra.mxu0 0
        %1704 = vmatprep.subr.bf16.mxu0 0
        %1705 = vmatpush1.bf16.msra.mxu0 0
        %1706 = vmatprep.subr.bf16.mxu0 0
        %1707 = vmatpush1.bf16.msra.mxu0 0
        %1708 = vmatprep.subr.bf16.mxu0 0
        %1709 = vmatpush1.bf16.msra.mxu0 0
        %1710 = vmatprep.subr.bf16.mxu0 0
        %1711 = vmatpush1.bf16.msra.mxu0 0
        %1712 = vmatprep.subr.bf16.mxu0 0
        %1713 = vmatpush1.bf16.msra.mxu0 0
        %1714 = vmatprep.subr.bf16.mxu0 0
        %1715 = vmatpush1.bf16.msra.mxu0 0
        %1716 = vmatprep.subr.bf16.mxu0 0
        %1717 = vmatpush1.bf16.msra.mxu0 0
        %1718 = vmatprep.subr.bf16.mxu0 0
        %1719 = vmatpush1.bf16.msra.mxu0 0
        %1720 = vmatprep.subr.bf16.mxu0 0
        %1721 = vmatpush1.bf16.msra.mxu0 0
        %1722 = vmatprep.subr.bf16.mxu0 0
        %1723 = vmatpush1.bf16.msra.mxu0 0
        %1724 = vmatprep.subr.bf16.mxu0 0
        %1725 = vmatpush1.bf16.msra.mxu0 0
        %1726 = vmatprep.mubr.bf16.mxu0 0
        %1727 = vmatmul.mubr.bf16.gmra.mrb[0].mxu0 %v1618
        %v1728 = vpop.f32.mrb[0].mxu0
        %v1729 = vadd.f32 %v1664, %v1728
        %v1730 = vpop.f32.mrb[0].mxu0
        %v1731 = vpop.f32.mrb[0].mxu0
        %v1732 = vadd.f32 %v1667, %v1731
        %v1733 = vpop.f32.mrb[0].mxu0
        %1734 = vmatprep.mubr.bf16.mxu0 0
        %1735 = vmatmul.mubr.bf16.gmra.mrb[0].mxu0 %v1621
        %v1736 = vpop.f32.mrb[0].mxu0
        %v1737 = vadd.f32 %v1672, %v1736
        %v1738 = vpop.f32.mrb[0].mxu0
        %v1739 = vpop.f32.mrb[0].mxu0
        %v1740 = vadd.f32 %v1675, %v1739
        %v1741 = vpop.f32.mrb[0].mxu0
        %1742 = vmatprep.mubr.bf16.mxu0 0
        %1743 = vmatmul.mubr.bf16.gmra.mrb[0].mxu0 %v1624
        %v1744 = vpop.f32.mrb[0].mxu0
        %v1745 = vadd.f32 %v1680, %v1744
        %v1746 = vpop.f32.mrb[0].mxu0
        %v1747 = vpop.f32.mrb[0].mxu0
        %v1748 = vadd.f32 %v1683, %v1747
        %v1749 = vpop.f32.mrb[0].mxu0
        %1750 = vmatprep.mubr.bf16.mxu0 0
        %1751 = vmatmul.mubr.bf16.gmra.mrb[0].mxu0 %v1627
        %v1752 = vpop.f32.mrb[0].mxu0
        %v1753 = vadd.f32 %v1688, %v1752
        %v1754 = vpop.f32.mrb[0].mxu0
        %v1755 = vpop.f32.mrb[0].mxu0
        %v1756 = vadd.f32 %v1691, %v1755
        %v1757 = vpop.f32.mrb[0].mxu0
        %1758 = vdwg.mxu0
        %v1759 = vmax.f32 %v1729, 0.0
        %v1760 = vmax.f32 %v1732, 0.0
        %v1761 = vmax.f32 %v1737, 0.0
        %v1762 = vmax.f32 %v1740, 0.0
        %v1763 = vmax.f32 %v1745, 0.0
        %v1764 = vmax.f32 %v1748, 0.0
        %v1765 = vmax.f32 %v1753, 0.0
        %v1766 = vmax.f32 %v1756, 0.0
        %v1767 = vpack.c.bf16 %v1760, %v1759
        %v1768 = vpack.c.bf16 %v1762, %v1761
        %v1769 = vpack.c.bf16 %v1764, %v1763
        %v1770 = vpack.c.bf16 %v1766, %v1765
        %v1771 = vld [vmem:[%s5] sm:$0xf]
        %v1772 = vld [vmem:[%s5 + $0x4] sm:$0xf]
        %v1773 = vld [vmem:[%s6] sm:$0x1]
        %v1775 = vlaneseq
        %v1776 = vshrl.u32 %v1775, 7
        %v1777 = vsub.s32 0, %v1776
        %v1778 = vrot.slane %v1773, %v1777
        %v1782 = vunpack.c.l.b16 %v1771
        %v1783 = vunpack.c.l.b16 %v1772
        %v1784 = vpack.c.b16 %v1783, %v1782
        %vm1786 = vcmask 130048
        %v1788 = vsel %vm1786, %v1767, 0
        %v1791 = vsel %vm1786, %v1768, 0
        %v1794 = vsel %vm1786, %v1769, 0
        %v1797 = vsel %vm1786, %v1770, 0
        %1799 = vmatprep.subr.bf16.mxu0 0
        %1800 = vmatpush1.bf16.msra.mxu0 %v1784
        %1801 = vmatprep.subr.bf16.mxu0 0
        %1802 = vmatpush1.bf16.msra.mxu0 0
        %1803 = vmatprep.subr.bf16.mxu0 0
        %1804 = vmatpush1.bf16.msra.mxu0 0
        %1805 = vmatprep.subr.bf16.mxu0 0
        %1806 = vmatpush1.bf16.msra.mxu0 0
        %1807 = vmatprep.subr.bf16.mxu0 0
        %1808 = vmatpush1.bf16.msra.mxu0 0
        %1809 = vmatprep.subr.bf16.mxu0 0
        %1810 = vmatpush1.bf16.msra.mxu0 0
        %1811 = vmatprep.subr.bf16.mxu0 0
        %1812 = vmatpush1.bf16.msra.mxu0 0
        %1813 = vmatprep.subr.bf16.mxu0 0
        %1814 = vmatpush1.bf16.msra.mxu0 0
        %1815 = vmatprep.subr.bf16.mxu0 0
        %1816 = vmatpush1.bf16.msra.mxu0 0
        %1817 = vmatprep.subr.bf16.mxu0 0
        %1818 = vmatpush1.bf16.msra.mxu0 0
        %1819 = vmatprep.subr.bf16.mxu0 0
        %1820 = vmatpush1.bf16.msra.mxu0 0
        %1821 = vmatprep.subr.bf16.mxu0 0
        %1822 = vmatpush1.bf16.msra.mxu0 0
        %1823 = vmatprep.subr.bf16.mxu0 0
        %1824 = vmatpush1.bf16.msra.mxu0 0
        %1825 = vmatprep.subr.bf16.mxu0 0
        %1826 = vmatpush1.bf16.msra.mxu0 0
        %1827 = vmatprep.subr.bf16.mxu0 0
        %1828 = vmatpush1.bf16.msra.mxu0 0
        %1829 = vmatprep.subr.bf16.mxu0 0
        %1830 = vmatpush1.bf16.msra.mxu0 0
        %1831 = vmatprep.mubr.bf16.mxu0 0
        %1832 = vmatmul.mubr.bf16.gmra.mrb[0].mxu0 %v1788
        %v1833 = vpop.f32.mrb[0].mxu0
        %v1834 = vadd.f32 %v1778, %v1833
        %v1835 = vpop.f32.mrb[0].mxu0
        %v1836 = vpop.f32.mrb[0].mxu0
        %v1837 = vadd.f32 %v1778, %v1836
        %v1838 = vpop.f32.mrb[0].mxu0
        %1839 = vmatprep.mubr.bf16.mxu0 0
        %1840 = vmatmul.mubr.bf16.gmra.mrb[0].mxu0 %v1791
        %v1841 = vpop.f32.mrb[0].mxu0
        %v1842 = vadd.f32 %v1778, %v1841
        %v1843 = vpop.f32.mrb[0].mxu0
        %v1844 = vpop.f32.mrb[0].mxu0
        %v1845 = vadd.f32 %v1778, %v1844
        %v1846 = vpop.f32.mrb[0].mxu0
        %1847 = vmatprep.mubr.bf16.mxu0 0
        %1848 = vmatmul.mubr.bf16.gmra.mrb[0].mxu0 %v1794
        %v1849 = vpop.f32.mrb[0].mxu0
        %v1850 = vadd.f32 %v1778, %v1849
        %v1851 = vpop.f32.mrb[0].mxu0
        %v1852 = vpop.f32.mrb[0].mxu0
        %v1853 = vadd.f32 %v1778, %v1852
        %v1854 = vpop.f32.mrb[0].mxu0
        %1855 = vmatprep.mubr.bf16.mxu0 0
        %1856 = vmatmul.mubr.bf16.gmra.mrb[0].mxu0 %v1797
        %v1857 = vpop.f32.mrb[0].mxu0
        %v1858 = vadd.f32 %v1778, %v1857
        %v1859 = vpop.f32.mrb[0].mxu0
        %v1860 = vpop.f32.mrb[0].mxu0
        %v1861 = vadd.f32 %v1778, %v1860
        %v1862 = vpop.f32.mrb[0].mxu0
        %1863 = vdwg.mxu0
        %v1880 = vrot.slane %v1077, 1
        %v1881 = vrot.slane %v1078, 1
        %v1882 = vsel %vm577, %v1880, %v1881
        %v1883 = vrot.slane %v1079, 1
        %v1884 = vrot.slane %v1080, 1
        %v1885 = vsel %vm577, %v1883, %v1884
        %v1886 = vrot.slane %v1081, 1
        %v1887 = vrot.slane %v1082, 1
        %v1888 = vsel %vm577, %v1886, %v1887
        %v1889 = vrot.slane %v1083, 1
        %v1890 = vrot.slane %v1084, 1
        %v1891 = vsel %vm577, %v1889, %v1890
        %v1892 = vrot.slane %v1085, 1
        %v1893 = vrot.slane %v1086, 1
        %v1894 = vsel %vm577, %v1892, %v1893
        %v1895 = vrot.slane %v1087, 1
        %v1896 = vrot.slane %v1088, 1
        %v1897 = vsel %vm577, %v1895, %v1896
        %v1898 = vrot.slane %v1089, 1
        %v1899 = vrot.slane %v1090, 1
        %v1900 = vsel %vm577, %v1898, %v1899
        %v1901 = vrot.slane %v1091, 1
        %v1902 = vrot.slane %v1092, 1
        %v1903 = vsel %vm577, %v1901, %v1902
        %v1912 = vadd.f32 %v1834, %v1882
        %v1913 = vadd.f32 %v1837, %v1885
        %v1914 = vadd.f32 %v1842, %v1888
        %v1915 = vadd.f32 %v1845, %v1891
        %v1916 = vadd.f32 %v1850, %v1894
        %v1917 = vadd.f32 %v1853, %v1897
        %v1918 = vadd.f32 %v1858, %v1900
        %v1919 = vadd.f32 %v1861, %v1903
        %1920 = vst.msk [vmem:[%s1066 + $0x1] sm:$0xff] %vm1044, %v1912
        %1921 = vst.msk [vmem:[%s1066 + $0x11] sm:$0xff] %vm1044, %v1913
        %1922 = vst.msk [vmem:[%s1066 + $0x21] sm:$0xff] %vm1044, %v1914
        %1923 = vst.msk [vmem:[%s1066 + $0x31] sm:$0xff] %vm1044, %v1915
        %1924 = vst.msk [vmem:[%s1066 + $0x41] sm:$0xff] %vm1044, %v1916
        %1925 = vst.msk [vmem:[%s1066 + $0x51] sm:$0xff] %vm1044, %v1917
        %1926 = vst.msk [vmem:[%s1066 + $0x61] sm:$0xff] %vm1044, %v1918
        %1927 = vst.msk [vmem:[%s1066 + $0x71] sm:$0xff] %vm1044, %v1919
        %v1928 = vld [vmem:[#allocation3] sm:$0xff]
        %v1929 = vld [vmem:[#allocation3 + $0x8] sm:$0x3]
        %v1930 = vld [vmem:[#allocation3 + $0x10] sm:$0xff]
        %v1931 = vld [vmem:[#allocation3 + $0x18] sm:$0x3]
        %v1932 = vld [vmem:[#allocation3 + $0x20] sm:$0xff]
        %v1933 = vld [vmem:[#allocation3 + $0x28] sm:$0x3]
        %v1934 = vld [vmem:[#allocation3 + $0x30] sm:$0xff]
        %v1935 = vld [vmem:[#allocation3 + $0x38] sm:$0x3]
        %v1936 = vld [vmem:[#allocation3 + $0x40] sm:$0xff]
        %v1937 = vld [vmem:[#allocation3 + $0x48] sm:$0x3]
        %v1938 = vld [vmem:[#allocation3 + $0x50] sm:$0xff]
        %v1939 = vld [vmem:[#allocation3 + $0x58] sm:$0x3]
        %v1940 = vld [vmem:[#allocation3 + $0x60] sm:$0xff]
        %v1941 = vld [vmem:[#allocation3 + $0x68] sm:$0x3]
        %v1942 = vld [vmem:[#allocation3 + $0x70] sm:$0xff]
        %v1943 = vld [vmem:[#allocation3 + $0x78] sm:$0x3]
        %v1944 = vld [vmem:[#allocation3 + $0x80] sm:$0xff]
        %v1945 = vld [vmem:[#allocation3 + $0x88] sm:$0x3]
        %v1946 = vld [vmem:[#allocation3 + $0x90] sm:$0xff]
        %v1947 = vld [vmem:[#allocation3 + $0x98] sm:$0x3]
        %v1948 = vmax.f32 %v1928, 0.0
        %v1949 = vmax.f32 %v1929, 0.0
        %v1950 = vmax.f32 %v1930, 0.0
        %v1951 = vmax.f32 %v1931, 0.0
        %v1952 = vmax.f32 %v1932, 0.0
        %v1953 = vmax.f32 %v1933, 0.0
        %v1954 = vmax.f32 %v1934, 0.0
        %v1955 = vmax.f32 %v1935, 0.0
        %v1956 = vmax.f32 %v1936, 0.0
        %v1957 = vmax.f32 %v1937, 0.0
        %v1958 = vmax.f32 %v1938, 0.0
        %v1959 = vmax.f32 %v1939, 0.0
        %v1960 = vmax.f32 %v1940, 0.0
        %v1961 = vmax.f32 %v1941, 0.0
        %v1962 = vmax.f32 %v1942, 0.0
        %v1963 = vmax.f32 %v1943, 0.0
        %v1964 = vmax.f32 %v1944, 0.0
        %v1965 = vmax.f32 %v1945, 0.0
        %v1966 = vmax.f32 %v1946, 0.0
        %v1967 = vmax.f32 %v1947, 0.0
        %1968 = vst.msk [vmem:[#allocation4] sm:$0xff] %vm1044, %v1948
        %1969 = vst.msk [vmem:[#allocation4 + $0x18] sm:$0xff] %vm1044, %v1950
        %1970 = vst.msk [vmem:[#allocation4 + $0x30] sm:$0xff] %vm1044, %v1952
        %1971 = vst.msk [vmem:[#allocation4 + $0x48] sm:$0xff] %vm1044, %v1954
        %1972 = vst.msk [vmem:[#allocation4 + $0x60] sm:$0xff] %vm1044, %v1956
        %1973 = vst.msk [vmem:[#allocation4 + $0x78] sm:$0xff] %vm1044, %v1958
        %1974 = vst.msk [vmem:[#allocation4 + $0x90] sm:$0xff] %vm1044, %v1960
        %1975 = vst.msk [vmem:[#allocation4 + $0xa8] sm:$0xff] %vm1044, %v1962
        %v1992 = vrot.slane %v1948, 1
        %v1993 = vrot.slane %v1949, 1
        %v1994 = vsel %vm577, %v1992, %v1993
        %v1995 = vrot.slane %v1950, 1
        %v1996 = vrot.slane %v1951, 1
        %v1997 = vsel %vm577, %v1995, %v1996
        %v1998 = vrot.slane %v1952, 1
        %v1999 = vrot.slane %v1953, 1
        %v2000 = vsel %vm577, %v1998, %v1999
        %v2001 = vrot.slane %v1954, 1
        %v2002 = vrot.slane %v1955, 1
        %v2003 = vsel %vm577, %v2001, %v2002
        %v2004 = vrot.slane %v1956, 1
        %v2005 = vrot.slane %v1957, 1
        %v2006 = vsel %vm577, %v2004, %v2005
        %v2007 = vrot.slane %v1958, 1
        %v2008 = vrot.slane %v1959, 1
        %v2009 = vsel %vm577, %v2007, %v2008
        %v2010 = vrot.slane %v1960, 1
        %v2011 = vrot.slane %v1961, 1
        %v2012 = vsel %vm577, %v2010, %v2011
        %v2013 = vrot.slane %v1962, 1
        %v2014 = vrot.slane %v1963, 1
        %v2015 = vsel %vm577, %v2013, %v2014
        %2016 = vrot.lane.b32.xlu0 %v1994, 32
        %v2017 = vpop.permute.xlu0 %2016
        %2018 = vrot.lane.b32.xlu0 %v1997, 32
        %v2019 = vpop.permute.xlu0 %2018
        %2020 = vrot.lane.b32.xlu0 %v2000, 32
        %v2021 = vpop.permute.xlu0 %2020
        %2022 = vrot.lane.b32.xlu0 %v2003, 32
        %v2023 = vpop.permute.xlu0 %2022
        %2024 = vrot.lane.b32.xlu0 %v2006, 32
        %v2025 = vpop.permute.xlu0 %2024
        %2026 = vrot.lane.b32.xlu0 %v2009, 32
        %v2027 = vpop.permute.xlu0 %2026
        %2028 = vrot.lane.b32.xlu0 %v2012, 32
        %v2029 = vpop.permute.xlu0 %2028
        %2030 = vrot.lane.b32.xlu0 %v2015, 32
        %v2031 = vpop.permute.xlu0 %2030
        %2040 = vst.msk [vmem:[#allocation4] sm:$0xff] %vm1187, %v2017
        %2041 = vst.msk [vmem:[#allocation4 + $0x18] sm:$0xff] %vm1187, %v2019
        %2042 = vst.msk [vmem:[#allocation4 + $0x30] sm:$0xff] %vm1187, %v2021
        %2043 = vst.msk [vmem:[#allocation4 + $0x48] sm:$0xff] %vm1187, %v2023
        %2044 = vst.msk [vmem:[#allocation4 + $0x60] sm:$0xff] %vm1187, %v2025
        %2045 = vst.msk [vmem:[#allocation4 + $0x78] sm:$0xff] %vm1187, %v2027
        %2046 = vst.msk [vmem:[#allocation4 + $0x90] sm:$0xff] %vm1187, %v2029
        %2047 = vst.msk [vmem:[#allocation4 + $0xa8] sm:$0xff] %vm1187, %v2031
        %v2048 = vrot.slane %v1948, 2
        %v2049 = vrot.slane %v1949, 2
        %v2050 = vsel %vm635, %v2048, %v2049
        %v2051 = vrot.slane %v1950, 2
        %v2052 = vrot.slane %v1951, 2
        %v2053 = vsel %vm635, %v2051, %v2052
        %v2054 = vrot.slane %v1952, 2
        %v2055 = vrot.slane %v1953, 2
        %v2056 = vsel %vm635, %v2054, %v2055
        %v2057 = vrot.slane %v1954, 2
        %v2058 = vrot.slane %v1955, 2
        %v2059 = vsel %vm635, %v2057, %v2058
        %v2060 = vrot.slane %v1956, 2
        %v2061 = vrot.slane %v1957, 2
        %v2062 = vsel %vm635, %v2060, %v2061
        %v2063 = vrot.slane %v1958, 2
        %v2064 = vrot.slane %v1959, 2
        %v2065 = vsel %vm635, %v2063, %v2064
        %v2066 = vrot.slane %v1960, 2
        %v2067 = vrot.slane %v1961, 2
        %v2068 = vsel %vm635, %v2066, %v2067
        %v2069 = vrot.slane %v1962, 2
        %v2070 = vrot.slane %v1963, 2
        %v2071 = vsel %vm635, %v2069, %v2070
        %2072 = vrot.lane.b32.xlu0 %v2050, 64
        %v2073 = vpop.permute.xlu0 %2072
        %2074 = vrot.lane.b32.xlu0 %v2053, 64
        %v2075 = vpop.permute.xlu0 %2074
        %2076 = vrot.lane.b32.xlu0 %v2056, 64
        %v2077 = vpop.permute.xlu0 %2076
        %2078 = vrot.lane.b32.xlu0 %v2059, 64
        %v2079 = vpop.permute.xlu0 %2078
        %2080 = vrot.lane.b32.xlu0 %v2062, 64
        %v2081 = vpop.permute.xlu0 %2080
        %2082 = vrot.lane.b32.xlu0 %v2065, 64
        %v2083 = vpop.permute.xlu0 %2082
        %2084 = vrot.lane.b32.xlu0 %v2068, 64
        %v2085 = vpop.permute.xlu0 %2084
        %2086 = vrot.lane.b32.xlu0 %v2071, 64
        %v2087 = vpop.permute.xlu0 %2086
        %2096 = vst.msk [vmem:[#allocation4] sm:$0xff] %vm1244, %v2073
        %2097 = vst.msk [vmem:[#allocation4 + $0x18] sm:$0xff] %vm1244, %v2075
        %2098 = vst.msk [vmem:[#allocation4 + $0x30] sm:$0xff] %vm1244, %v2077
        %2099 = vst.msk [vmem:[#allocation4 + $0x48] sm:$0xff] %vm1244, %v2079
        %2100 = vst.msk [vmem:[#allocation4 + $0x60] sm:$0xff] %vm1244, %v2081
        %2101 = vst.msk [vmem:[#allocation4 + $0x78] sm:$0xff] %vm1244, %v2083
        %2102 = vst.msk [vmem:[#allocation4 + $0x90] sm:$0xff] %vm1244, %v2085
        %2103 = vst.msk [vmem:[#allocation4 + $0xa8] sm:$0xff] %vm1244, %v2087
        %2105 = vrot.lane.b32.xlu0 %v1950, 96
        %v2106 = vpop.permute.xlu0 %2105
        %2107 = vrot.lane.b32.xlu0 %v1952, 96
        %v2108 = vpop.permute.xlu0 %2107
        %2109 = vrot.lane.b32.xlu0 %v1954, 96
        %v2110 = vpop.permute.xlu0 %2109
        %2111 = vrot.lane.b32.xlu0 %v1956, 96
        %v2112 = vpop.permute.xlu0 %2111
        %2113 = vrot.lane.b32.xlu0 %v1958, 96
        %v2114 = vpop.permute.xlu0 %2113
        %2115 = vrot.lane.b32.xlu0 %v1960, 96
        %v2116 = vpop.permute.xlu0 %2115
        %2117 = vrot.lane.b32.xlu0 %v1962, 96
        %v2118 = vpop.permute.xlu0 %2117
        %2119 = vrot.lane.b32.xlu0 %v1964, 96
        %v2120 = vpop.permute.xlu0 %2119
        %2129 = vst.msk [vmem:[#allocation4] sm:$0xff] %vm1278, %v2106
        %2130 = vst.msk [vmem:[#allocation4 + $0x18] sm:$0xff] %vm1278, %v2108
        %2131 = vst.msk [vmem:[#allocation4 + $0x30] sm:$0xff] %vm1278, %v2110
        %2132 = vst.msk [vmem:[#allocation4 + $0x48] sm:$0xff] %vm1278, %v2112
        %2133 = vst.msk [vmem:[#allocation4 + $0x60] sm:$0xff] %vm1278, %v2114
        %2134 = vst.msk [vmem:[#allocation4 + $0x78] sm:$0xff] %vm1278, %v2116
        %2135 = vst.msk [vmem:[#allocation4 + $0x90] sm:$0xff] %vm1278, %v2118
        %2136 = vst.msk [vmem:[#allocation4 + $0xa8] sm:$0xff] %vm1278, %v2120
        %v2138 = vrot.slane %v1964, 1
        %v2139 = vrot.slane %v1965, 1
        %v2140 = vsel %vm577, %v2138, %v2139
        %2149 = vst.msk [vmem:[#allocation4 + $0x8] sm:$0xff] %vm1044, %v1997
        %2150 = vst.msk [vmem:[#allocation4 + $0x20] sm:$0xff] %vm1044, %v2000
        %2151 = vst.msk [vmem:[#allocation4 + $0x38] sm:$0xff] %vm1044, %v2003
        %2152 = vst.msk [vmem:[#allocation4 + $0x50] sm:$0xff] %vm1044, %v2006
        %2153 = vst.msk [vmem:[#allocation4 + $0x68] sm:$0xff] %vm1044, %v2009
        %2154 = vst.msk [vmem:[#allocation4 + $0x80] sm:$0xff] %vm1044, %v2012
        %2155 = vst.msk [vmem:[#allocation4 + $0x98] sm:$0xff] %vm1044, %v2015
        %2156 = vst.msk [vmem:[#allocation4 + $0xb0] sm:$0xff] %vm1044, %v2140
        %v2157 = vrot.slane %v1964, 2
        %v2158 = vrot.slane %v1965, 2
        %v2159 = vsel %vm635, %v2157, %v2158
        %2160 = vrot.lane.b32.xlu0 %v2053, 32
        %v2161 = vpop.permute.xlu0 %2160
        %2162 = vrot.lane.b32.xlu0 %v2056, 32
        %v2163 = vpop.permute.xlu0 %2162
        %2164 = vrot.lane.b32.xlu0 %v2059, 32
        %v2165 = vpop.permute.xlu0 %2164
        %2166 = vrot.lane.b32.xlu0 %v2062, 32
        %v2167 = vpop.permute.xlu0 %2166
        %2168 = vrot.lane.b32.xlu0 %v2065, 32
        %v2169 = vpop.permute.xlu0 %2168
        %2170 = vrot.lane.b32.xlu0 %v2068, 32
        %v2171 = vpop.permute.xlu0 %2170
        %2172 = vrot.lane.b32.xlu0 %v2071, 32
        %v2173 = vpop.permute.xlu0 %2172
        %2174 = vrot.lane.b32.xlu0 %v2159, 32
        %v2175 = vpop.permute.xlu0 %2174
        %2184 = vst.msk [vmem:[#allocation4 + $0x8] sm:$0xff] %vm1187, %v2161
        %2185 = vst.msk [vmem:[#allocation4 + $0x20] sm:$0xff] %vm1187, %v2163
        %2186 = vst.msk [vmem:[#allocation4 + $0x38] sm:$0xff] %vm1187, %v2165
        %2187 = vst.msk [vmem:[#allocation4 + $0x50] sm:$0xff] %vm1187, %v2167
        %2188 = vst.msk [vmem:[#allocation4 + $0x68] sm:$0xff] %vm1187, %v2169
        %2189 = vst.msk [vmem:[#allocation4 + $0x80] sm:$0xff] %vm1187, %v2171
        %2190 = vst.msk [vmem:[#allocation4 + $0x98] sm:$0xff] %vm1187, %v2173
        %2191 = vst.msk [vmem:[#allocation4 + $0xb0] sm:$0xff] %vm1187, %v2175
        %2193 = vrot.lane.b32.xlu0 %v1952, 64
        %v2194 = vpop.permute.xlu0 %2193
        %2195 = vrot.lane.b32.xlu0 %v1954, 64
        %v2196 = vpop.permute.xlu0 %2195
        %2197 = vrot.lane.b32.xlu0 %v1956, 64
        %v2198 = vpop.permute.xlu0 %2197
        %2199 = vrot.lane.b32.xlu0 %v1958, 64
        %v2200 = vpop.permute.xlu0 %2199
        %2201 = vrot.lane.b32.xlu0 %v1960, 64
        %v2202 = vpop.permute.xlu0 %2201
        %2203 = vrot.lane.b32.xlu0 %v1962, 64
        %v2204 = vpop.permute.xlu0 %2203
        %2205 = vrot.lane.b32.xlu0 %v1964, 64
        %v2206 = vpop.permute.xlu0 %2205
        %2207 = vrot.lane.b32.xlu0 %v1966, 64
        %v2208 = vpop.permute.xlu0 %2207
        %2217 = vst.msk [vmem:[#allocation4 + $0x8] sm:$0xff] %vm1244, %v2194
        %2218 = vst.msk [vmem:[#allocation4 + $0x20] sm:$0xff] %vm1244, %v2196
        %2219 = vst.msk [vmem:[#allocation4 + $0x38] sm:$0xff] %vm1244, %v2198
        %2220 = vst.msk [vmem:[#allocation4 + $0x50] sm:$0xff] %vm1244, %v2200
        %2221 = vst.msk [vmem:[#allocation4 + $0x68] sm:$0xff] %vm1244, %v2202
        %2222 = vst.msk [vmem:[#allocation4 + $0x80] sm:$0xff] %vm1244, %v2204
        %2223 = vst.msk [vmem:[#allocation4 + $0x98] sm:$0xff] %vm1244, %v2206
        %2224 = vst.msk [vmem:[#allocation4 + $0xb0] sm:$0xff] %vm1244, %v2208
        %v2226 = vrot.slane %v1966, 1
        %v2227 = vrot.slane %v1967, 1
        %v2228 = vsel %vm577, %v2226, %v2227
        %2229 = vrot.lane.b32.xlu0 %v2000, 96
        %v2230 = vpop.permute.xlu0 %2229
        %2231 = vrot.lane.b32.xlu0 %v2003, 96
        %v2232 = vpop.permute.xlu0 %2231
        %2233 = vrot.lane.b32.xlu0 %v2006, 96
        %v2234 = vpop.permute.xlu0 %2233
        %2235 = vrot.lane.b32.xlu0 %v2009, 96
        %v2236 = vpop.permute.xlu0 %2235
        %2237 = vrot.lane.b32.xlu0 %v2012, 96
        %v2238 = vpop.permute.xlu0 %2237
        %2239 = vrot.lane.b32.xlu0 %v2015, 96
        %v2240 = vpop.permute.xlu0 %2239
        %2241 = vrot.lane.b32.xlu0 %v2140, 96
        %v2242 = vpop.permute.xlu0 %2241
        %2243 = vrot.lane.b32.xlu0 %v2228, 96
        %v2244 = vpop.permute.xlu0 %2243
        %2253 = vst.msk [vmem:[#allocation4 + $0x8] sm:$0xff] %vm1278, %v2230
        %2254 = vst.msk [vmem:[#allocation4 + $0x20] sm:$0xff] %vm1278, %v2232
        %2255 = vst.msk [vmem:[#allocation4 + $0x38] sm:$0xff] %vm1278, %v2234
        %2256 = vst.msk [vmem:[#allocation4 + $0x50] sm:$0xff] %vm1278, %v2236
        %2257 = vst.msk [vmem:[#allocation4 + $0x68] sm:$0xff] %vm1278, %v2238
        %2258 = vst.msk [vmem:[#allocation4 + $0x80] sm:$0xff] %vm1278, %v2240
        %2259 = vst.msk [vmem:[#allocation4 + $0x98] sm:$0xff] %vm1278, %v2242
        %2260 = vst.msk [vmem:[#allocation4 + $0xb0] sm:$0xff] %vm1278, %v2244
        %v2261 = vrot.slane %v1966, 2
        %v2262 = vrot.slane %v1967, 2
        %v2263 = vsel %vm635, %v2261, %v2262
        %2272 = vst.msk [vmem:[#allocation4 + $0x10] sm:$0xff] %vm1044, %v2056
        %2273 = vst.msk [vmem:[#allocation4 + $0x28] sm:$0xff] %vm1044, %v2059
        %2274 = vst.msk [vmem:[#allocation4 + $0x40] sm:$0xff] %vm1044, %v2062
        %2275 = vst.msk [vmem:[#allocation4 + $0x58] sm:$0xff] %vm1044, %v2065
        %2276 = vst.msk [vmem:[#allocation4 + $0x70] sm:$0xff] %vm1044, %v2068
        %2277 = vst.msk [vmem:[#allocation4 + $0x88] sm:$0xff] %vm1044, %v2071
        %2278 = vst.msk [vmem:[#allocation4 + $0xa0] sm:$0xff] %vm1044, %v2159
        %2279 = vst.msk [vmem:[#allocation4 + $0xb8] sm:$0xff] %vm1044, %v2263
        %v2280 = vld [vmem:[%s7] sm:$0xf]
        %v2281 = vld [vmem:[%s7 + $0x4] sm:$0xf]
        %v2282 = vld [vmem:[%s7 + $0x8] sm:$0xf]
        %v2283 = vld [vmem:[%s7 + $0xc] sm:$0xf]
        %v2284 = vld [vmem:[%s7 + $0x10] sm:$0xf]
        %v2285 = vld [vmem:[%s7 + $0x14] sm:$0xf]
        %v2286 = vld [vmem:[%s7 + $0x18] sm:$0xf]
        %v2287 = vld [vmem:[%s7 + $0x1c] sm:$0xf]
        %v2288 = vld [vmem:[%s7 + $0x20] sm:$0xf]
        %v2289 = vld [vmem:[%s7 + $0x24] sm:$0xf]
        %v2290 = vld [vmem:[%s7 + $0x28] sm:$0xf]
        %v2291 = vld [vmem:[%s7 + $0x2c] sm:$0xf]
        %v2292 = vld [vmem:[%s7 + $0x30] sm:$0xf]
        %v2293 = vld [vmem:[%s7 + $0x34] sm:$0xf]
        %v2294 = vld [vmem:[%s7 + $0x38] sm:$0xf]
        %v2295 = vld [vmem:[%s7 + $0x3c] sm:$0xf]
        %v2296 = vld [vmem:[%s7 + $0x40] sm:$0xf]
        %v2297 = vld [vmem:[%s7 + $0x44] sm:$0xf]
        %v2298 = vld [vmem:[%s7 + $0x48] sm:$0xf]
        %v2299 = vld [vmem:[%s7 + $0x4c] sm:$0xf]
        %v2300 = vld [vmem:[%s7 + $0x50] sm:$0xf]
        %v2301 = vld [vmem:[%s7 + $0x54] sm:$0xf]
        %v2302 = vld [vmem:[%s7 + $0x58] sm:$0xf]
        %v2303 = vld [vmem:[%s7 + $0x5c] sm:$0xf]
        %v2304 = vld [vmem:[%s7 + $0x60] sm:$0xf]
        %v2305 = vld [vmem:[%s7 + $0x64] sm:$0xf]
        %v2306 = vld [vmem:[%s7 + $0x68] sm:$0xf]
        %v2307 = vld [vmem:[%s7 + $0x6c] sm:$0xf]
        %v2308 = vld [vmem:[%s7 + $0x70] sm:$0xf]
        %v2309 = vld [vmem:[%s7 + $0x74] sm:$0xf]
        %v2310 = vld [vmem:[%s7 + $0x78] sm:$0xf]
        %v2311 = vld [vmem:[%s7 + $0x7c] sm:$0xf]
        %v2312 = vld [vmem:[%s7 + $0x80] sm:$0xf]
        %v2313 = vld [vmem:[%s7 + $0x84] sm:$0xf]
        %v2314 = vld [vmem:[%s7 + $0x88] sm:$0xf]
        %v2315 = vld [vmem:[%s7 + $0x8c] sm:$0xf]
        %v2316 = vld [vmem:[#allocation4] sm:$0xff]
        %v2317 = vld [vmem:[#allocation4 + $0x8] sm:$0xff]
        %v2318 = vld [vmem:[#allocation4 + $0x10] sm:$0xff]
        %v2319 = vld [vmem:[#allocation4 + $0x18] sm:$0xff]
        %v2320 = vld [vmem:[#allocation4 + $0x20] sm:$0xff]
        %v2321 = vld [vmem:[#allocation4 + $0x28] sm:$0xff]
        %v2322 = vld [vmem:[#allocation4 + $0x30] sm:$0xff]
        %v2323 = vld [vmem:[#allocation4 + $0x38] sm:$0xff]
        %v2324 = vld [vmem:[#allocation4 + $0x40] sm:$0xff]
        %v2325 = vld [vmem:[#allocation4 + $0x48] sm:$0xff]
        %v2326 = vld [vmem:[#allocation4 + $0x50] sm:$0xff]
        %v2327 = vld [vmem:[#allocation4 + $0x58] sm:$0xff]
        %v2328 = vld [vmem:[#allocation4 + $0x60] sm:$0xff]
        %v2329 = vld [vmem:[#allocation4 + $0x68] sm:$0xff]
        %v2330 = vld [vmem:[#allocation4 + $0x70] sm:$0xff]
        %v2331 = vld [vmem:[#allocation4 + $0x78] sm:$0xff]
        %v2332 = vld [vmem:[#allocation4 + $0x80] sm:$0xff]
        %v2333 = vld [vmem:[#allocation4 + $0x88] sm:$0xff]
        %v2334 = vld [vmem:[#allocation4 + $0x90] sm:$0xff]
        %v2335 = vld [vmem:[#allocation4 + $0x98] sm:$0xff]
        %v2336 = vld [vmem:[#allocation4 + $0xa0] sm:$0xff]
        %v2337 = vld [vmem:[#allocation4 + $0xa8] sm:$0xff]
        %v2338 = vld [vmem:[#allocation4 + $0xb0] sm:$0xff]
        %v2339 = vld [vmem:[#allocation4 + $0xb8] sm:$0xff]
        %v2340 = vpack.c.bf16 %v2319, %v2316
        %v2341 = vpack.c.bf16 %v2320, %v2317
        %v2342 = vpack.c.bf16 %v2321, %v2318
        %v2343 = vpack.c.bf16 %v2325, %v2322
        %v2344 = vpack.c.bf16 %v2326, %v2323
        %v2345 = vpack.c.bf16 %v2327, %v2324
        %v2346 = vpack.c.bf16 %v2331, %v2328
        %v2347 = vpack.c.bf16 %v2332, %v2329
        %v2348 = vpack.c.bf16 %v2333, %v2330
        %v2349 = vpack.c.bf16 %v2337, %v2334
        %v2350 = vpack.c.bf16 %v2338, %v2335
        %v2351 = vpack.c.bf16 %v2339, %v2336
        %v2352 = vld [vmem:[%s8] sm:$0x1]
        %v2354 = vlaneseq
        %v2355 = vshrl.u32 %v2354, 7
        %v2356 = vsub.s32 0, %v2355
        %v2357 = vrot.slane %v2352, %v2356
        %v2395 = vunpack.c.l.b16 %v2280
        %v2396 = vunpack.c.l.b16 %v2281
        %v2397 = vunpack.c.l.b16 %v2282
        %v2398 = vunpack.c.l.b16 %v2283
        %v2399 = vunpack.c.l.b16 %v2284
        %v2400 = vunpack.c.l.b16 %v2285
        %v2401 = vunpack.c.l.b16 %v2286
        %v2402 = vunpack.c.l.b16 %v2287
        %v2403 = vunpack.c.l.b16 %v2288
        %v2404 = vunpack.c.l.b16 %v2289
        %v2405 = vunpack.c.l.b16 %v2290
        %v2406 = vunpack.c.l.b16 %v2291
        %v2407 = vunpack.c.l.b16 %v2292
        %v2408 = vunpack.c.l.b16 %v2293
        %v2409 = vunpack.c.l.b16 %v2294
        %v2410 = vunpack.c.l.b16 %v2295
        %v2411 = vunpack.c.l.b16 %v2296
        %v2412 = vunpack.c.l.b16 %v2297
        %v2413 = vunpack.c.l.b16 %v2298
        %v2414 = vunpack.c.l.b16 %v2299
        %v2415 = vunpack.c.l.b16 %v2300
        %v2416 = vunpack.c.l.b16 %v2301
        %v2417 = vunpack.c.l.b16 %v2302
        %v2418 = vunpack.c.l.b16 %v2303
        %v2419 = vunpack.c.l.b16 %v2304
        %v2420 = vunpack.c.l.b16 %v2305
        %v2421 = vunpack.c.l.b16 %v2306
        %v2422 = vunpack.c.l.b16 %v2307
        %v2423 = vunpack.c.l.b16 %v2308
        %v2424 = vunpack.c.l.b16 %v2309
        %v2425 = vunpack.c.l.b16 %v2310
        %v2426 = vunpack.c.l.b16 %v2311
        %v2427 = vunpack.c.l.b16 %v2312
        %v2428 = vunpack.c.l.b16 %v2313
        %v2429 = vunpack.c.l.b16 %v2314
        %v2430 = vunpack.c.l.b16 %v2315
        %v2431 = vpack.c.b16 %v2396, %v2395
        %v2432 = vpack.c.b16 %v2398, %v2397
        %v2433 = vpack.c.b16 %v2400, %v2399
        %v2434 = vpack.c.b16 %v2402, %v2401
        %v2435 = vpack.c.b16 %v2404, %v2403
        %v2436 = vpack.c.b16 %v2406, %v2405
        %v2437 = vpack.c.b16 %v2408, %v2407
        %v2438 = vpack.c.b16 %v2410, %v2409
        %v2439 = vpack.c.b16 %v2412, %v2411
        %v2440 = vpack.c.b16 %v2414, %v2413
        %v2441 = vpack.c.b16 %v2416, %v2415
        %v2442 = vpack.c.b16 %v2418, %v2417
        %v2443 = vpack.c.b16 %v2420, %v2419
        %v2444 = vpack.c.b16 %v2422, %v2421
        %v2445 = vpack.c.b16 %v2424, %v2423
        %v2446 = vpack.c.b16 %v2426, %v2425
        %v2447 = vpack.c.b16 %v2428, %v2427
        %v2448 = vpack.c.b16 %v2430, %v2429
        %v2468 = vsel %vm1044, %v2342, 0
        %v2471 = vsel %vm1044, %v2345, 0
        %v2474 = vsel %vm1044, %v2348, 0
        %v2477 = vsel %vm1044, %v2351, 0
        %2479 = vmatprep.subr.bf16.mxu0 0
        %2480 = vmatpush1.bf16.msra.mxu0 %v2431
        %2481 = vmatprep.subr.bf16.mxu0 0
        %2482 = vmatpush1.bf16.msra.mxu0 %v2432
        %2483 = vmatprep.subr.bf16.mxu0 0
        %2484 = vmatpush1.bf16.msra.mxu0 %v2433
        %2485 = vmatprep.subr.bf16.mxu0 0
        %2486 = vmatpush1.bf16.msra.mxu0 %v2434
        %2487 = vmatprep.subr.bf16.mxu0 0
        %2488 = vmatpush1.bf16.msra.mxu0 %v2435
        %2489 = vmatprep.subr.bf16.mxu0 0
        %2490 = vmatpush1.bf16.msra.mxu0 %v2436
        %2491 = vmatprep.subr.bf16.mxu0 0
        %2492 = vmatpush1.bf16.msra.mxu0 %v2437
        %2493 = vmatprep.subr.bf16.mxu0 0
        %2494 = vmatpush1.bf16.msra.mxu0 %v2438
        %2495 = vmatprep.subr.bf16.mxu0 0
        %2496 = vmatpush1.bf16.msra.mxu0 %v2439
        %2497 = vmatprep.subr.bf16.mxu0 0
        %2498 = vmatpush1.bf16.msra.mxu0 %v2440
        %2499 = vmatprep.subr.bf16.mxu0 0
        %2500 = vmatpush1.bf16.msra.mxu0 %v2441
        %2501 = vmatprep.subr.bf16.mxu0 0
        %2502 = vmatpush1.bf16.msra.mxu0 %v2442
        %2503 = vmatprep.subr.bf16.mxu0 0
        %2504 = vmatpush1.bf16.msra.mxu0 %v2443
        %2505 = vmatprep.subr.bf16.mxu0 0
        %2506 = vmatpush1.bf16.msra.mxu0 %v2444
        %2507 = vmatprep.subr.bf16.mxu0 0
        %2508 = vmatpush1.bf16.msra.mxu0 %v2445
        %2509 = vmatprep.subr.bf16.mxu0 0
        %2510 = vmatpush1.bf16.msra.mxu0 %v2446
        %2511 = vmatprep.mubr.bf16.mxu0 %v2341
        %2512 = vmatmul.mubr.bf16.gmra.mrb[0].mxu0 %v2340
        %v2513 = vpop.f32.mrb[0].mxu0
        %v2514 = vadd.f32 %v2357, %v2513
        %v2515 = vpop.f32.mrb[0].mxu0
        %v2516 = vpop.f32.mrb[0].mxu0
        %v2517 = vadd.f32 %v2357, %v2516
        %v2518 = vpop.f32.mrb[0].mxu0
        %2519 = vmatprep.mubr.bf16.mxu0 %v2344
        %2520 = vmatmul.mubr.bf16.gmra.mrb[0].mxu0 %v2343
        %v2521 = vpop.f32.mrb[0].mxu0
        %v2522 = vadd.f32 %v2357, %v2521
        %v2523 = vpop.f32.mrb[0].mxu0
        %v2524 = vpop.f32.mrb[0].mxu0
        %v2525 = vadd.f32 %v2357, %v2524
        %v2526 = vpop.f32.mrb[0].mxu0
        %2527 = vmatprep.mubr.bf16.mxu0 %v2347
        %2528 = vmatmul.mubr.bf16.gmra.mrb[0].mxu0 %v2346
        %v2529 = vpop.f32.mrb[0].mxu0
        %v2530 = vadd.f32 %v2357, %v2529
        %v2531 = vpop.f32.mrb[0].mxu0
        %v2532 = vpop.f32.mrb[0].mxu0
        %v2533 = vadd.f32 %v2357, %v2532
        %v2534 = vpop.f32.mrb[0].mxu0
        %2535 = vmatprep.mubr.bf16.mxu0 %v2350
        %2536 = vmatmul.mubr.bf16.gmra.mrb[0].mxu0 %v2349
        %v2537 = vpop.f32.mrb[0].mxu0
        %v2538 = vadd.f32 %v2357, %v2537
        %v2539 = vpop.f32.mrb[0].mxu0
        %v2540 = vpop.f32.mrb[0].mxu0
        %v2541 = vadd.f32 %v2357, %v2540
        %v2542 = vpop.f32.mrb[0].mxu0
        %2543 = vdwg.mxu0
        %2544 = vmatprep.subr.bf16.mxu0 0
        %2545 = vmatpush1.bf16.msra.mxu0 %v2447
        %2546 = vmatprep.subr.bf16.mxu0 0
        %2547 = vmatpush1.bf16.msra.mxu0 %v2448
        %2548 = vmatprep.subr.bf16.mxu0 0
        %2549 = vmatpush1.bf16.msra.mxu0 0
        %2550 = vmatprep.subr.bf16.mxu0 0
        %2551 = vmatpush1.bf16.msra.mxu0 0
        %2552 = vmatprep.subr.bf16.mxu0 0
        %2553 = vmatpush1.bf16.msra.mxu0 0
        %2554 = vmatprep.subr.bf16.mxu0 0
        %2555 = vmatpush1.bf16.msra.mxu0 0
        %2556 = vmatprep.subr.bf16.mxu0 0
        %2557 = vmatpush1.bf16.msra.mxu0 0
        %2558 = vmatprep.subr.bf16.mxu0 0
        %2559 = vmatpush1.bf16.msra.mxu0 0
        %2560 = vmatprep.subr.bf16.mxu0 0
        %2561 = vmatpush1.bf16.msra.mxu0 0
        %2562 = vmatprep.subr.bf16.mxu0 0
        %2563 = vmatpush1.bf16.msra.mxu0 0
        %2564 = vmatprep.subr.bf16.mxu0 0
        %2565 = vmatpush1.bf16.msra.mxu0 0
        %2566 = vmatprep.subr.bf16.mxu0 0
        %2567 = vmatpush1.bf16.msra.mxu0 0
        %2568 = vmatprep.subr.bf16.mxu0 0
        %2569 = vmatpush1.bf16.msra.mxu0 0
        %2570 = vmatprep.subr.bf16.mxu0 0
        %2571 = vmatpush1.bf16.msra.mxu0 0
        %2572 = vmatprep.subr.bf16.mxu0 0
        %2573 = vmatpush1.bf16.msra.mxu0 0
        %2574 = vmatprep.subr.bf16.mxu0 0
        %2575 = vmatpush1.bf16.msra.mxu0 0
        %2576 = vmatprep.mubr.bf16.mxu0 0
        %2577 = vmatmul.mubr.bf16.gmra.mrb[0].mxu0 %v2468
        %v2578 = vpop.f32.mrb[0].mxu0
        %v2579 = vadd.f32 %v2514, %v2578
        %v2580 = vpop.f32.mrb[0].mxu0
        %v2581 = vpop.f32.mrb[0].mxu0
        %v2582 = vadd.f32 %v2517, %v2581
        %v2583 = vpop.f32.mrb[0].mxu0
        %2584 = vmatprep.mubr.bf16.mxu0 0
        %2585 = vmatmul.mubr.bf16.gmra.mrb[0].mxu0 %v2471
        %v2586 = vpop.f32.mrb[0].mxu0
        %v2587 = vadd.f32 %v2522, %v2586
        %v2588 = vpop.f32.mrb[0].mxu0
        %v2589 = vpop.f32.mrb[0].mxu0
        %v2590 = vadd.f32 %v2525, %v2589
        %v2591 = vpop.f32.mrb[0].mxu0
        %2592 = vmatprep.mubr.bf16.mxu0 0
        %2593 = vmatmul.mubr.bf16.gmra.mrb[0].mxu0 %v2474
        %v2594 = vpop.f32.mrb[0].mxu0
        %v2595 = vadd.f32 %v2530, %v2594
        %v2596 = vpop.f32.mrb[0].mxu0
        %v2597 = vpop.f32.mrb[0].mxu0
        %v2598 = vadd.f32 %v2533, %v2597
        %v2599 = vpop.f32.mrb[0].mxu0
        %2600 = vmatprep.mubr.bf16.mxu0 0
        %2601 = vmatmul.mubr.bf16.gmra.mrb[0].mxu0 %v2477
        %v2602 = vpop.f32.mrb[0].mxu0
        %v2603 = vadd.f32 %v2538, %v2602
        %v2604 = vpop.f32.mrb[0].mxu0
        %v2605 = vpop.f32.mrb[0].mxu0
        %v2606 = vadd.f32 %v2541, %v2605
        %v2607 = vpop.f32.mrb[0].mxu0
        %2608 = vdwg.mxu0
        %v2609 = vmax.f32 %v2579, 0.0
        %v2610 = vmax.f32 %v2582, 0.0
        %v2611 = vmax.f32 %v2587, 0.0
        %v2612 = vmax.f32 %v2590, 0.0
        %v2613 = vmax.f32 %v2595, 0.0
        %v2614 = vmax.f32 %v2598, 0.0
        %v2615 = vmax.f32 %v2603, 0.0
        %v2616 = vmax.f32 %v2606, 0.0
        %v2617 = vpack.c.bf16 %v2610, %v2609
        %v2618 = vpack.c.bf16 %v2612, %v2611
        %v2619 = vpack.c.bf16 %v2614, %v2613
        %v2620 = vpack.c.bf16 %v2616, %v2615
        %v2621 = vld [vmem:[%s9] sm:$0xf]
        %v2622 = vld [vmem:[%s9 + $0x4] sm:$0xf]
        %v2623 = vld [vmem:[%s10] sm:$0x1]
        %v2625 = vlaneseq
        %v2626 = vshrl.u32 %v2625, 7
        %v2627 = vsub.s32 0, %v2626
        %v2628 = vrot.slane %v2623, %v2627
        %v2632 = vunpack.c.l.b16 %v2621
        %v2633 = vunpack.c.l.b16 %v2622
        %v2634 = vpack.c.b16 %v2633, %v2632
        %v2637 = vsel %vm1786, %v2617, 0
        %v2640 = vsel %vm1786, %v2618, 0
        %v2643 = vsel %vm1786, %v2619, 0
        %v2646 = vsel %vm1786, %v2620, 0
        %2648 = vmatprep.subr.bf16.mxu0 0
        %2649 = vmatpush1.bf16.msra.mxu0 %v2634
        %2650 = vmatprep.subr.bf16.mxu0 0
        %2651 = vmatpush1.bf16.msra.mxu0 0
        %2652 = vmatprep.subr.bf16.mxu0 0
        %2653 = vmatpush1.bf16.msra.mxu0 0
        %2654 = vmatprep.subr.bf16.mxu0 0
        %2655 = vmatpush1.bf16.msra.mxu0 0
        %2656 = vmatprep.subr.bf16.mxu0 0
        %2657 = vmatpush1.bf16.msra.mxu0 0
        %2658 = vmatprep.subr.bf16.mxu0 0
        %2659 = vmatpush1.bf16.msra.mxu0 0
        %2660 = vmatprep.subr.bf16.mxu0 0
        %2661 = vmatpush1.bf16.msra.mxu0 0
        %2662 = vmatprep.subr.bf16.mxu0 0
        %2663 = vmatpush1.bf16.msra.mxu0 0
        %2664 = vmatprep.subr.bf16.mxu0 0
        %2665 = vmatpush1.bf16.msra.mxu0 0
        %2666 = vmatprep.subr.bf16.mxu0 0
        %2667 = vmatpush1.bf16.msra.mxu0 0
        %2668 = vmatprep.subr.bf16.mxu0 0
        %2669 = vmatpush1.bf16.msra.mxu0 0
        %2670 = vmatprep.subr.bf16.mxu0 0
        %2671 = vmatpush1.bf16.msra.mxu0 0
        %2672 = vmatprep.subr.bf16.mxu0 0
        %2673 = vmatpush1.bf16.msra.mxu0 0
        %2674 = vmatprep.subr.bf16.mxu0 0
        %2675 = vmatpush1.bf16.msra.mxu0 0
        %2676 = vmatprep.subr.bf16.mxu0 0
        %2677 = vmatpush1.bf16.msra.mxu0 0
        %2678 = vmatprep.subr.bf16.mxu0 0
        %2679 = vmatpush1.bf16.msra.mxu0 0
        %2680 = vmatprep.mubr.bf16.mxu0 0
        %2681 = vmatmul.mubr.bf16.gmra.mrb[0].mxu0 %v2637
        %v2682 = vpop.f32.mrb[0].mxu0
        %v2683 = vadd.f32 %v2628, %v2682
        %v2684 = vpop.f32.mrb[0].mxu0
        %v2685 = vpop.f32.mrb[0].mxu0
        %v2686 = vadd.f32 %v2628, %v2685
        %v2687 = vpop.f32.mrb[0].mxu0
        %2688 = vmatprep.mubr.bf16.mxu0 0
        %2689 = vmatmul.mubr.bf16.gmra.mrb[0].mxu0 %v2640
        %v2690 = vpop.f32.mrb[0].mxu0
        %v2691 = vadd.f32 %v2628, %v2690
        %v2692 = vpop.f32.mrb[0].mxu0
        %v2693 = vpop.f32.mrb[0].mxu0
        %v2694 = vadd.f32 %v2628, %v2693
        %v2695 = vpop.f32.mrb[0].mxu0
        %2696 = vmatprep.mubr.bf16.mxu0 0
        %2697 = vmatmul.mubr.bf16.gmra.mrb[0].mxu0 %v2643
        %v2698 = vpop.f32.mrb[0].mxu0
        %v2699 = vadd.f32 %v2628, %v2698
        %v2700 = vpop.f32.mrb[0].mxu0
        %v2701 = vpop.f32.mrb[0].mxu0
        %v2702 = vadd.f32 %v2628, %v2701
        %v2703 = vpop.f32.mrb[0].mxu0
        %2704 = vmatprep.mubr.bf16.mxu0 0
        %2705 = vmatmul.mubr.bf16.gmra.mrb[0].mxu0 %v2646
        %v2706 = vpop.f32.mrb[0].mxu0
        %v2707 = vadd.f32 %v2628, %v2706
        %v2708 = vpop.f32.mrb[0].mxu0
        %v2709 = vpop.f32.mrb[0].mxu0
        %v2710 = vadd.f32 %v2628, %v2709
        %v2711 = vpop.f32.mrb[0].mxu0
        %2712 = vdwg.mxu0
        %v2729 = vrot.slane %v1930, 1
        %v2730 = vrot.slane %v1931, 1
        %v2731 = vsel %vm577, %v2729, %v2730
        %v2732 = vrot.slane %v1932, 1
        %v2733 = vrot.slane %v1933, 1
        %v2734 = vsel %vm577, %v2732, %v2733
        %v2735 = vrot.slane %v1934, 1
        %v2736 = vrot.slane %v1935, 1
        %v2737 = vsel %vm577, %v2735, %v2736
        %v2738 = vrot.slane %v1936, 1
        %v2739 = vrot.slane %v1937, 1
        %v2740 = vsel %vm577, %v2738, %v2739
        %v2741 = vrot.slane %v1938, 1
        %v2742 = vrot.slane %v1939, 1
        %v2743 = vsel %vm577, %v2741, %v2742
        %v2744 = vrot.slane %v1940, 1
        %v2745 = vrot.slane %v1941, 1
        %v2746 = vsel %vm577, %v2744, %v2745
        %v2747 = vrot.slane %v1942, 1
        %v2748 = vrot.slane %v1943, 1
        %v2749 = vsel %vm577, %v2747, %v2748
        %v2750 = vrot.slane %v1944, 1
        %v2751 = vrot.slane %v1945, 1
        %v2752 = vsel %vm577, %v2750, %v2751
        %v2761 = vadd.f32 %v2683, %v2731
        %v2762 = vadd.f32 %v2686, %v2734
        %v2763 = vadd.f32 %v2691, %v2737
        %v2764 = vadd.f32 %v2694, %v2740
        %v2765 = vadd.f32 %v2699, %v2743
        %v2766 = vadd.f32 %v2702, %v2746
        %v2767 = vadd.f32 %v2707, %v2749
        %v2768 = vadd.f32 %v2710, %v2752
        %2769 = vst.msk [vmem:[%s1066 + $0x1] sm:$0xff] %vm1044, %v2761
        %2770 = vst.msk [vmem:[%s1066 + $0x11] sm:$0xff] %vm1044, %v2762
        %2771 = vst.msk [vmem:[%s1066 + $0x21] sm:$0xff] %vm1044, %v2763
        %2772 = vst.msk [vmem:[%s1066 + $0x31] sm:$0xff] %vm1044, %v2764
        %2773 = vst.msk [vmem:[%s1066 + $0x41] sm:$0xff] %vm1044, %v2765
        %2774 = vst.msk [vmem:[%s1066 + $0x51] sm:$0xff] %vm1044, %v2766
        %2775 = vst.msk [vmem:[%s1066 + $0x61] sm:$0xff] %vm1044, %v2767
        %2776 = vst.msk [vmem:[%s1066 + $0x71] sm:$0xff] %vm1044, %v2768
        %v2777 = vld [vmem:[#allocation3] sm:$0xff]
        %v2778 = vld [vmem:[#allocation3 + $0x8] sm:$0x3]
        %v2779 = vld [vmem:[#allocation3 + $0x10] sm:$0xff]
        %v2780 = vld [vmem:[#allocation3 + $0x18] sm:$0x3]
        %v2781 = vld [vmem:[#allocation3 + $0x20] sm:$0xff]
        %v2782 = vld [vmem:[#allocation3 + $0x28] sm:$0x3]
        %v2783 = vld [vmem:[#allocation3 + $0x30] sm:$0xff]
        %v2784 = vld [vmem:[#allocation3 + $0x38] sm:$0x3]
        %v2785 = vld [vmem:[#allocation3 + $0x40] sm:$0xff]
        %v2786 = vld [vmem:[#allocation3 + $0x48] sm:$0x3]
        %v2787 = vld [vmem:[#allocation3 + $0x50] sm:$0xff]
        %v2788 = vld [vmem:[#allocation3 + $0x58] sm:$0x3]
        %v2789 = vld [vmem:[#allocation3 + $0x60] sm:$0xff]
        %v2790 = vld [vmem:[#allocation3 + $0x68] sm:$0x3]
        %v2791 = vld [vmem:[#allocation3 + $0x70] sm:$0xff]
        %v2792 = vld [vmem:[#allocation3 + $0x78] sm:$0x3]
        %v2793 = vld [vmem:[#allocation3 + $0x80] sm:$0xff]
        %v2794 = vld [vmem:[#allocation3 + $0x88] sm:$0x3]
        %v2795 = vld [vmem:[#allocation3 + $0x90] sm:$0xff]
        %v2796 = vld [vmem:[#allocation3 + $0x98] sm:$0x3]
        %v2797 = vmax.f32 %v2777, 0.0
        %v2798 = vmax.f32 %v2778, 0.0
        %v2799 = vmax.f32 %v2779, 0.0
        %v2800 = vmax.f32 %v2780, 0.0
        %v2801 = vmax.f32 %v2781, 0.0
        %v2802 = vmax.f32 %v2782, 0.0
        %v2803 = vmax.f32 %v2783, 0.0
        %v2804 = vmax.f32 %v2784, 0.0
        %v2805 = vmax.f32 %v2785, 0.0
        %v2806 = vmax.f32 %v2786, 0.0
        %v2807 = vmax.f32 %v2787, 0.0
        %v2808 = vmax.f32 %v2788, 0.0
        %v2809 = vmax.f32 %v2789, 0.0
        %v2810 = vmax.f32 %v2790, 0.0
        %v2811 = vmax.f32 %v2791, 0.0
        %v2812 = vmax.f32 %v2792, 0.0
        %v2813 = vmax.f32 %v2793, 0.0
        %v2814 = vmax.f32 %v2794, 0.0
        %v2815 = vmax.f32 %v2795, 0.0
        %v2816 = vmax.f32 %v2796, 0.0
        %2817 = vst.msk [vmem:[#allocation4] sm:$0xff] %vm1044, %v2797
        %2818 = vst.msk [vmem:[#allocation4 + $0x18] sm:$0xff] %vm1044, %v2799
        %2819 = vst.msk [vmem:[#allocation4 + $0x30] sm:$0xff] %vm1044, %v2801
        %2820 = vst.msk [vmem:[#allocation4 + $0x48] sm:$0xff] %vm1044, %v2803
        %2821 = vst.msk [vmem:[#allocation4 + $0x60] sm:$0xff] %vm1044, %v2805
        %2822 = vst.msk [vmem:[#allocation4 + $0x78] sm:$0xff] %vm1044, %v2807
        %2823 = vst.msk [vmem:[#allocation4 + $0x90] sm:$0xff] %vm1044, %v2809
        %2824 = vst.msk [vmem:[#allocation4 + $0xa8] sm:$0xff] %vm1044, %v2811
        %v2841 = vrot.slane %v2797, 1
        %v2842 = vrot.slane %v2798, 1
        %v2843 = vsel %vm577, %v2841, %v2842
        %v2844 = vrot.slane %v2799, 1
        %v2845 = vrot.slane %v2800, 1
        %v2846 = vsel %vm577, %v2844, %v2845
        %v2847 = vrot.slane %v2801, 1
        %v2848 = vrot.slane %v2802, 1
        %v2849 = vsel %vm577, %v2847, %v2848
        %v2850 = vrot.slane %v2803, 1
        %v2851 = vrot.slane %v2804, 1
        %v2852 = vsel %vm577, %v2850, %v2851
        %v2853 = vrot.slane %v2805, 1
        %v2854 = vrot.slane %v2806, 1
        %v2855 = vsel %vm577, %v2853, %v2854
        %v2856 = vrot.slane %v2807, 1
        %v2857 = vrot.slane %v2808, 1
        %v2858 = vsel %vm577, %v2856, %v2857
        %v2859 = vrot.slane %v2809, 1
        %v2860 = vrot.slane %v2810, 1
        %v2861 = vsel %vm577, %v2859, %v2860
        %v2862 = vrot.slane %v2811, 1
        %v2863 = vrot.slane %v2812, 1
        %v2864 = vsel %vm577, %v2862, %v2863
        %2873 = vrot.lane.b32.xlu0 %v2843, 32
        %v2874 = vpop.permute.xlu0 %2873
        %2875 = vrot.lane.b32.xlu0 %v2846, 32
        %v2876 = vpop.permute.xlu0 %2875
        %2877 = vrot.lane.b32.xlu0 %v2849, 32
        %v2878 = vpop.permute.xlu0 %2877
        %2879 = vrot.lane.b32.xlu0 %v2852, 32
        %v2880 = vpop.permute.xlu0 %2879
        %2881 = vrot.lane.b32.xlu0 %v2855, 32
        %v2882 = vpop.permute.xlu0 %2881
        %2883 = vrot.lane.b32.xlu0 %v2858, 32
        %v2884 = vpop.permute.xlu0 %2883
        %2885 = vrot.lane.b32.xlu0 %v2861, 32
        %v2886 = vpop.permute.xlu0 %2885
        %2887 = vrot.lane.b32.xlu0 %v2864, 32
        %v2888 = vpop.permute.xlu0 %2887
        %2897 = vst.msk [vmem:[#allocation4] sm:$0xff] %vm1187, %v2874
        %2898 = vst.msk [vmem:[#allocation4 + $0x18] sm:$0xff] %vm1187, %v2876
        %2899 = vst.msk [vmem:[#allocation4 + $0x30] sm:$0xff] %vm1187, %v2878
        %2900 = vst.msk [vmem:[#allocation4 + $0x48] sm:$0xff] %vm1187, %v2880
        %2901 = vst.msk [vmem:[#allocation4 + $0x60] sm:$0xff] %vm1187, %v2882
        %2902 = vst.msk [vmem:[#allocation4 + $0x78] sm:$0xff] %vm1187, %v2884
        %2903 = vst.msk [vmem:[#allocation4 + $0x90] sm:$0xff] %vm1187, %v2886
        %2904 = vst.msk [vmem:[#allocation4 + $0xa8] sm:$0xff] %vm1187, %v2888
        %2906 = vrot.lane.b32.xlu0 %v2799, 64
        %v2907 = vpop.permute.xlu0 %2906
        %2908 = vrot.lane.b32.xlu0 %v2801, 64
        %v2909 = vpop.permute.xlu0 %2908
        %2910 = vrot.lane.b32.xlu0 %v2803, 64
        %v2911 = vpop.permute.xlu0 %2910
        %2912 = vrot.lane.b32.xlu0 %v2805, 64
        %v2913 = vpop.permute.xlu0 %2912
        %2914 = vrot.lane.b32.xlu0 %v2807, 64
        %v2915 = vpop.permute.xlu0 %2914
        %2916 = vrot.lane.b32.xlu0 %v2809, 64
        %v2917 = vpop.permute.xlu0 %2916
        %2918 = vrot.lane.b32.xlu0 %v2811, 64
        %v2919 = vpop.permute.xlu0 %2918
        %2920 = vrot.lane.b32.xlu0 %v2813, 64
        %v2921 = vpop.permute.xlu0 %2920
        %2930 = vst.msk [vmem:[#allocation4] sm:$0xff] %vm1244, %v2907
        %2931 = vst.msk [vmem:[#allocation4 + $0x18] sm:$0xff] %vm1244, %v2909
        %2932 = vst.msk [vmem:[#allocation4 + $0x30] sm:$0xff] %vm1244, %v2911
        %2933 = vst.msk [vmem:[#allocation4 + $0x48] sm:$0xff] %vm1244, %v2913
        %2934 = vst.msk [vmem:[#allocation4 + $0x60] sm:$0xff] %vm1244, %v2915
        %2935 = vst.msk [vmem:[#allocation4 + $0x78] sm:$0xff] %vm1244, %v2917
        %2936 = vst.msk [vmem:[#allocation4 + $0x90] sm:$0xff] %vm1244, %v2919
        %2937 = vst.msk [vmem:[#allocation4 + $0xa8] sm:$0xff] %vm1244, %v2921
        %v2939 = vrot.slane %v2813, 1
        %v2940 = vrot.slane %v2814, 1
        %v2941 = vsel %vm577, %v2939, %v2940
        %2943 = vrot.lane.b32.xlu0 %v2846, 96
        %v2944 = vpop.permute.xlu0 %2943
        %2945 = vrot.lane.b32.xlu0 %v2849, 96
        %v2946 = vpop.permute.xlu0 %2945
        %2947 = vrot.lane.b32.xlu0 %v2852, 96
        %v2948 = vpop.permute.xlu0 %2947
        %2949 = vrot.lane.b32.xlu0 %v2855, 96
        %v2950 = vpop.permute.xlu0 %2949
        %2951 = vrot.lane.b32.xlu0 %v2858, 96
        %v2952 = vpop.permute.xlu0 %2951
        %2953 = vrot.lane.b32.xlu0 %v2861, 96
        %v2954 = vpop.permute.xlu0 %2953
        %2955 = vrot.lane.b32.xlu0 %v2864, 96
        %v2956 = vpop.permute.xlu0 %2955
        %2957 = vrot.lane.b32.xlu0 %v2941, 96
        %v2958 = vpop.permute.xlu0 %2957
        %2967 = vst.msk [vmem:[#allocation4] sm:$0xff] %vm1278, %v2944
        %2968 = vst.msk [vmem:[#allocation4 + $0x18] sm:$0xff] %vm1278, %v2946
        %2969 = vst.msk [vmem:[#allocation4 + $0x30] sm:$0xff] %vm1278, %v2948
        %2970 = vst.msk [vmem:[#allocation4 + $0x48] sm:$0xff] %vm1278, %v2950
        %2971 = vst.msk [vmem:[#allocation4 + $0x60] sm:$0xff] %vm1278, %v2952
        %2972 = vst.msk [vmem:[#allocation4 + $0x78] sm:$0xff] %vm1278, %v2954
        %2973 = vst.msk [vmem:[#allocation4 + $0x90] sm:$0xff] %vm1278, %v2956
        %2974 = vst.msk [vmem:[#allocation4 + $0xa8] sm:$0xff] %vm1278, %v2958
        %v2975 = vld [vmem:[%s11] sm:$0xf]
        %v2976 = vld [vmem:[%s11 + $0x4] sm:$0xf]
        %v2977 = vld [vmem:[%s11 + $0x8] sm:$0xf]
        %v2978 = vld [vmem:[%s11 + $0xc] sm:$0xf]
        %v2979 = vld [vmem:[%s11 + $0x10] sm:$0xf]
        %v2980 = vld [vmem:[%s11 + $0x14] sm:$0xf]
        %v2981 = vld [vmem:[%s11 + $0x18] sm:$0xf]
        %v2982 = vld [vmem:[%s11 + $0x1c] sm:$0xf]
        %v2983 = vld [vmem:[%s11 + $0x20] sm:$0xf]
        %v2984 = vld [vmem:[%s11 + $0x24] sm:$0xf]
        %v2985 = vld [vmem:[%s11 + $0x28] sm:$0xf]
        %v2986 = vld [vmem:[%s11 + $0x2c] sm:$0xf]
        %v2987 = vld [vmem:[%s11 + $0x30] sm:$0xf]
        %v2988 = vld [vmem:[%s11 + $0x34] sm:$0xf]
        %v2989 = vld [vmem:[%s11 + $0x38] sm:$0xf]
        %v2990 = vld [vmem:[%s11 + $0x3c] sm:$0xf]
        %v2991 = vld [vmem:[#allocation4] sm:$0xff]
        %v2992 = vld [vmem:[#allocation4 + $0x18] sm:$0xff]
        %v2993 = vld [vmem:[#allocation4 + $0x30] sm:$0xff]
        %v2994 = vld [vmem:[#allocation4 + $0x48] sm:$0xff]
        %v2995 = vld [vmem:[#allocation4 + $0x60] sm:$0xff]
        %v2996 = vld [vmem:[#allocation4 + $0x78] sm:$0xff]
        %v2997 = vld [vmem:[#allocation4 + $0x90] sm:$0xff]
        %v2998 = vld [vmem:[#allocation4 + $0xa8] sm:$0xff]
        %v2999 = vpack.c.bf16 %v2992, %v2991
        %v3000 = vpack.c.bf16 %v2994, %v2993
        %v3001 = vpack.c.bf16 %v2996, %v2995
        %v3002 = vpack.c.bf16 %v2998, %v2997
        %v3003 = vld [vmem:[%s12] sm:$0x1]
        %v3005 = vlaneseq
        %v3006 = vshrl.u32 %v3005, 7
        %v3007 = vsub.s32 0, %v3006
        %v3008 = vrot.slane %v3003, %v3007
        %v3026 = vunpack.c.l.b16 %v2975
        %v3027 = vunpack.c.l.b16 %v2976
        %v3028 = vunpack.c.l.b16 %v2977
        %v3029 = vunpack.c.l.b16 %v2978
        %v3030 = vunpack.c.l.b16 %v2979
        %v3031 = vunpack.c.l.b16 %v2980
        %v3032 = vunpack.c.l.b16 %v2981
        %v3033 = vunpack.c.l.b16 %v2982
        %v3034 = vunpack.c.l.b16 %v2983
        %v3035 = vunpack.c.l.b16 %v2984
        %v3036 = vunpack.c.l.b16 %v2985
        %v3037 = vunpack.c.l.b16 %v2986
        %v3038 = vunpack.c.l.b16 %v2987
        %v3039 = vunpack.c.l.b16 %v2988
        %v3040 = vunpack.c.l.b16 %v2989
        %v3041 = vunpack.c.l.b16 %v2990
        %v3042 = vpack.c.b16 %v3027, %v3026
        %v3043 = vpack.c.b16 %v3029, %v3028
        %v3044 = vpack.c.b16 %v3031, %v3030
        %v3045 = vpack.c.b16 %v3033, %v3032
        %v3046 = vpack.c.b16 %v3035, %v3034
        %v3047 = vpack.c.b16 %v3037, %v3036
        %v3048 = vpack.c.b16 %v3039, %v3038
        %v3049 = vpack.c.b16 %v3041, %v3040
        %3058 = vmatprep.subr.bf16.mxu0 0
        %3059 = vmatpush1.bf16.msra.mxu0 %v3042
        %3060 = vmatprep.subr.bf16.mxu0 0
        %3061 = vmatpush1.bf16.msra.mxu0 %v3043
        %3062 = vmatprep.subr.bf16.mxu0 0
        %3063 = vmatpush1.bf16.msra.mxu0 %v3044
        %3064 = vmatprep.subr.bf16.mxu0 0
        %3065 = vmatpush1.bf16.msra.mxu0 %v3045
        %3066 = vmatprep.subr.bf16.mxu0 0
        %3067 = vmatpush1.bf16.msra.mxu0 %v3046
        %3068 = vmatprep.subr.bf16.mxu0 0
        %3069 = vmatpush1.bf16.msra.mxu0 %v3047
        %3070 = vmatprep.subr.bf16.mxu0 0
        %3071 = vmatpush1.bf16.msra.mxu0 %v3048
        %3072 = vmatprep.subr.bf16.mxu0 0
        %3073 = vmatpush1.bf16.msra.mxu0 %v3049
        %3074 = vmatprep.subr.bf16.mxu0 0
        %3075 = vmatpush1.bf16.msra.mxu0 0
        %3076 = vmatprep.subr.bf16.mxu0 0
        %3077 = vmatpush1.bf16.msra.mxu0 0
        %3078 = vmatprep.subr.bf16.mxu0 0
        %3079 = vmatpush1.bf16.msra.mxu0 0
        %3080 = vmatprep.subr.bf16.mxu0 0
        %3081 = vmatpush1.bf16.msra.mxu0 0
        %3082 = vmatprep.subr.bf16.mxu0 0
        %3083 = vmatpush1.bf16.msra.mxu0 0
        %3084 = vmatprep.subr.bf16.mxu0 0
        %3085 = vmatpush1.bf16.msra.mxu0 0
        %3086 = vmatprep.subr.bf16.mxu0 0
        %3087 = vmatpush1.bf16.msra.mxu0 0
        %3088 = vmatprep.subr.bf16.mxu0 0
        %3089 = vmatpush1.bf16.msra.mxu0 0
        %3090 = vmatprep.mubr.bf16.mxu0 0
        %3091 = vmatmul.mubr.bf16.gmra.mrb[0].mxu0 %v2999
        %v3092 = vpop.f32.mrb[0].mxu0
        %v3093 = vadd.f32 %v3008, %v3092
        %v3094 = vpop.f32.mrb[0].mxu0
        %v3095 = vpop.f32.mrb[0].mxu0
        %v3096 = vadd.f32 %v3008, %v3095
        %v3097 = vpop.f32.mrb[0].mxu0
        %3098 = vmatprep.mubr.bf16.mxu0 0
        %3099 = vmatmul.mubr.bf16.gmra.mrb[0].mxu0 %v3000
        %v3100 = vpop.f32.mrb[0].mxu0
        %v3101 = vadd.f32 %v3008, %v3100
        %v3102 = vpop.f32.mrb[0].mxu0
        %v3103 = vpop.f32.mrb[0].mxu0
        %v3104 = vadd.f32 %v3008, %v3103
        %v3105 = vpop.f32.mrb[0].mxu0
        %3106 = vmatprep.mubr.bf16.mxu0 0
        %3107 = vmatmul.mubr.bf16.gmra.mrb[0].mxu0 %v3001
        %v3108 = vpop.f32.mrb[0].mxu0
        %v3109 = vadd.f32 %v3008, %v3108
        %v3110 = vpop.f32.mrb[0].mxu0
        %v3111 = vpop.f32.mrb[0].mxu0
        %v3112 = vadd.f32 %v3008, %v3111
        %v3113 = vpop.f32.mrb[0].mxu0
        %3114 = vmatprep.mubr.bf16.mxu0 0
        %3115 = vmatmul.mubr.bf16.gmra.mrb[0].mxu0 %v3002
        %v3116 = vpop.f32.mrb[0].mxu0
        %v3117 = vadd.f32 %v3008, %v3116
        %v3118 = vpop.f32.mrb[0].mxu0
        %v3119 = vpop.f32.mrb[0].mxu0
        %v3120 = vadd.f32 %v3008, %v3119
        %v3121 = vpop.f32.mrb[0].mxu0
        %3122 = vdwg.mxu0
        %v3123 = vld [vmem:[%s13] sm:$0x1]
        %v3124 = vld [vmem:[%s14] sm:$0x1]
        %v3125 = vsel %vm494, %v3093, 0.0
        %3126 = vadd.xlane.f32.xlu0 %v3125
        %v3127 = vpop.xlane.xlu0 %3126
        %v3128 = vsel %vm494, %v3096, 0.0
        %3129 = vadd.xlane.f32.xlu0 %v3128
        %v3130 = vpop.xlane.xlu0 %3129
        %v3131 = vsel %vm494, %v3101, 0.0
        %3132 = vadd.xlane.f32.xlu0 %v3131
        %v3133 = vpop.xlane.xlu0 %3132
        %v3134 = vsel %vm494, %v3104, 0.0
        %3135 = vadd.xlane.f32.xlu0 %v3134
        %v3136 = vpop.xlane.xlu0 %3135
        %v3137 = vsel %vm494, %v3109, 0.0
        %3138 = vadd.xlane.f32.xlu0 %v3137
        %v3139 = vpop.xlane.xlu0 %3138
        %v3140 = vsel %vm494, %v3112, 0.0
        %3141 = vadd.xlane.f32.xlu0 %v3140
        %v3142 = vpop.xlane.xlu0 %3141
        %v3143 = vsel %vm494, %v3117, 0.0
        %3144 = vadd.xlane.f32.xlu0 %v3143
        %v3145 = vpop.xlane.xlu0 %3144
        %v3146 = vsel %vm494, %v3120, 0.0
        %3147 = vadd.xlane.f32.xlu0 %v3146
        %v3148 = vpop.xlane.xlu0 %3147
        %v3149 = vrcp.pop 8.0
        %v3150 = vmul.f32 %v3127, %v3149
        %v3151 = vmul.f32 %v3130, %v3149
        %v3152 = vmul.f32 %v3133, %v3149
        %v3153 = vmul.f32 %v3136, %v3149
        %v3154 = vmul.f32 %v3139, %v3149
        %v3155 = vmul.f32 %v3142, %v3149
        %v3156 = vmul.f32 %v3145, %v3149
        %v3157 = vmul.f32 %v3148, %v3149
        %v3158 = vsub.f32 %v3093, %v3150
        %v3159 = vsub.f32 %v3096, %v3151
        %v3160 = vsub.f32 %v3101, %v3152
        %v3161 = vsub.f32 %v3104, %v3153
        %v3162 = vsub.f32 %v3109, %v3154
        %v3163 = vsub.f32 %v3112, %v3155
        %v3164 = vsub.f32 %v3117, %v3156
        %v3165 = vsub.f32 %v3120, %v3157
        %v3166 = vmul.f32 %v3158, %v3158
        %v3167 = vmul.f32 %v3159, %v3159
        %v3168 = vmul.f32 %v3160, %v3160
        %v3169 = vmul.f32 %v3161, %v3161
        %v3170 = vmul.f32 %v3162, %v3162
        %v3171 = vmul.f32 %v3163, %v3163
        %v3172 = vmul.f32 %v3164, %v3164
        %v3173 = vmul.f32 %v3165, %v3165
        %v3174 = vsel %vm494, %v3166, 0.0
        %3175 = vadd.xlane.f32.xlu0 %v3174
        %v3176 = vpop.xlane.xlu0 %3175
        %v3177 = vsel %vm494, %v3167, 0.0
        %3178 = vadd.xlane.f32.xlu0 %v3177
        %v3179 = vpop.xlane.xlu0 %3178
        %v3180 = vsel %vm494, %v3168, 0.0
        %3181 = vadd.xlane.f32.xlu0 %v3180
        %v3182 = vpop.xlane.xlu0 %3181
        %v3183 = vsel %vm494, %v3169, 0.0
        %3184 = vadd.xlane.f32.xlu0 %v3183
        %v3185 = vpop.xlane.xlu0 %3184
        %v3186 = vsel %vm494, %v3170, 0.0
        %3187 = vadd.xlane.f32.xlu0 %v3186
        %v3188 = vpop.xlane.xlu0 %3187
        %v3189 = vsel %vm494, %v3171, 0.0
        %3190 = vadd.xlane.f32.xlu0 %v3189
        %v3191 = vpop.xlane.xlu0 %3190
        %v3192 = vsel %vm494, %v3172, 0.0
        %3193 = vadd.xlane.f32.xlu0 %v3192
        %v3194 = vpop.xlane.xlu0 %3193
        %v3195 = vsel %vm494, %v3173, 0.0
        %3196 = vadd.xlane.f32.xlu0 %v3195
        %v3197 = vpop.xlane.xlu0 %3196
        %v3198 = vmul.f32 %v3176, %v3149
        %v3199 = vmul.f32 %v3179, %v3149
        %v3200 = vmul.f32 %v3182, %v3149
        %v3201 = vmul.f32 %v3185, %v3149
        %v3202 = vmul.f32 %v3188, %v3149
        %v3203 = vmul.f32 %v3191, %v3149
        %v3204 = vmul.f32 %v3194, %v3149
        %v3205 = vmul.f32 %v3197, %v3149
        %v3206 = vadd.f32 %v3198, 1e-06
        %v3207 = vadd.f32 %v3199, 1e-06
        %v3208 = vadd.f32 %v3200, 1e-06
        %v3209 = vadd.f32 %v3201, 1e-06
        %v3210 = vadd.f32 %v3202, 1e-06
        %v3211 = vadd.f32 %v3203, 1e-06
        %v3212 = vadd.f32 %v3204, 1e-06
        %v3213 = vadd.f32 %v3205, 1e-06
        %v3214 = vrsqrt.pop %v3206
        %v3215 = vrsqrt.pop %v3207
        %v3216 = vrsqrt.pop %v3208
        %v3217 = vrsqrt.pop %v3209
        %v3218 = vrsqrt.pop %v3210
        %v3219 = vrsqrt.pop %v3211
        %v3220 = vrsqrt.pop %v3212
        %v3221 = vrsqrt.pop %v3213
        %v3222 = vmul.f32 %v3158, %v3214
        %v3223 = vmul.f32 %v3159, %v3215
        %v3224 = vmul.f32 %v3160, %v3216
        %v3225 = vmul.f32 %v3161, %v3217
        %v3226 = vmul.f32 %v3162, %v3218
        %v3227 = vmul.f32 %v3163, %v3219
        %v3228 = vmul.f32 %v3164, %v3220
        %v3229 = vmul.f32 %v3165, %v3221
        %v3231 = vlaneseq
        %v3232 = vshrl.u32 %v3231, 7
        %v3233 = vsub.s32 0, %v3232
        %v3234 = vrot.slane %v3123, %v3233
        %v3236 = vmul.f32 %v3222, %v3234
        %v3237 = vmul.f32 %v3223, %v3234
        %v3238 = vmul.f32 %v3224, %v3234
        %v3239 = vmul.f32 %v3225, %v3234
        %v3240 = vmul.f32 %v3226, %v3234
        %v3241 = vmul.f32 %v3227, %v3234
        %v3242 = vmul.f32 %v3228, %v3234
        %v3243 = vmul.f32 %v3229, %v3234
        %v3245 = vlaneseq
        %v3246 = vshrl.u32 %v3245, 7
        %v3247 = vsub.s32 0, %v3246
        %v3248 = vrot.slane %v3124, %v3247
        %v3250 = vadd.f32 %v3236, %v3248
        %v3251 = vadd.f32 %v3237, %v3248
        %v3252 = vadd.f32 %v3238, %v3248
        %v3253 = vadd.f32 %v3239, %v3248
        %v3254 = vadd.f32 %v3240, %v3248
        %v3255 = vadd.f32 %v3241, %v3248
        %v3256 = vadd.f32 %v3242, %v3248
        %v3257 = vadd.f32 %v3243, %v3248
        %3258 = vst.msk [vmem:[%s487] sm:$0xff] %vm494, %v3250
        %3259 = vst.msk [vmem:[%s487 + $0x10] sm:$0xff] %vm494, %v3251
        %3260 = vst.msk [vmem:[%s487 + $0x20] sm:$0xff] %vm494, %v3252
        %3261 = vst.msk [vmem:[%s487 + $0x30] sm:$0xff] %vm494, %v3253
        %3262 = vst.msk [vmem:[%s487 + $0x40] sm:$0xff] %vm494, %v3254
        %3263 = vst.msk [vmem:[%s487 + $0x50] sm:$0xff] %vm494, %v3255
        %3264 = vst.msk [vmem:[%s487 + $0x60] sm:$0xff] %vm494, %v3256
        %3265 = vst.msk [vmem:[%s487 + $0x70] sm:$0xff] %vm494, %v3257
        %3266 = vst.msk [vmem:[#allocation4] sm:$0xff] %vm1044, %v2843
        %3267 = vst.msk [vmem:[#allocation4 + $0x18] sm:$0xff] %vm1044, %v2846
        %3268 = vst.msk [vmem:[#allocation4 + $0x30] sm:$0xff] %vm1044, %v2849
        %3269 = vst.msk [vmem:[#allocation4 + $0x48] sm:$0xff] %vm1044, %v2852
        %3270 = vst.msk [vmem:[#allocation4 + $0x60] sm:$0xff] %vm1044, %v2855
        %3271 = vst.msk [vmem:[#allocation4 + $0x78] sm:$0xff] %vm1044, %v2858
        %3272 = vst.msk [vmem:[#allocation4 + $0x90] sm:$0xff] %vm1044, %v2861
        %3273 = vst.msk [vmem:[#allocation4 + $0xa8] sm:$0xff] %vm1044, %v2864
        %v3274 = vrot.slane %v2797, 2
        %v3275 = vrot.slane %v2798, 2
        %v3276 = vsel %vm635, %v3274, %v3275
        %v3277 = vrot.slane %v2799, 2
        %v3278 = vrot.slane %v2800, 2
        %v3279 = vsel %vm635, %v3277, %v3278
        %v3280 = vrot.slane %v2801, 2
        %v3281 = vrot.slane %v2802, 2
        %v3282 = vsel %vm635, %v3280, %v3281
        %v3283 = vrot.slane %v2803, 2
        %v3284 = vrot.slane %v2804, 2
        %v3285 = vsel %vm635, %v3283, %v3284
        %v3286 = vrot.slane %v2805, 2
        %v3287 = vrot.slane %v2806, 2
        %v3288 = vsel %vm635, %v3286, %v3287
        %v3289 = vrot.slane %v2807, 2
        %v3290 = vrot.slane %v2808, 2
        %v3291 = vsel %vm635, %v3289, %v3290
        %v3292 = vrot.slane %v2809, 2
        %v3293 = vrot.slane %v2810, 2
        %v3294 = vsel %vm635, %v3292, %v3293
        %v3295 = vrot.slane %v2811, 2
        %v3296 = vrot.slane %v2812, 2
        %v3297 = vsel %vm635, %v3295, %v3296
        %3298 = vrot.lane.b32.xlu0 %v3276, 32
        %v3299 = vpop.permute.xlu0 %3298
        %3300 = vrot.lane.b32.xlu0 %v3279, 32
        %v3301 = vpop.permute.xlu0 %3300
        %3302 = vrot.lane.b32.xlu0 %v3282, 32
        %v3303 = vpop.permute.xlu0 %3302
        %3304 = vrot.lane.b32.xlu0 %v3285, 32
        %v3305 = vpop.permute.xlu0 %3304
        %3306 = vrot.lane.b32.xlu0 %v3288, 32
        %v3307 = vpop.permute.xlu0 %3306
        %3308 = vrot.lane.b32.xlu0 %v3291, 32
        %v3309 = vpop.permute.xlu0 %3308
        %3310 = vrot.lane.b32.xlu0 %v3294, 32
        %v3311 = vpop.permute.xlu0 %3310
        %3312 = vrot.lane.b32.xlu0 %v3297, 32
        %v3313 = vpop.permute.xlu0 %3312
        %3322 = vst.msk [vmem:[#allocation4] sm:$0xff] %vm1187, %v3299
        %3323 = vst.msk [vmem:[#allocation4 + $0x18] sm:$0xff] %vm1187, %v3301
        %3324 = vst.msk [vmem:[#allocation4 + $0x30] sm:$0xff] %vm1187, %v3303
        %3325 = vst.msk [vmem:[#allocation4 + $0x48] sm:$0xff] %vm1187, %v3305
        %3326 = vst.msk [vmem:[#allocation4 + $0x60] sm:$0xff] %vm1187, %v3307
        %3327 = vst.msk [vmem:[#allocation4 + $0x78] sm:$0xff] %vm1187, %v3309
        %3328 = vst.msk [vmem:[#allocation4 + $0x90] sm:$0xff] %vm1187, %v3311
        %3329 = vst.msk [vmem:[#allocation4 + $0xa8] sm:$0xff] %vm1187, %v3313
        %3330 = vrot.lane.b32.xlu0 %v2846, 64
        %v3331 = vpop.permute.xlu0 %3330
        %3332 = vrot.lane.b32.xlu0 %v2849, 64
        %v3333 = vpop.permute.xlu0 %3332
        %3334 = vrot.lane.b32.xlu0 %v2852, 64
        %v3335 = vpop.permute.xlu0 %3334
        %3336 = vrot.lane.b32.xlu0 %v2855, 64
        %v3337 = vpop.permute.xlu0 %3336
        %3338 = vrot.lane.b32.xlu0 %v2858, 64
        %v3339 = vpop.permute.xlu0 %3338
        %3340 = vrot.lane.b32.xlu0 %v2861, 64
        %v3341 = vpop.permute.xlu0 %3340
        %3342 = vrot.lane.b32.xlu0 %v2864, 64
        %v3343 = vpop.permute.xlu0 %3342
        %3344 = vrot.lane.b32.xlu0 %v2941, 64
        %v3345 = vpop.permute.xlu0 %3344
        %3354 = vst.msk [vmem:[#allocation4] sm:$0xff] %vm1244, %v3331
        %3355 = vst.msk [vmem:[#allocation4 + $0x18] sm:$0xff] %vm1244, %v3333
        %3356 = vst.msk [vmem:[#allocation4 + $0x30] sm:$0xff] %vm1244, %v3335
        %3357 = vst.msk [vmem:[#allocation4 + $0x48] sm:$0xff] %vm1244, %v3337
        %3358 = vst.msk [vmem:[#allocation4 + $0x60] sm:$0xff] %vm1244, %v3339
        %3359 = vst.msk [vmem:[#allocation4 + $0x78] sm:$0xff] %vm1244, %v3341
        %3360 = vst.msk [vmem:[#allocation4 + $0x90] sm:$0xff] %vm1244, %v3343
        %3361 = vst.msk [vmem:[#allocation4 + $0xa8] sm:$0xff] %vm1244, %v3345
        %v3362 = vrot.slane %v2813, 2
        %v3363 = vrot.slane %v2814, 2
        %v3364 = vsel %vm635, %v3362, %v3363
        %3365 = vrot.lane.b32.xlu0 %v3279, 96
        %v3366 = vpop.permute.xlu0 %3365
        %3367 = vrot.lane.b32.xlu0 %v3282, 96
        %v3368 = vpop.permute.xlu0 %3367
        %3369 = vrot.lane.b32.xlu0 %v3285, 96
        %v3370 = vpop.permute.xlu0 %3369
        %3371 = vrot.lane.b32.xlu0 %v3288, 96
        %v3372 = vpop.permute.xlu0 %3371
        %3373 = vrot.lane.b32.xlu0 %v3291, 96
        %v3374 = vpop.permute.xlu0 %3373
        %3375 = vrot.lane.b32.xlu0 %v3294, 96
        %v3376 = vpop.permute.xlu0 %3375
        %3377 = vrot.lane.b32.xlu0 %v3297, 96
        %v3378 = vpop.permute.xlu0 %3377
        %3379 = vrot.lane.b32.xlu0 %v3364, 96
        %v3380 = vpop.permute.xlu0 %3379
        %3389 = vst.msk [vmem:[#allocation4] sm:$0xff] %vm1278, %v3366
        %3390 = vst.msk [vmem:[#allocation4 + $0x18] sm:$0xff] %vm1278, %v3368
        %3391 = vst.msk [vmem:[#allocation4 + $0x30] sm:$0xff] %vm1278, %v3370
        %3392 = vst.msk [vmem:[#allocation4 + $0x48] sm:$0xff] %vm1278, %v3372
        %3393 = vst.msk [vmem:[#allocation4 + $0x60] sm:$0xff] %vm1278, %v3374
        %3394 = vst.msk [vmem:[#allocation4 + $0x78] sm:$0xff] %vm1278, %v3376
        %3395 = vst.msk [vmem:[#allocation4 + $0x90] sm:$0xff] %vm1278, %v3378
        %3396 = vst.msk [vmem:[#allocation4 + $0xa8] sm:$0xff] %vm1278, %v3380
        %s3397 = scalar_lea.vmem %s11, 64
        %v3398 = vld [vmem:[%s3397] sm:$0xf]
        %v3399 = vld [vmem:[%s3397 + $0x4] sm:$0xf]
        %v3400 = vld [vmem:[%s3397 + $0x8] sm:$0xf]
        %v3401 = vld [vmem:[%s3397 + $0xc] sm:$0xf]
        %v3402 = vld [vmem:[%s3397 + $0x10] sm:$0xf]
        %v3403 = vld [vmem:[%s3397 + $0x14] sm:$0xf]
        %v3404 = vld [vmem:[%s3397 + $0x18] sm:$0xf]
        %v3405 = vld [vmem:[%s3397 + $0x1c] sm:$0xf]
        %v3406 = vld [vmem:[%s3397 + $0x20] sm:$0xf]
        %v3407 = vld [vmem:[%s3397 + $0x24] sm:$0xf]
        %v3408 = vld [vmem:[%s3397 + $0x28] sm:$0xf]
        %v3409 = vld [vmem:[%s3397 + $0x2c] sm:$0xf]
        %v3410 = vld [vmem:[%s3397 + $0x30] sm:$0xf]
        %v3411 = vld [vmem:[%s3397 + $0x34] sm:$0xf]
        %v3412 = vld [vmem:[%s3397 + $0x38] sm:$0xf]
        %v3413 = vld [vmem:[%s3397 + $0x3c] sm:$0xf]
        %v3414 = vld [vmem:[#allocation4] sm:$0xff]
        %v3415 = vld [vmem:[#allocation4 + $0x18] sm:$0xff]
        %v3416 = vld [vmem:[#allocation4 + $0x30] sm:$0xff]
        %v3417 = vld [vmem:[#allocation4 + $0x48] sm:$0xff]
        %v3418 = vld [vmem:[#allocation4 + $0x60] sm:$0xff]
        %v3419 = vld [vmem:[#allocation4 + $0x78] sm:$0xff]
        %v3420 = vld [vmem:[#allocation4 + $0x90] sm:$0xff]
        %v3421 = vld [vmem:[#allocation4 + $0xa8] sm:$0xff]
        %v3422 = vpack.c.bf16 %v3415, %v3414
        %v3423 = vpack.c.bf16 %v3417, %v3416
        %v3424 = vpack.c.bf16 %v3419, %v3418
        %v3425 = vpack.c.bf16 %v3421, %v3420
        %v3426 = vld [vmem:[%s12] sm:$0x1]
        %v3428 = vlaneseq
        %v3429 = vshrl.u32 %v3428, 7
        %v3430 = vsub.s32 0, %v3429
        %v3431 = vrot.slane %v3426, %v3430
        %v3449 = vunpack.c.l.b16 %v3398
        %v3450 = vunpack.c.l.b16 %v3399
        %v3451 = vunpack.c.l.b16 %v3400
        %v3452 = vunpack.c.l.b16 %v3401
        %v3453 = vunpack.c.l.b16 %v3402
        %v3454 = vunpack.c.l.b16 %v3403
        %v3455 = vunpack.c.l.b16 %v3404
        %v3456 = vunpack.c.l.b16 %v3405
        %v3457 = vunpack.c.l.b16 %v3406
        %v3458 = vunpack.c.l.b16 %v3407
        %v3459 = vunpack.c.l.b16 %v3408
        %v3460 = vunpack.c.l.b16 %v3409
        %v3461 = vunpack.c.l.b16 %v3410
        %v3462 = vunpack.c.l.b16 %v3411
        %v3463 = vunpack.c.l.b16 %v3412
        %v3464 = vunpack.c.l.b16 %v3413
        %v3465 = vpack.c.b16 %v3450, %v3449
        %v3466 = vpack.c.b16 %v3452, %v3451
        %v3467 = vpack.c.b16 %v3454, %v3453
        %v3468 = vpack.c.b16 %v3456, %v3455
        %v3469 = vpack.c.b16 %v3458, %v3457
        %v3470 = vpack.c.b16 %v3460, %v3459
        %v3471 = vpack.c.b16 %v3462, %v3461
        %v3472 = vpack.c.b16 %v3464, %v3463
        %3481 = vmatprep.subr.bf16.mxu0 0
        %3482 = vmatpush1.bf16.msra.mxu0 %v3465
        %3483 = vmatprep.subr.bf16.mxu0 0
        %3484 = vmatpush1.bf16.msra.mxu0 %v3466
        %3485 = vmatprep.subr.bf16.mxu0 0
        %3486 = vmatpush1.bf16.msra.mxu0 %v3467
        %3487 = vmatprep.subr.bf16.mxu0 0
        %3488 = vmatpush1.bf16.msra.mxu0 %v3468
        %3489 = vmatprep.subr.bf16.mxu0 0
        %3490 = vmatpush1.bf16.msra.mxu0 %v3469
        %3491 = vmatprep.subr.bf16.mxu0 0
        %3492 = vmatpush1.bf16.msra.mxu0 %v3470
        %3493 = vmatprep.subr.bf16.mxu0 0
        %3494 = vmatpush1.bf16.msra.mxu0 %v3471
        %3495 = vmatprep.subr.bf16.mxu0 0
        %3496 = vmatpush1.bf16.msra.mxu0 %v3472
        %3497 = vmatprep.subr.bf16.mxu0 0
        %3498 = vmatpush1.bf16.msra.mxu0 0
        %3499 = vmatprep.subr.bf16.mxu0 0
        %3500 = vmatpush1.bf16.msra.mxu0 0
        %3501 = vmatprep.subr.bf16.mxu0 0
        %3502 = vmatpush1.bf16.msra.mxu0 0
        %3503 = vmatprep.subr.bf16.mxu0 0
        %3504 = vmatpush1.bf16.msra.mxu0 0
        %3505 = vmatprep.subr.bf16.mxu0 0
        %3506 = vmatpush1.bf16.msra.mxu0 0
        %3507 = vmatprep.subr.bf16.mxu0 0
        %3508 = vmatpush1.bf16.msra.mxu0 0
        %3509 = vmatprep.subr.bf16.mxu0 0
        %3510 = vmatpush1.bf16.msra.mxu0 0
        %3511 = vmatprep.subr.bf16.mxu0 0
        %3512 = vmatpush1.bf16.msra.mxu0 0
        %3513 = vmatprep.mubr.bf16.mxu0 0
        %3514 = vmatmul.mubr.bf16.gmra.mrb[0].mxu0 %v3422
        %v3515 = vpop.f32.mrb[0].mxu0
        %v3516 = vadd.f32 %v3431, %v3515
        %v3517 = vpop.f32.mrb[0].mxu0
        %v3518 = vpop.f32.mrb[0].mxu0
        %v3519 = vadd.f32 %v3431, %v3518
        %v3520 = vpop.f32.mrb[0].mxu0
        %3521 = vmatprep.mubr.bf16.mxu0 0
        %3522 = vmatmul.mubr.bf16.gmra.mrb[0].mxu0 %v3423
        %v3523 = vpop.f32.mrb[0].mxu0
        %v3524 = vadd.f32 %v3431, %v3523
        %v3525 = vpop.f32.mrb[0].mxu0
        %v3526 = vpop.f32.mrb[0].mxu0
        %v3527 = vadd.f32 %v3431, %v3526
        %v3528 = vpop.f32.mrb[0].mxu0
        %3529 = vmatprep.mubr.bf16.mxu0 0
        %3530 = vmatmul.mubr.bf16.gmra.mrb[0].mxu0 %v3424
        %v3531 = vpop.f32.mrb[0].mxu0
        %v3532 = vadd.f32 %v3431, %v3531
        %v3533 = vpop.f32.mrb[0].mxu0
        %v3534 = vpop.f32.mrb[0].mxu0
        %v3535 = vadd.f32 %v3431, %v3534
        %v3536 = vpop.f32.mrb[0].mxu0
        %3537 = vmatprep.mubr.bf16.mxu0 0
        %3538 = vmatmul.mubr.bf16.gmra.mrb[0].mxu0 %v3425
        %v3539 = vpop.f32.mrb[0].mxu0
        %v3540 = vadd.f32 %v3431, %v3539
        %v3541 = vpop.f32.mrb[0].mxu0
        %v3542 = vpop.f32.mrb[0].mxu0
        %v3543 = vadd.f32 %v3431, %v3542
        %v3544 = vpop.f32.mrb[0].mxu0
        %3545 = vdwg.mxu0
        %v3546 = vld [vmem:[%s13] sm:$0x1]
        %v3547 = vld [vmem:[%s14] sm:$0x1]
        %v3548 = vsel %vm494, %v3516, 0.0
        %3549 = vadd.xlane.f32.xlu0 %v3548
        %v3550 = vpop.xlane.xlu0 %3549
        %v3551 = vsel %vm494, %v3519, 0.0
        %3552 = vadd.xlane.f32.xlu0 %v3551
        %v3553 = vpop.xlane.xlu0 %3552
        %v3554 = vsel %vm494, %v3524, 0.0
        %3555 = vadd.xlane.f32.xlu0 %v3554
        %v3556 = vpop.xlane.xlu0 %3555
        %v3557 = vsel %vm494, %v3527, 0.0
        %3558 = vadd.xlane.f32.xlu0 %v3557
        %v3559 = vpop.xlane.xlu0 %3558
        %v3560 = vsel %vm494, %v3532, 0.0
        %3561 = vadd.xlane.f32.xlu0 %v3560
        %v3562 = vpop.xlane.xlu0 %3561
        %v3563 = vsel %vm494, %v3535, 0.0
        %3564 = vadd.xlane.f32.xlu0 %v3563
        %v3565 = vpop.xlane.xlu0 %3564
        %v3566 = vsel %vm494, %v3540, 0.0
        %3567 = vadd.xlane.f32.xlu0 %v3566
        %v3568 = vpop.xlane.xlu0 %3567
        %v3569 = vsel %vm494, %v3543, 0.0
        %3570 = vadd.xlane.f32.xlu0 %v3569
        %v3571 = vpop.xlane.xlu0 %3570
        %v3572 = vmul.f32 %v3550, %v3149
        %v3573 = vmul.f32 %v3553, %v3149
        %v3574 = vmul.f32 %v3556, %v3149
        %v3575 = vmul.f32 %v3559, %v3149
        %v3576 = vmul.f32 %v3562, %v3149
        %v3577 = vmul.f32 %v3565, %v3149
        %v3578 = vmul.f32 %v3568, %v3149
        %v3579 = vmul.f32 %v3571, %v3149
        %v3580 = vsub.f32 %v3516, %v3572
        %v3581 = vsub.f32 %v3519, %v3573
        %v3582 = vsub.f32 %v3524, %v3574
        %v3583 = vsub.f32 %v3527, %v3575
        %v3584 = vsub.f32 %v3532, %v3576
        %v3585 = vsub.f32 %v3535, %v3577
        %v3586 = vsub.f32 %v3540, %v3578
        %v3587 = vsub.f32 %v3543, %v3579
        %v3588 = vmul.f32 %v3580, %v3580
        %v3589 = vmul.f32 %v3581, %v3581
        %v3590 = vmul.f32 %v3582, %v3582
        %v3591 = vmul.f32 %v3583, %v3583
        %v3592 = vmul.f32 %v3584, %v3584
        %v3593 = vmul.f32 %v3585, %v3585
        %v3594 = vmul.f32 %v3586, %v3586
        %v3595 = vmul.f32 %v3587, %v3587
        %v3596 = vsel %vm494, %v3588, 0.0
        %3597 = vadd.xlane.f32.xlu0 %v3596
        %v3598 = vpop.xlane.xlu0 %3597
        %v3599 = vsel %vm494, %v3589, 0.0
        %3600 = vadd.xlane.f32.xlu0 %v3599
        %v3601 = vpop.xlane.xlu0 %3600
        %v3602 = vsel %vm494, %v3590, 0.0
        %3603 = vadd.xlane.f32.xlu0 %v3602
        %v3604 = vpop.xlane.xlu0 %3603
        %v3605 = vsel %vm494, %v3591, 0.0
        %3606 = vadd.xlane.f32.xlu0 %v3605
        %v3607 = vpop.xlane.xlu0 %3606
        %v3608 = vsel %vm494, %v3592, 0.0
        %3609 = vadd.xlane.f32.xlu0 %v3608
        %v3610 = vpop.xlane.xlu0 %3609
        %v3611 = vsel %vm494, %v3593, 0.0
        %3612 = vadd.xlane.f32.xlu0 %v3611
        %v3613 = vpop.xlane.xlu0 %3612
        %v3614 = vsel %vm494, %v3594, 0.0
        %3615 = vadd.xlane.f32.xlu0 %v3614
        %v3616 = vpop.xlane.xlu0 %3615
        %v3617 = vsel %vm494, %v3595, 0.0
        %3618 = vadd.xlane.f32.xlu0 %v3617
        %v3619 = vpop.xlane.xlu0 %3618
        %v3620 = vmul.f32 %v3598, %v3149
        %v3621 = vmul.f32 %v3601, %v3149
        %v3622 = vmul.f32 %v3604, %v3149
        %v3623 = vmul.f32 %v3607, %v3149
        %v3624 = vmul.f32 %v3610, %v3149
        %v3625 = vmul.f32 %v3613, %v3149
        %v3626 = vmul.f32 %v3616, %v3149
        %v3627 = vmul.f32 %v3619, %v3149
        %v3628 = vadd.f32 %v3620, 1e-06
        %v3629 = vadd.f32 %v3621, 1e-06
        %v3630 = vadd.f32 %v3622, 1e-06
        %v3631 = vadd.f32 %v3623, 1e-06
        %v3632 = vadd.f32 %v3624, 1e-06
        %v3633 = vadd.f32 %v3625, 1e-06
        %v3634 = vadd.f32 %v3626, 1e-06
        %v3635 = vadd.f32 %v3627, 1e-06
        %v3636 = vrsqrt.pop %v3628
        %v3637 = vrsqrt.pop %v3629
        %v3638 = vrsqrt.pop %v3630
        %v3639 = vrsqrt.pop %v3631
        %v3640 = vrsqrt.pop %v3632
        %v3641 = vrsqrt.pop %v3633
        %v3642 = vrsqrt.pop %v3634
        %v3643 = vrsqrt.pop %v3635
        %v3644 = vmul.f32 %v3580, %v3636
        %v3645 = vmul.f32 %v3581, %v3637
        %v3646 = vmul.f32 %v3582, %v3638
        %v3647 = vmul.f32 %v3583, %v3639
        %v3648 = vmul.f32 %v3584, %v3640
        %v3649 = vmul.f32 %v3585, %v3641
        %v3650 = vmul.f32 %v3586, %v3642
        %v3651 = vmul.f32 %v3587, %v3643
        %v3653 = vlaneseq
        %v3654 = vshrl.u32 %v3653, 7
        %v3655 = vsub.s32 0, %v3654
        %v3656 = vrot.slane %v3546, %v3655
        %v3658 = vmul.f32 %v3644, %v3656
        %v3659 = vmul.f32 %v3645, %v3656
        %v3660 = vmul.f32 %v3646, %v3656
        %v3661 = vmul.f32 %v3647, %v3656
        %v3662 = vmul.f32 %v3648, %v3656
        %v3663 = vmul.f32 %v3649, %v3656
        %v3664 = vmul.f32 %v3650, %v3656
        %v3665 = vmul.f32 %v3651, %v3656
        %v3667 = vlaneseq
        %v3668 = vshrl.u32 %v3667, 7
        %v3669 = vsub.s32 0, %v3668
        %v3670 = vrot.slane %v3547, %v3669
        %v3672 = vadd.f32 %v3658, %v3670
        %v3673 = vadd.f32 %v3659, %v3670
        %v3674 = vadd.f32 %v3660, %v3670
        %v3675 = vadd.f32 %v3661, %v3670
        %v3676 = vadd.f32 %v3662, %v3670
        %v3677 = vadd.f32 %v3663, %v3670
        %v3678 = vadd.f32 %v3664, %v3670
        %v3679 = vadd.f32 %v3665, %v3670
        %3688 = vrot.lane.b32.xlu0 %v3672, 8
        %v3689 = vpop.permute.xlu0 %3688
        %3690 = vrot.lane.b32.xlu0 %v3673, 8
        %v3691 = vpop.permute.xlu0 %3690
        %3692 = vrot.lane.b32.xlu0 %v3674, 8
        %v3693 = vpop.permute.xlu0 %3692
        %3694 = vrot.lane.b32.xlu0 %v3675, 8
        %v3695 = vpop.permute.xlu0 %3694
        %3696 = vrot.lane.b32.xlu0 %v3676, 8
        %v3697 = vpop.permute.xlu0 %3696
        %3698 = vrot.lane.b32.xlu0 %v3677, 8
        %v3699 = vpop.permute.xlu0 %3698
        %3700 = vrot.lane.b32.xlu0 %v3678, 8
        %v3701 = vpop.permute.xlu0 %3700
        %3702 = vrot.lane.b32.xlu0 %v3679, 8
        %v3703 = vpop.permute.xlu0 %3702
        %3712 = vst.msk [vmem:[%s487] sm:$0xff] %vm626, %v3689
        %3713 = vst.msk [vmem:[%s487 + $0x10] sm:$0xff] %vm626, %v3691
        %3714 = vst.msk [vmem:[%s487 + $0x20] sm:$0xff] %vm626, %v3693
        %3715 = vst.msk [vmem:[%s487 + $0x30] sm:$0xff] %vm626, %v3695
        %3716 = vst.msk [vmem:[%s487 + $0x40] sm:$0xff] %vm626, %v3697
        %3717 = vst.msk [vmem:[%s487 + $0x50] sm:$0xff] %vm626, %v3699
        %3718 = vst.msk [vmem:[%s487 + $0x60] sm:$0xff] %vm626, %v3701
        %3719 = vst.msk [vmem:[%s487 + $0x70] sm:$0xff] %vm626, %v3703
        %3720 = vst.msk [vmem:[#allocation4] sm:$0xff] %vm1044, %v2799
        %3721 = vst.msk [vmem:[#allocation4 + $0x18] sm:$0xff] %vm1044, %v2801
        %3722 = vst.msk [vmem:[#allocation4 + $0x30] sm:$0xff] %vm1044, %v2803
        %3723 = vst.msk [vmem:[#allocation4 + $0x48] sm:$0xff] %vm1044, %v2805
        %3724 = vst.msk [vmem:[#allocation4 + $0x60] sm:$0xff] %vm1044, %v2807
        %3725 = vst.msk [vmem:[#allocation4 + $0x78] sm:$0xff] %vm1044, %v2809
        %3726 = vst.msk [vmem:[#allocation4 + $0x90] sm:$0xff] %vm1044, %v2811
        %3727 = vst.msk [vmem:[#allocation4 + $0xa8] sm:$0xff] %vm1044, %v2813
        %3728 = vrot.lane.b32.xlu0 %v2941, 32
        %v3729 = vpop.permute.xlu0 %3728
        %3731 = vst.msk [vmem:[#allocation4] sm:$0xff] %vm1187, %v2876
        %3732 = vst.msk [vmem:[#allocation4 + $0x18] sm:$0xff] %vm1187, %v2878
        %3733 = vst.msk [vmem:[#allocation4 + $0x30] sm:$0xff] %vm1187, %v2880
        %3734 = vst.msk [vmem:[#allocation4 + $0x48] sm:$0xff] %vm1187, %v2882
        %3735 = vst.msk [vmem:[#allocation4 + $0x60] sm:$0xff] %vm1187, %v2884
        %3736 = vst.msk [vmem:[#allocation4 + $0x78] sm:$0xff] %vm1187, %v2886
        %3737 = vst.msk [vmem:[#allocation4 + $0x90] sm:$0xff] %vm1187, %v2888
        %3738 = vst.msk [vmem:[#allocation4 + $0xa8] sm:$0xff] %vm1187, %v3729
        %3740 = vrot.lane.b32.xlu0 %v2815, 64
        %v3741 = vpop.permute.xlu0 %3740
        %3743 = vst.msk [vmem:[#allocation4] sm:$0xff] %vm1244, %v2909
        %3744 = vst.msk [vmem:[#allocation4 + $0x18] sm:$0xff] %vm1244, %v2911
        %3745 = vst.msk [vmem:[#allocation4 + $0x30] sm:$0xff] %vm1244, %v2913
        %3746 = vst.msk [vmem:[#allocation4 + $0x48] sm:$0xff] %vm1244, %v2915
        %3747 = vst.msk [vmem:[#allocation4 + $0x60] sm:$0xff] %vm1244, %v2917
        %3748 = vst.msk [vmem:[#allocation4 + $0x78] sm:$0xff] %vm1244, %v2919
        %3749 = vst.msk [vmem:[#allocation4 + $0x90] sm:$0xff] %vm1244, %v2921
        %3750 = vst.msk [vmem:[#allocation4 + $0xa8] sm:$0xff] %vm1244, %v3741
        %v3752 = vrot.slane %v2815, 1
        %v3753 = vrot.slane %v2816, 1
        %v3754 = vsel %vm577, %v3752, %v3753
        %3755 = vrot.lane.b32.xlu0 %v3754, 96
        %v3756 = vpop.permute.xlu0 %3755
        %3758 = vst.msk [vmem:[#allocation4] sm:$0xff] %vm1278, %v2946
        %3759 = vst.msk [vmem:[#allocation4 + $0x18] sm:$0xff] %vm1278, %v2948
        %3760 = vst.msk [vmem:[#allocation4 + $0x30] sm:$0xff] %vm1278, %v2950
        %3761 = vst.msk [vmem:[#allocation4 + $0x48] sm:$0xff] %vm1278, %v2952
        %3762 = vst.msk [vmem:[#allocation4 + $0x60] sm:$0xff] %vm1278, %v2954
        %3763 = vst.msk [vmem:[#allocation4 + $0x78] sm:$0xff] %vm1278, %v2956
        %3764 = vst.msk [vmem:[#allocation4 + $0x90] sm:$0xff] %vm1278, %v2958
        %3765 = vst.msk [vmem:[#allocation4 + $0xa8] sm:$0xff] %vm1278, %v3756
        %s3766 = scalar_lea.vmem %s11, 128
        %v3767 = vld [vmem:[%s3766] sm:$0xf]
        %v3768 = vld [vmem:[%s3766 + $0x4] sm:$0xf]
        %v3769 = vld [vmem:[%s3766 + $0x8] sm:$0xf]
        %v3770 = vld [vmem:[%s3766 + $0xc] sm:$0xf]
        %v3771 = vld [vmem:[%s3766 + $0x10] sm:$0xf]
        %v3772 = vld [vmem:[%s3766 + $0x14] sm:$0xf]
        %v3773 = vld [vmem:[%s3766 + $0x18] sm:$0xf]
        %v3774 = vld [vmem:[%s3766 + $0x1c] sm:$0xf]
        %v3775 = vld [vmem:[%s3766 + $0x20] sm:$0xf]
        %v3776 = vld [vmem:[%s3766 + $0x24] sm:$0xf]
        %v3777 = vld [vmem:[%s3766 + $0x28] sm:$0xf]
        %v3778 = vld [vmem:[%s3766 + $0x2c] sm:$0xf]
        %v3779 = vld [vmem:[%s3766 + $0x30] sm:$0xf]
        %v3780 = vld [vmem:[%s3766 + $0x34] sm:$0xf]
        %v3781 = vld [vmem:[%s3766 + $0x38] sm:$0xf]
        %v3782 = vld [vmem:[%s3766 + $0x3c] sm:$0xf]
        %v3783 = vld [vmem:[#allocation4] sm:$0xff]
        %v3784 = vld [vmem:[#allocation4 + $0x18] sm:$0xff]
        %v3785 = vld [vmem:[#allocation4 + $0x30] sm:$0xff]
        %v3786 = vld [vmem:[#allocation4 + $0x48] sm:$0xff]
        %v3787 = vld [vmem:[#allocation4 + $0x60] sm:$0xff]
        %v3788 = vld [vmem:[#allocation4 + $0x78] sm:$0xff]
        %v3789 = vld [vmem:[#allocation4 + $0x90] sm:$0xff]
        %v3790 = vld [vmem:[#allocation4 + $0xa8] sm:$0xff]
        %v3791 = vpack.c.bf16 %v3784, %v3783
        %v3792 = vpack.c.bf16 %v3786, %v3785
        %v3793 = vpack.c.bf16 %v3788, %v3787
        %v3794 = vpack.c.bf16 %v3790, %v3789
        %v3795 = vld [vmem:[%s12] sm:$0x1]
        %v3797 = vlaneseq
        %v3798 = vshrl.u32 %v3797, 7
        %v3799 = vsub.s32 0, %v3798
        %v3800 = vrot.slane %v3795, %v3799
        %v3818 = vunpack.c.l.b16 %v3767
        %v3819 = vunpack.c.l.b16 %v3768
        %v3820 = vunpack.c.l.b16 %v3769
        %v3821 = vunpack.c.l.b16 %v3770
        %v3822 = vunpack.c.l.b16 %v3771
        %v3823 = vunpack.c.l.b16 %v3772
        %v3824 = vunpack.c.l.b16 %v3773
        %v3825 = vunpack.c.l.b16 %v3774
        %v3826 = vunpack.c.l.b16 %v3775
        %v3827 = vunpack.c.l.b16 %v3776
        %v3828 = vunpack.c.l.b16 %v3777
        %v3829 = vunpack.c.l.b16 %v3778
        %v3830 = vunpack.c.l.b16 %v3779
        %v3831 = vunpack.c.l.b16 %v3780
        %v3832 = vunpack.c.l.b16 %v3781
        %v3833 = vunpack.c.l.b16 %v3782
        %v3834 = vpack.c.b16 %v3819, %v3818
        %v3835 = vpack.c.b16 %v3821, %v3820
        %v3836 = vpack.c.b16 %v3823, %v3822
        %v3837 = vpack.c.b16 %v3825, %v3824
        %v3838 = vpack.c.b16 %v3827, %v3826
        %v3839 = vpack.c.b16 %v3829, %v3828
        %v3840 = vpack.c.b16 %v3831, %v3830
        %v3841 = vpack.c.b16 %v3833, %v3832
        %3850 = vmatprep.subr.bf16.mxu0 0
        %3851 = vmatpush1.bf16.msra.mxu0 %v3834
        %3852 = vmatprep.subr.bf16.mxu0 0
        %3853 = vmatpush1.bf16.msra.mxu0 %v3835
        %3854 = vmatprep.subr.bf16.mxu0 0
        %3855 = vmatpush1.bf16.msra.mxu0 %v3836
        %3856 = vmatprep.subr.bf16.mxu0 0
        %3857 = vmatpush1.bf16.msra.mxu0 %v3837
        %3858 = vmatprep.subr.bf16.mxu0 0
        %3859 = vmatpush1.bf16.msra.mxu0 %v3838
        %3860 = vmatprep.subr.bf16.mxu0 0
        %3861 = vmatpush1.bf16.msra.mxu0 %v3839
        %3862 = vmatprep.subr.bf16.mxu0 0
        %3863 = vmatpush1.bf16.msra.mxu0 %v3840
        %3864 = vmatprep.subr.bf16.mxu0 0
        %3865 = vmatpush1.bf16.msra.mxu0 %v3841
        %3866 = vmatprep.subr.bf16.mxu0 0
        %3867 = vmatpush1.bf16.msra.mxu0 0
        %3868 = vmatprep.subr.bf16.mxu0 0
        %3869 = vmatpush1.bf16.msra.mxu0 0
        %3870 = vmatprep.subr.bf16.mxu0 0
        %3871 = vmatpush1.bf16.msra.mxu0 0
        %3872 = vmatprep.subr.bf16.mxu0 0
        %3873 = vmatpush1.bf16.msra.mxu0 0
        %3874 = vmatprep.subr.bf16.mxu0 0
        %3875 = vmatpush1.bf16.msra.mxu0 0
        %3876 = vmatprep.subr.bf16.mxu0 0
        %3877 = vmatpush1.bf16.msra.mxu0 0
        %3878 = vmatprep.subr.bf16.mxu0 0
        %3879 = vmatpush1.bf16.msra.mxu0 0
        %3880 = vmatprep.subr.bf16.mxu0 0
        %3881 = vmatpush1.bf16.msra.mxu0 0
        %3882 = vmatprep.mubr.bf16.mxu0 0
        %3883 = vmatmul.mubr.bf16.gmra.mrb[0].mxu0 %v3791
        %v3884 = vpop.f32.mrb[0].mxu0
        %v3885 = vadd.f32 %v3800, %v3884
        %v3886 = vpop.f32.mrb[0].mxu0
        %v3887 = vpop.f32.mrb[0].mxu0
        %v3888 = vadd.f32 %v3800, %v3887
        %v3889 = vpop.f32.mrb[0].mxu0
        %3890 = vmatprep.mubr.bf16.mxu0 0
        %3891 = vmatmul.mubr.bf16.gmra.mrb[0].mxu0 %v3792
        %v3892 = vpop.f32.mrb[0].mxu0
        %v3893 = vadd.f32 %v3800, %v3892
        %v3894 = vpop.f32.mrb[0].mxu0
        %v3895 = vpop.f32.mrb[0].mxu0
        %v3896 = vadd.f32 %v3800, %v3895
        %v3897 = vpop.f32.mrb[0].mxu0
        %3898 = vmatprep.mubr.bf16.mxu0 0
        %3899 = vmatmul.mubr.bf16.gmra.mrb[0].mxu0 %v3793
        %v3900 = vpop.f32.mrb[0].mxu0
        %v3901 = vadd.f32 %v3800, %v3900
        %v3902 = vpop.f32.mrb[0].mxu0
        %v3903 = vpop.f32.mrb[0].mxu0
        %v3904 = vadd.f32 %v3800, %v3903
        %v3905 = vpop.f32.mrb[0].mxu0
        %3906 = vmatprep.mubr.bf16.mxu0 0
        %3907 = vmatmul.mubr.bf16.gmra.mrb[0].mxu0 %v3794
        %v3908 = vpop.f32.mrb[0].mxu0
        %v3909 = vadd.f32 %v3800, %v3908
        %v3910 = vpop.f32.mrb[0].mxu0
        %v3911 = vpop.f32.mrb[0].mxu0
        %v3912 = vadd.f32 %v3800, %v3911
        %v3913 = vpop.f32.mrb[0].mxu0
        %3914 = vdwg.mxu0
        %v3915 = vld [vmem:[%s13] sm:$0x1]
        %v3916 = vld [vmem:[%s14] sm:$0x1]
        %v3917 = vsel %vm494, %v3885, 0.0
        %3918 = vadd.xlane.f32.xlu0 %v3917
        %v3919 = vpop.xlane.xlu0 %3918
        %v3920 = vsel %vm494, %v3888, 0.0
        %3921 = vadd.xlane.f32.xlu0 %v3920
        %v3922 = vpop.xlane.xlu0 %3921
        %v3923 = vsel %vm494, %v3893, 0.0
        %3924 = vadd.xlane.f32.xlu0 %v3923
        %v3925 = vpop.xlane.xlu0 %3924
        %v3926 = vsel %vm494, %v3896, 0.0
        %3927 = vadd.xlane.f32.xlu0 %v3926
        %v3928 = vpop.xlane.xlu0 %3927
        %v3929 = vsel %vm494, %v3901, 0.0
        %3930 = vadd.xlane.f32.xlu0 %v3929
        %v3931 = vpop.xlane.xlu0 %3930
        %v3932 = vsel %vm494, %v3904, 0.0
        %3933 = vadd.xlane.f32.xlu0 %v3932
        %v3934 = vpop.xlane.xlu0 %3933
        %v3935 = vsel %vm494, %v3909, 0.0
        %3936 = vadd.xlane.f32.xlu0 %v3935
        %v3937 = vpop.xlane.xlu0 %3936
        %v3938 = vsel %vm494, %v3912, 0.0
        %3939 = vadd.xlane.f32.xlu0 %v3938
        %v3940 = vpop.xlane.xlu0 %3939
        %v3941 = vmul.f32 %v3919, %v3149
        %v3942 = vmul.f32 %v3922, %v3149
        %v3943 = vmul.f32 %v3925, %v3149
        %v3944 = vmul.f32 %v3928, %v3149
        %v3945 = vmul.f32 %v3931, %v3149
        %v3946 = vmul.f32 %v3934, %v3149
        %v3947 = vmul.f32 %v3937, %v3149
        %v3948 = vmul.f32 %v3940, %v3149
        %v3949 = vsub.f32 %v3885, %v3941
        %v3950 = vsub.f32 %v3888, %v3942
        %v3951 = vsub.f32 %v3893, %v3943
        %v3952 = vsub.f32 %v3896, %v3944
        %v3953 = vsub.f32 %v3901, %v3945
        %v3954 = vsub.f32 %v3904, %v3946
        %v3955 = vsub.f32 %v3909, %v3947
        %v3956 = vsub.f32 %v3912, %v3948
        %v3957 = vmul.f32 %v3949, %v3949
        %v3958 = vmul.f32 %v3950, %v3950
        %v3959 = vmul.f32 %v3951, %v3951
        %v3960 = vmul.f32 %v3952, %v3952
        %v3961 = vmul.f32 %v3953, %v3953
        %v3962 = vmul.f32 %v3954, %v3954
        %v3963 = vmul.f32 %v3955, %v3955
        %v3964 = vmul.f32 %v3956, %v3956
        %v3965 = vsel %vm494, %v3957, 0.0
        %3966 = vadd.xlane.f32.xlu0 %v3965
        %v3967 = vpop.xlane.xlu0 %3966
        %v3968 = vsel %vm494, %v3958, 0.0
        %3969 = vadd.xlane.f32.xlu0 %v3968
        %v3970 = vpop.xlane.xlu0 %3969
        %v3971 = vsel %vm494, %v3959, 0.0
        %3972 = vadd.xlane.f32.xlu0 %v3971
        %v3973 = vpop.xlane.xlu0 %3972
        %v3974 = vsel %vm494, %v3960, 0.0
        %3975 = vadd.xlane.f32.xlu0 %v3974
        %v3976 = vpop.xlane.xlu0 %3975
        %v3977 = vsel %vm494, %v3961, 0.0
        %3978 = vadd.xlane.f32.xlu0 %v3977
        %v3979 = vpop.xlane.xlu0 %3978
        %v3980 = vsel %vm494, %v3962, 0.0
        %3981 = vadd.xlane.f32.xlu0 %v3980
        %v3982 = vpop.xlane.xlu0 %3981
        %v3983 = vsel %vm494, %v3963, 0.0
        %3984 = vadd.xlane.f32.xlu0 %v3983
        %v3985 = vpop.xlane.xlu0 %3984
        %v3986 = vsel %vm494, %v3964, 0.0
        %3987 = vadd.xlane.f32.xlu0 %v3986
        %v3988 = vpop.xlane.xlu0 %3987
        %v3989 = vmul.f32 %v3967, %v3149
        %v3990 = vmul.f32 %v3970, %v3149
        %v3991 = vmul.f32 %v3973, %v3149
        %v3992 = vmul.f32 %v3976, %v3149
        %v3993 = vmul.f32 %v3979, %v3149
        %v3994 = vmul.f32 %v3982, %v3149
        %v3995 = vmul.f32 %v3985, %v3149
        %v3996 = vmul.f32 %v3988, %v3149
        %v3997 = vadd.f32 %v3989, 1e-06
        %v3998 = vadd.f32 %v3990, 1e-06
        %v3999 = vadd.f32 %v3991, 1e-06
        %v4000 = vadd.f32 %v3992, 1e-06
        %v4001 = vadd.f32 %v3993, 1e-06
        %v4002 = vadd.f32 %v3994, 1e-06
        %v4003 = vadd.f32 %v3995, 1e-06
        %v4004 = vadd.f32 %v3996, 1e-06
        %v4005 = vrsqrt.pop %v3997
        %v4006 = vrsqrt.pop %v3998
        %v4007 = vrsqrt.pop %v3999
        %v4008 = vrsqrt.pop %v4000
        %v4009 = vrsqrt.pop %v4001
        %v4010 = vrsqrt.pop %v4002
        %v4011 = vrsqrt.pop %v4003
        %v4012 = vrsqrt.pop %v4004
        %v4013 = vmul.f32 %v3949, %v4005
        %v4014 = vmul.f32 %v3950, %v4006
        %v4015 = vmul.f32 %v3951, %v4007
        %v4016 = vmul.f32 %v3952, %v4008
        %v4017 = vmul.f32 %v3953, %v4009
        %v4018 = vmul.f32 %v3954, %v4010
        %v4019 = vmul.f32 %v3955, %v4011
        %v4020 = vmul.f32 %v3956, %v4012
        %v4022 = vlaneseq
        %v4023 = vshrl.u32 %v4022, 7
        %v4024 = vsub.s32 0, %v4023
        %v4025 = vrot.slane %v3915, %v4024
        %v4027 = vmul.f32 %v4013, %v4025
        %v4028 = vmul.f32 %v4014, %v4025
        %v4029 = vmul.f32 %v4015, %v4025
        %v4030 = vmul.f32 %v4016, %v4025
        %v4031 = vmul.f32 %v4017, %v4025
        %v4032 = vmul.f32 %v4018, %v4025
        %v4033 = vmul.f32 %v4019, %v4025
        %v4034 = vmul.f32 %v4020, %v4025
        %v4036 = vlaneseq
        %v4037 = vshrl.u32 %v4036, 7
        %v4038 = vsub.s32 0, %v4037
        %v4039 = vrot.slane %v3916, %v4038
        %v4041 = vadd.f32 %v4027, %v4039
        %v4042 = vadd.f32 %v4028, %v4039
        %v4043 = vadd.f32 %v4029, %v4039
        %v4044 = vadd.f32 %v4030, %v4039
        %v4045 = vadd.f32 %v4031, %v4039
        %v4046 = vadd.f32 %v4032, %v4039
        %v4047 = vadd.f32 %v4033, %v4039
        %v4048 = vadd.f32 %v4034, %v4039
        %s4049 = scalar_lea.vmem %s487, 8 [#allocation5]
        %4050 = vst.msk [vmem:[%s4049] sm:$0xff] %vm494, %v4041
        %4051 = vst.msk [vmem:[%s4049 + $0x10] sm:$0xff] %vm494, %v4042
        %4052 = vst.msk [vmem:[%s4049 + $0x20] sm:$0xff] %vm494, %v4043
        %4053 = vst.msk [vmem:[%s4049 + $0x30] sm:$0xff] %vm494, %v4044
        %4054 = vst.msk [vmem:[%s4049 + $0x40] sm:$0xff] %vm494, %v4045
        %4055 = vst.msk [vmem:[%s4049 + $0x50] sm:$0xff] %vm494, %v4046
        %4056 = vst.msk [vmem:[%s4049 + $0x60] sm:$0xff] %vm494, %v4047
        %4057 = vst.msk [vmem:[%s4049 + $0x70] sm:$0xff] %vm494, %v4048
        %4058 = vst.msk [vmem:[#allocation4] sm:$0xff] %vm1044, %v2846
        %4059 = vst.msk [vmem:[#allocation4 + $0x18] sm:$0xff] %vm1044, %v2849
        %4060 = vst.msk [vmem:[#allocation4 + $0x30] sm:$0xff] %vm1044, %v2852
        %4061 = vst.msk [vmem:[#allocation4 + $0x48] sm:$0xff] %vm1044, %v2855
        %4062 = vst.msk [vmem:[#allocation4 + $0x60] sm:$0xff] %vm1044, %v2858
        %4063 = vst.msk [vmem:[#allocation4 + $0x78] sm:$0xff] %vm1044, %v2861
        %4064 = vst.msk [vmem:[#allocation4 + $0x90] sm:$0xff] %vm1044, %v2864
        %4065 = vst.msk [vmem:[#allocation4 + $0xa8] sm:$0xff] %vm1044, %v2941
        %4066 = vrot.lane.b32.xlu0 %v3364, 32
        %v4067 = vpop.permute.xlu0 %4066
        %4069 = vst.msk [vmem:[#allocation4] sm:$0xff] %vm1187, %v3301
        %4070 = vst.msk [vmem:[#allocation4 + $0x18] sm:$0xff] %vm1187, %v3303
        %4071 = vst.msk [vmem:[#allocation4 + $0x30] sm:$0xff] %vm1187, %v3305
        %4072 = vst.msk [vmem:[#allocation4 + $0x48] sm:$0xff] %vm1187, %v3307
        %4073 = vst.msk [vmem:[#allocation4 + $0x60] sm:$0xff] %vm1187, %v3309
        %4074 = vst.msk [vmem:[#allocation4 + $0x78] sm:$0xff] %vm1187, %v3311
        %4075 = vst.msk [vmem:[#allocation4 + $0x90] sm:$0xff] %vm1187, %v3313
        %4076 = vst.msk [vmem:[#allocation4 + $0xa8] sm:$0xff] %vm1187, %v4067
        %4077 = vrot.lane.b32.xlu0 %v3754, 64
        %v4078 = vpop.permute.xlu0 %4077
        %4080 = vst.msk [vmem:[#allocation4] sm:$0xff] %vm1244, %v3333
        %4081 = vst.msk [vmem:[#allocation4 + $0x18] sm:$0xff] %vm1244, %v3335
        %4082 = vst.msk [vmem:[#allocation4 + $0x30] sm:$0xff] %vm1244, %v3337
        %4083 = vst.msk [vmem:[#allocation4 + $0x48] sm:$0xff] %vm1244, %v3339
        %4084 = vst.msk [vmem:[#allocation4 + $0x60] sm:$0xff] %vm1244, %v3341
        %4085 = vst.msk [vmem:[#allocation4 + $0x78] sm:$0xff] %vm1244, %v3343
        %4086 = vst.msk [vmem:[#allocation4 + $0x90] sm:$0xff] %vm1244, %v3345
        %4087 = vst.msk [vmem:[#allocation4 + $0xa8] sm:$0xff] %vm1244, %v4078
        %v4088 = vrot.slane %v2815, 2
        %v4089 = vrot.slane %v2816, 2
        %v4090 = vsel %vm635, %v4088, %v4089
        %4091 = vrot.lane.b32.xlu0 %v4090, 96
        %v4092 = vpop.permute.xlu0 %4091
        %4094 = vst.msk [vmem:[#allocation4] sm:$0xff] %vm1278, %v3368
        %4095 = vst.msk [vmem:[#allocation4 + $0x18] sm:$0xff] %vm1278, %v3370
        %4096 = vst.msk [vmem:[#allocation4 + $0x30] sm:$0xff] %vm1278, %v3372
        %4097 = vst.msk [vmem:[#allocation4 + $0x48] sm:$0xff] %vm1278, %v3374
        %4098 = vst.msk [vmem:[#allocation4 + $0x60] sm:$0xff] %vm1278, %v3376
        %4099 = vst.msk [vmem:[#allocation4 + $0x78] sm:$0xff] %vm1278, %v3378
        %4100 = vst.msk [vmem:[#allocation4 + $0x90] sm:$0xff] %vm1278, %v3380
        %4101 = vst.msk [vmem:[#allocation4 + $0xa8] sm:$0xff] %vm1278, %v4092
        %s4102 = scalar_lea.vmem %s11, 192
        %v4103 = vld [vmem:[%s4102] sm:$0xf]
        %v4104 = vld [vmem:[%s4102 + $0x4] sm:$0xf]
        %v4105 = vld [vmem:[%s4102 + $0x8] sm:$0xf]
        %v4106 = vld [vmem:[%s4102 + $0xc] sm:$0xf]
        %v4107 = vld [vmem:[%s4102 + $0x10] sm:$0xf]
        %v4108 = vld [vmem:[%s4102 + $0x14] sm:$0xf]
        %v4109 = vld [vmem:[%s4102 + $0x18] sm:$0xf]
        %v4110 = vld [vmem:[%s4102 + $0x1c] sm:$0xf]
        %v4111 = vld [vmem:[%s4102 + $0x20] sm:$0xf]
        %v4112 = vld [vmem:[%s4102 + $0x24] sm:$0xf]
        %v4113 = vld [vmem:[%s4102 + $0x28] sm:$0xf]
        %v4114 = vld [vmem:[%s4102 + $0x2c] sm:$0xf]
        %v4115 = vld [vmem:[%s4102 + $0x30] sm:$0xf]
        %v4116 = vld [vmem:[%s4102 + $0x34] sm:$0xf]
        %v4117 = vld [vmem:[%s4102 + $0x38] sm:$0xf]
        %v4118 = vld [vmem:[%s4102 + $0x3c] sm:$0xf]
        %v4119 = vld [vmem:[#allocation4] sm:$0xff]
        %v4120 = vld [vmem:[#allocation4 + $0x18] sm:$0xff]
        %v4121 = vld [vmem:[#allocation4 + $0x30] sm:$0xff]
        %v4122 = vld [vmem:[#allocation4 + $0x48] sm:$0xff]
        %v4123 = vld [vmem:[#allocation4 + $0x60] sm:$0xff]
        %v4124 = vld [vmem:[#allocation4 + $0x78] sm:$0xff]
        %v4125 = vld [vmem:[#allocation4 + $0x90] sm:$0xff]
        %v4126 = vld [vmem:[#allocation4 + $0xa8] sm:$0xff]
        %v4127 = vpack.c.bf16 %v4120, %v4119
        %v4128 = vpack.c.bf16 %v4122, %v4121
        %v4129 = vpack.c.bf16 %v4124, %v4123
        %v4130 = vpack.c.bf16 %v4126, %v4125
        %v4131 = vld [vmem:[%s12] sm:$0x1]
        %v4133 = vlaneseq
        %v4134 = vshrl.u32 %v4133, 7
        %v4135 = vsub.s32 0, %v4134
        %v4136 = vrot.slane %v4131, %v4135
        %v4154 = vunpack.c.l.b16 %v4103
        %v4155 = vunpack.c.l.b16 %v4104
        %v4156 = vunpack.c.l.b16 %v4105
        %v4157 = vunpack.c.l.b16 %v4106
        %v4158 = vunpack.c.l.b16 %v4107
        %v4159 = vunpack.c.l.b16 %v4108
        %v4160 = vunpack.c.l.b16 %v4109
        %v4161 = vunpack.c.l.b16 %v4110
        %v4162 = vunpack.c.l.b16 %v4111
        %v4163 = vunpack.c.l.b16 %v4112
        %v4164 = vunpack.c.l.b16 %v4113
        %v4165 = vunpack.c.l.b16 %v4114
        %v4166 = vunpack.c.l.b16 %v4115
        %v4167 = vunpack.c.l.b16 %v4116
        %v4168 = vunpack.c.l.b16 %v4117
        %v4169 = vunpack.c.l.b16 %v4118
        %v4170 = vpack.c.b16 %v4155, %v4154
        %v4171 = vpack.c.b16 %v4157, %v4156
        %v4172 = vpack.c.b16 %v4159, %v4158
        %v4173 = vpack.c.b16 %v4161, %v4160
        %v4174 = vpack.c.b16 %v4163, %v4162
        %v4175 = vpack.c.b16 %v4165, %v4164
        %v4176 = vpack.c.b16 %v4167, %v4166
        %v4177 = vpack.c.b16 %v4169, %v4168
        %4186 = vmatprep.subr.bf16.mxu0 0
        %4187 = vmatpush1.bf16.msra.mxu0 %v4170
        %4188 = vmatprep.subr.bf16.mxu0 0
        %4189 = vmatpush1.bf16.msra.mxu0 %v4171
        %4190 = vmatprep.subr.bf16.mxu0 0
        %4191 = vmatpush1.bf16.msra.mxu0 %v4172
        %4192 = vmatprep.subr.bf16.mxu0 0
        %4193 = vmatpush1.bf16.msra.mxu0 %v4173
        %4194 = vmatprep.subr.bf16.mxu0 0
        %4195 = vmatpush1.bf16.msra.mxu0 %v4174
        %4196 = vmatprep.subr.bf16.mxu0 0
        %4197 = vmatpush1.bf16.msra.mxu0 %v4175
        %4198 = vmatprep.subr.bf16.mxu0 0
        %4199 = vmatpush1.bf16.msra.mxu0 %v4176
        %4200 = vmatprep.subr.bf16.mxu0 0
        %4201 = vmatpush1.bf16.msra.mxu0 %v4177
        %4202 = vmatprep.subr.bf16.mxu0 0
        %4203 = vmatpush1.bf16.msra.mxu0 0
        %4204 = vmatprep.subr.bf16.mxu0 0
        %4205 = vmatpush1.bf16.msra.mxu0 0
        %4206 = vmatprep.subr.bf16.mxu0 0
        %4207 = vmatpush1.bf16.msra.mxu0 0
        %4208 = vmatprep.subr.bf16.mxu0 0
        %4209 = vmatpush1.bf16.msra.mxu0 0
        %4210 = vmatprep.subr.bf16.mxu0 0
        %4211 = vmatpush1.bf16.msra.mxu0 0
        %4212 = vmatprep.subr.bf16.mxu0 0
        %4213 = vmatpush1.bf16.msra.mxu0 0
        %4214 = vmatprep.subr.bf16.mxu0 0
        %4215 = vmatpush1.bf16.msra.mxu0 0
        %4216 = vmatprep.subr.bf16.mxu0 0
        %4217 = vmatpush1.bf16.msra.mxu0 0
        %4218 = vmatprep.mubr.bf16.mxu0 0
        %4219 = vmatmul.mubr.bf16.gmra.mrb[0].mxu0 %v4127
        %v4220 = vpop.f32.mrb[0].mxu0
        %v4221 = vadd.f32 %v4136, %v4220
        %v4222 = vpop.f32.mrb[0].mxu0
        %v4223 = vpop.f32.mrb[0].mxu0
        %v4224 = vadd.f32 %v4136, %v4223
        %v4225 = vpop.f32.mrb[0].mxu0
        %4226 = vmatprep.mubr.bf16.mxu0 0
        %4227 = vmatmul.mubr.bf16.gmra.mrb[0].mxu0 %v4128
        %v4228 = vpop.f32.mrb[0].mxu0
        %v4229 = vadd.f32 %v4136, %v4228
        %v4230 = vpop.f32.mrb[0].mxu0
        %v4231 = vpop.f32.mrb[0].mxu0
        %v4232 = vadd.f32 %v4136, %v4231
        %v4233 = vpop.f32.mrb[0].mxu0
        %4234 = vmatprep.mubr.bf16.mxu0 0
        %4235 = vmatmul.mubr.bf16.gmra.mrb[0].mxu0 %v4129
        %v4236 = vpop.f32.mrb[0].mxu0
        %v4237 = vadd.f32 %v4136, %v4236
        %v4238 = vpop.f32.mrb[0].mxu0
        %v4239 = vpop.f32.mrb[0].mxu0
        %v4240 = vadd.f32 %v4136, %v4239
        %v4241 = vpop.f32.mrb[0].mxu0
        %4242 = vmatprep.mubr.bf16.mxu0 0
        %4243 = vmatmul.mubr.bf16.gmra.mrb[0].mxu0 %v4130
        %v4244 = vpop.f32.mrb[0].mxu0
        %v4245 = vadd.f32 %v4136, %v4244
        %v4246 = vpop.f32.mrb[0].mxu0
        %v4247 = vpop.f32.mrb[0].mxu0
        %v4248 = vadd.f32 %v4136, %v4247
        %v4249 = vpop.f32.mrb[0].mxu0
        %4250 = vdwg.mxu0
        %v4251 = vld [vmem:[%s13] sm:$0x1]
        %v4252 = vld [vmem:[%s14] sm:$0x1]
        %v4253 = vsel %vm494, %v4221, 0.0
        %4254 = vadd.xlane.f32.xlu0 %v4253
        %v4255 = vpop.xlane.xlu0 %4254
        %v4256 = vsel %vm494, %v4224, 0.0
        %4257 = vadd.xlane.f32.xlu0 %v4256
        %v4258 = vpop.xlane.xlu0 %4257
        %v4259 = vsel %vm494, %v4229, 0.0
        %4260 = vadd.xlane.f32.xlu0 %v4259
        %v4261 = vpop.xlane.xlu0 %4260
        %v4262 = vsel %vm494, %v4232, 0.0
        %4263 = vadd.xlane.f32.xlu0 %v4262
        %v4264 = vpop.xlane.xlu0 %4263
        %v4265 = vsel %vm494, %v4237, 0.0
        %4266 = vadd.xlane.f32.xlu0 %v4265
        %v4267 = vpop.xlane.xlu0 %4266
        %v4268 = vsel %vm494, %v4240, 0.0
        %4269 = vadd.xlane.f32.xlu0 %v4268
        %v4270 = vpop.xlane.xlu0 %4269
        %v4271 = vsel %vm494, %v4245, 0.0
        %4272 = vadd.xlane.f32.xlu0 %v4271
        %v4273 = vpop.xlane.xlu0 %4272
        %v4274 = vsel %vm494, %v4248, 0.0
        %4275 = vadd.xlane.f32.xlu0 %v4274
        %v4276 = vpop.xlane.xlu0 %4275
        %v4277 = vmul.f32 %v4255, %v3149
        %v4278 = vmul.f32 %v4258, %v3149
        %v4279 = vmul.f32 %v4261, %v3149
        %v4280 = vmul.f32 %v4264, %v3149
        %v4281 = vmul.f32 %v4267, %v3149
        %v4282 = vmul.f32 %v4270, %v3149
        %v4283 = vmul.f32 %v4273, %v3149
        %v4284 = vmul.f32 %v4276, %v3149
        %v4285 = vsub.f32 %v4221, %v4277
        %v4286 = vsub.f32 %v4224, %v4278
        %v4287 = vsub.f32 %v4229, %v4279
        %v4288 = vsub.f32 %v4232, %v4280
        %v4289 = vsub.f32 %v4237, %v4281
        %v4290 = vsub.f32 %v4240, %v4282
        %v4291 = vsub.f32 %v4245, %v4283
        %v4292 = vsub.f32 %v4248, %v4284
        %v4293 = vmul.f32 %v4285, %v4285
        %v4294 = vmul.f32 %v4286, %v4286
        %v4295 = vmul.f32 %v4287, %v4287
        %v4296 = vmul.f32 %v4288, %v4288
        %v4297 = vmul.f32 %v4289, %v4289
        %v4298 = vmul.f32 %v4290, %v4290
        %v4299 = vmul.f32 %v4291, %v4291
        %v4300 = vmul.f32 %v4292, %v4292
        %v4301 = vsel %vm494, %v4293, 0.0
        %4302 = vadd.xlane.f32.xlu0 %v4301
        %v4303 = vpop.xlane.xlu0 %4302
        %v4304 = vsel %vm494, %v4294, 0.0
        %4305 = vadd.xlane.f32.xlu0 %v4304
        %v4306 = vpop.xlane.xlu0 %4305
        %v4307 = vsel %vm494, %v4295, 0.0
        %4308 = vadd.xlane.f32.xlu0 %v4307
        %v4309 = vpop.xlane.xlu0 %4308
        %v4310 = vsel %vm494, %v4296, 0.0
        %4311 = vadd.xlane.f32.xlu0 %v4310
        %v4312 = vpop.xlane.xlu0 %4311
        %v4313 = vsel %vm494, %v4297, 0.0
        %4314 = vadd.xlane.f32.xlu0 %v4313
        %v4315 = vpop.xlane.xlu0 %4314
        %v4316 = vsel %vm494, %v4298, 0.0
        %4317 = vadd.xlane.f32.xlu0 %v4316
        %v4318 = vpop.xlane.xlu0 %4317
        %v4319 = vsel %vm494, %v4299, 0.0
        %4320 = vadd.xlane.f32.xlu0 %v4319
        %v4321 = vpop.xlane.xlu0 %4320
        %v4322 = vsel %vm494, %v4300, 0.0
        %4323 = vadd.xlane.f32.xlu0 %v4322
        %v4324 = vpop.xlane.xlu0 %4323
        %v4325 = vmul.f32 %v4303, %v3149
        %v4326 = vmul.f32 %v4306, %v3149
        %v4327 = vmul.f32 %v4309, %v3149
        %v4328 = vmul.f32 %v4312, %v3149
        %v4329 = vmul.f32 %v4315, %v3149
        %v4330 = vmul.f32 %v4318, %v3149
        %v4331 = vmul.f32 %v4321, %v3149
        %v4332 = vmul.f32 %v4324, %v3149
        %v4333 = vadd.f32 %v4325, 1e-06
        %v4334 = vadd.f32 %v4326, 1e-06
        %v4335 = vadd.f32 %v4327, 1e-06
        %v4336 = vadd.f32 %v4328, 1e-06
        %v4337 = vadd.f32 %v4329, 1e-06
        %v4338 = vadd.f32 %v4330, 1e-06
        %v4339 = vadd.f32 %v4331, 1e-06
        %v4340 = vadd.f32 %v4332, 1e-06
        %v4341 = vrsqrt.pop %v4333
        %v4342 = vrsqrt.pop %v4334
        %v4343 = vrsqrt.pop %v4335
        %v4344 = vrsqrt.pop %v4336
        %v4345 = vrsqrt.pop %v4337
        %v4346 = vrsqrt.pop %v4338
        %v4347 = vrsqrt.pop %v4339
        %v4348 = vrsqrt.pop %v4340
        %v4349 = vmul.f32 %v4285, %v4341
        %v4350 = vmul.f32 %v4286, %v4342
        %v4351 = vmul.f32 %v4287, %v4343
        %v4352 = vmul.f32 %v4288, %v4344
        %v4353 = vmul.f32 %v4289, %v4345
        %v4354 = vmul.f32 %v4290, %v4346
        %v4355 = vmul.f32 %v4291, %v4347
        %v4356 = vmul.f32 %v4292, %v4348
        %v4358 = vlaneseq
        %v4359 = vshrl.u32 %v4358, 7
        %v4360 = vsub.s32 0, %v4359
        %v4361 = vrot.slane %v4251, %v4360
        %v4363 = vmul.f32 %v4349, %v4361
        %v4364 = vmul.f32 %v4350, %v4361
        %v4365 = vmul.f32 %v4351, %v4361
        %v4366 = vmul.f32 %v4352, %v4361
        %v4367 = vmul.f32 %v4353, %v4361
        %v4368 = vmul.f32 %v4354, %v4361
        %v4369 = vmul.f32 %v4355, %v4361
        %v4370 = vmul.f32 %v4356, %v4361
        %v4372 = vlaneseq
        %v4373 = vshrl.u32 %v4372, 7
        %v4374 = vsub.s32 0, %v4373
        %v4375 = vrot.slane %v4252, %v4374
        %v4377 = vadd.f32 %v4363, %v4375
        %v4378 = vadd.f32 %v4364, %v4375
        %v4379 = vadd.f32 %v4365, %v4375
        %v4380 = vadd.f32 %v4366, %v4375
        %v4381 = vadd.f32 %v4367, %v4375
        %v4382 = vadd.f32 %v4368, %v4375
        %v4383 = vadd.f32 %v4369, %v4375
        %v4384 = vadd.f32 %v4370, %v4375
        %4393 = vrot.lane.b32.xlu0 %v4377, 8
        %v4394 = vpop.permute.xlu0 %4393
        %4395 = vrot.lane.b32.xlu0 %v4378, 8
        %v4396 = vpop.permute.xlu0 %4395
        %4397 = vrot.lane.b32.xlu0 %v4379, 8
        %v4398 = vpop.permute.xlu0 %4397
        %4399 = vrot.lane.b32.xlu0 %v4380, 8
        %v4400 = vpop.permute.xlu0 %4399
        %4401 = vrot.lane.b32.xlu0 %v4381, 8
        %v4402 = vpop.permute.xlu0 %4401
        %4403 = vrot.lane.b32.xlu0 %v4382, 8
        %v4404 = vpop.permute.xlu0 %4403
        %4405 = vrot.lane.b32.xlu0 %v4383, 8
        %v4406 = vpop.permute.xlu0 %4405
        %4407 = vrot.lane.b32.xlu0 %v4384, 8
        %v4408 = vpop.permute.xlu0 %4407
        %4417 = vst.msk [vmem:[%s4049] sm:$0xff] %vm626, %v4394
        %4418 = vst.msk [vmem:[%s4049 + $0x10] sm:$0xff] %vm626, %v4396
        %4419 = vst.msk [vmem:[%s4049 + $0x20] sm:$0xff] %vm626, %v4398
        %4420 = vst.msk [vmem:[%s4049 + $0x30] sm:$0xff] %vm626, %v4400
        %4421 = vst.msk [vmem:[%s4049 + $0x40] sm:$0xff] %vm626, %v4402
        %4422 = vst.msk [vmem:[%s4049 + $0x50] sm:$0xff] %vm626, %v4404
        %4423 = vst.msk [vmem:[%s4049 + $0x60] sm:$0xff] %vm626, %v4406
        %4424 = vst.msk [vmem:[%s4049 + $0x70] sm:$0xff] %vm626, %v4408
        %s4425 = sand.u32 %s357, 1
        %s4426 = scalar_lea.sflag [#allocation6], %s4425
        %s4427 = sand.u32 %s357, 1
        %s4428 = smul.addr %s4427, 128
        %s4429 = scalar_lea.vmem [#allocation5], %s4428
        // Predicated region
        $region81: #{tpu_custom_call.1} parent=79 // pred_check
          %p4430 = pneg %p367
        $region82: #{tpu_custom_call.1} parent=79 // pred_check_branch
          %4432 = sbr.rel (%p4430) target = $region84
        $region83: #{tpu_custom_call.1} parent=79 // pred_region
          %s4434 = ssub.s32 2048, 2048
          %4435 = vsyncadd %s4426, %s4434
          %s4436 = smul.addr %s29, 16
          %s4437 = smul.addr %s4436, 128
          %s4438 = scalar_lea.hbm %s15, %s4437
          %s4439 = sshll.u32 %s4429, 4
          %s4440 = int_to_ptr.vmem [resolvable:$true] %s4439
          %4445 = dma.vmem_to_hbm [thread:$0]  %s4440, 2048, %s4438, %s4426, 128, 128, 8
        $region84: #{tpu_custom_call.1} parent=79 // pred_fallthru
          _
      $region80: #{tpu_custom_call.1} parent=5 // pred_fallthru
        _
      %p4446 = scmp.le.s32.totalorder 2, %s24
      // Predicated region
      $region85: #{tpu_custom_call.1} parent=5 // pred_check
        %p4447 = pneg %p4446
      $region86: #{tpu_custom_call.1} parent=5 // pred_check_branch
        %4449 = sbr.rel (%p4447) target = $region88
      $region87: #{tpu_custom_call.1} parent=5 // pred_region
        %s4450 = ssub.s32 %s24, 2
        // Predicated region
        $region89: #{tpu_custom_call.1} parent=87 // pred_check
          %p4451 = pneg %p373
        $region90: #{tpu_custom_call.1} parent=87 // pred_check_branch
          %4453 = sbr.rel (%p4451) target = $region92
        $region91: #{tpu_custom_call.1} parent=87 // pred_region
          %s4454 = sand.u32 %s358, 1
          %s4455 = scalar_lea.sflag [#allocation6], %s4454
          %s4456 = sand.u32 %s358, 1
          %s4457 = smul.addr %s4456, 128
          %s4458 = scalar_lea.vmem [#allocation5], %s4457
          %4459 = dma.done %s4455, 2048
        $region92: #{tpu_custom_call.1} parent=87 // pred_fallthru
          _
      $region88: #{tpu_custom_call.1} parent=5 // pred_fallthru
        _
    $region6: #{tpu_custom_call.1} parent=1 // loop_footer
      %s28 = sadd.s32 1, %s24
    $region7: #{tpu_custom_call.1} parent=1 // loop_footer_branch
      %23 = sbr.rel target = $region3
    $region8: #{tpu_custom_call.1} parent=1 // loop_exit
      _
    %4460 = vsyncpa [#allocation6], 1
    %s4461 = scalar_lea.sflag [#allocation6], 1
    %4462 = vsyncpa %s4461, 1

</llo_original>
